<compile_context>
chip_gen: v7x
topology: tpu7x:2x2x1
jax: 0.10.0
libtpu: 0.0.40
codegen_flags: <defaults>
</compile_context>

<pallas_src>
import jax
import jax.numpy as jnp
from jax import lax
from jax.experimental import pallas as pl
from jax.experimental.pallas import tpu as pltpu


def bisenet_output_kernel(x_ref, w_ref, b_ref, o_ref, acc_ref):
    # x_ref  : (1, tile_h+2, Wp, Cin)  halo-overlapped, zero-padded row tile
    #                                  (Wp = W+2 rounded up to a multiple of 8)
    # w_ref  : (1, 9, Cin, Cout)       per-image fused weights (SE*conv3x3*BN*conv1x1)
    # b_ref  : (1, Cout)               fused bias (BN bias pushed through the 1x1 conv)
    # o_ref  : (1, tile_h, W, Cout)    Cout = n_classes padded to a multiple of 128
    # acc_ref: (tile_h, W, Cout) f32   VMEM scratch accumulator
    Wp, Cin = x_ref.shape[2], x_ref.shape[3]
    th, W, Cout = o_ref.shape[1], o_ref.shape[2], o_ref.shape[3]

    xp = x_ref[0]                                  # native dtype, no f32 upcast

    # Initialize the accumulator with the fused bias (saves a zero + add pass).
    bias = b_ref[...].astype(jnp.float32).reshape(1, 1, Cout)
    acc_ref[...] = jnp.broadcast_to(bias, (th, W, Cout))

    # 3x3 conv (with SE/BN/1x1 pre-folded): 9 shifted MXU matmuls.
    for kh in range(3):
        # Contiguous full-row slab: leading-dim slice; reshape is layout-free
        # because Wp is a multiple of 8 (sublane-aligned).
        slab = xp[kh:kh + th].reshape(th * Wp, Cin)
        for kw in range(3):
            y = jnp.dot(slab, w_ref[0, kh * 3 + kw],
                        preferred_element_type=jnp.float32)      # (th*Wp, Cout)
            # Column-shifted window of the (lane-dense, Cout-wide) output.
            acc_ref[...] += y.reshape(th, Wp, Cout)[:, kw:kw + W, :]

    o_ref[0] = acc_ref[...].astype(o_ref.dtype)


def _round_up(v, m):
    return (v + m - 1) // m * m


def _pick_tile_h(H, target=64):
    # Largest divisor of H that is <= target: keeps the per-step VMEM slab
    # bounded (v7x: 64 MiB physical / 32 MiB scoped) while giving the BlockSpec
    # pipeline several steps per image.
    for cand in range(min(H, target), 0, -1):
        if H % cand == 0:
            return cand
    return H


def bisenet_output(x_nchw, w3_oihw, bn_gamma, bn_beta, bn_mean, bn_var,
                   w1_oihw, eps=1e-5, tile_h=None):
    N, Cin, H, W = x_nchw.shape
    Cmid = w3_oihw.shape[0]
    ncls = w1_oihw.shape[0]
    Cout = _round_up(ncls, 128)          # lane-dense class dim (pad, slice later)
    if tile_h is None:
        tile_h = _pick_tile_h(H)
    assert H % tile_h == 0, (H, tile_h)
    T = H // tile_h
    dtype = x_nchw.dtype
    f32 = jnp.float32

    # ---- glue: SE pre-pass + algebraic folding of SE / BN / 1x1 into the 3x3 ----
    se = jax.nn.sigmoid(jnp.mean(x_nchw.astype(f32), axis=(2, 3)))            # (N, Cin)
    bn_scale = bn_gamma.astype(f32) / jnp.sqrt(bn_var.astype(f32) + eps)      # (Cmid,)
    bn_bias = bn_beta.astype(f32) - bn_mean.astype(f32) * bn_scale            # (Cmid,)
    w3_hwio = jnp.transpose(w3_oihw.astype(f32), (2, 3, 1, 0))                # (3,3,Cin,Cmid)
    w1 = jnp.transpose(w1_oihw.reshape(ncls, Cmid).astype(f32), (1, 0))       # (Cmid, ncls)
    w_fold = jnp.einsum('hwim,mo->hwio', w3_hwio, bn_scale[:, None] * w1)     # (3,3,Cin,ncls)
    w_eff = se[:, None, None, :, None] * w_fold[None]                         # (N,3,3,Cin,ncls)
    w_eff = jnp.pad(w_eff, ((0, 0),) * 4 + ((0, Cout - ncls),))
    w_eff = w_eff.reshape(N, 9, Cin, Cout).astype(dtype)
    b_eff = jnp.pad(bn_bias @ w1, (0, Cout - ncls)).reshape(1, Cout).astype(f32)

    # ---- glue: NHWC, zero-pad (8-aligned width), halo-overlapped row tiles ----
    Wp = _round_up(W + 2, 8)             # sublane-aligned padded width
    x_nhwc = jnp.transpose(x_nchw, (0, 2, 3, 1))
    xp = jnp.pad(x_nhwc, ((0, 0), (1, 1), (1, 1 + Wp - (W + 2)), (0, 0)))
    tiles = jnp.stack(
        [xp[:, t * tile_h: t * tile_h + tile_h + 2] for t in range(T)], axis=1
    ).reshape(N * T, tile_h + 2, Wp, Cin)

    out_tiles = pl.pallas_call(
        bisenet_output_kernel,
        out_shape=jax.ShapeDtypeStruct((N * T, tile_h, W, Cout), dtype),
        grid_spec=pltpu.PrefetchScalarGridSpec(
            num_scalar_prefetch=0,
            grid=(N, T),
            in_specs=[
                pl.BlockSpec((1, tile_h + 2, Wp, Cin),
                             lambda n, t: (n * T + t, 0, 0, 0)),
                pl.BlockSpec((1, 9, Cin, Cout), lambda n, t: (n, 0, 0, 0)),
                pl.BlockSpec((1, Cout), lambda n, t: (0, 0)),
            ],
            out_specs=pl.BlockSpec((1, tile_h, W, Cout),
                                   lambda n, t: (n * T + t, 0, 0, 0)),
            scratch_shapes=[pltpu.VMEM((tile_h, W, Cout), jnp.float32)],
        ),
        compiler_params=pltpu.CompilerParams(
            dimension_semantics=("parallel", "parallel"),
            vmem_limit_bytes=32 * 1024 * 1024,   # raises v5e's 16 MiB default,
                                                 # stays within v7x's budget
        ),
    )(tiles, w_eff, b_eff)

    out = out_tiles.reshape(N, H, W, Cout)[..., :ncls]
    return jnp.transpose(out, (0, 3, 1, 2))      # back to NCHW


def _reference(x, w3, bn_gamma, bn_beta, bn_mean, bn_var, w1, eps=1e-5):
    # Pure-JAX NCHW reference for correctness checking.
    se = jax.nn.sigmoid(jnp.mean(x, axis=(2, 3), keepdims=True))
    xs = x * se
    y = lax.conv_general_dilated(xs, w3, window_strides=(1, 1),
                                 padding=((1, 1), (1, 1)),
                                 dimension_numbers=("NCHW", "OIHW", "NCHW"))
    scale = bn_gamma / jnp.sqrt(bn_var + eps)
    bias = bn_beta - bn_mean * scale
    y = y * scale[None, :, None, None] + bias[None, :, None, None]
    out = lax.conv_general_dilated(y, w1, window_strides=(1, 1),
                                   padding=((0, 0), (0, 0)),
                                   dimension_numbers=("NCHW", "OIHW", "NCHW"))
    return out


if __name__ == "__main__":
    # Small deterministic setup: batch=2, in_chan=4, mid_chan=8, n_classes=4, 16x16.
    N, in_chan, mid_chan, n_classes, H, W = 2, 4, 8, 4, 16, 16
    key = jax.random.PRNGKey(0)
    kx, k3, k1 = jax.random.split(key, 3)

    x = jax.random.normal(kx, (N, in_chan, H, W), dtype=jnp.float32)

    # kaiming_normal_(a=1): std = sqrt(2 / ((1 + a^2) * fan_in)) = sqrt(1 / fan_in)
    fan_in3 = in_chan * 3 * 3
    w3 = jax.random.normal(k3, (mid_chan, in_chan, 3, 3), jnp.float32) * (1.0 / fan_in3) ** 0.5
    fan_in1 = mid_chan * 1 * 1
    w1 = jax.random.normal(k1, (n_classes, mid_chan, 1, 1), jnp.float32) * (1.0 / fan_in1) ** 0.5

    # BatchNorm2d default init / running stats (inference-mode BN).
    bn_gamma = jnp.ones((mid_chan,), jnp.float32)
    bn_beta = jnp.zeros((mid_chan,), jnp.float32)
    bn_mean = jnp.zeros((mid_chan,), jnp.float32)
    bn_var = jnp.ones((mid_chan,), jnp.float32)

    # tile_h=8 -> 2 row tiles per image, exercising the (N, T) spatially tiled grid.
    out = bisenet_output(x, w3, bn_gamma, bn_beta, bn_mean, bn_var, w1, tile_h=8)
    out = jax.block_until_ready(out)

    ref = _reference(x, w3, bn_gamma, bn_beta, bn_mean, bn_var, w1)
    assert out.shape == (N, n_classes, H, W), out.shape
    assert jnp.allclose(out, ref, atol=1e-4, rtol=1e-4), float(jnp.max(jnp.abs(out - ref)))

    print("KERNEL_OK")
</pallas_src>

<mosaic_0001>
module attributes {stable_mosaic.version = 11 : i64} {
  func.func @bisenet_output_kernel(%arg0: i32, %arg1: i32, %arg2: memref<1x10x24x4xf32, #tpu.memory_space<vmem>>, %arg3: memref<1x9x4x128xf32, #tpu.memory_space<vmem>>, %arg4: memref<1x128xf32, #tpu.memory_space<vmem>>, %arg5: memref<1x8x16x128xf32, #tpu.memory_space<vmem>>, %arg6: memref<8x16x128xf32, #tpu.memory_space<vmem>>) attributes {dimension_semantics = [#tpu.dimension_semantics<parallel>, #tpu.dimension_semantics<parallel>], iteration_bounds = array<i64: 2, 2>, scalar_prefetch = 0 : i64, scratch_operands = 1 : i64, tpu.core_type = #tpu.core_type<tc>, window_params = [{transform_indices = @transform_0, window_bounds = array<i64: 1, 10, 24, 4>}, {transform_indices = @transform_1, window_bounds = array<i64: 1, 9, 4, 128>}, {pipeline_mode = #tpu.pipeline_mode<synchronous>, transform_indices = @transform_2, window_bounds = array<i64: 1, 128>}, {transform_indices = @transform_3, window_bounds = array<i64: 1, 8, 16, 128>}]} {
    %c0 = arith.constant 0 : index
    %c0_0 = arith.constant 0 : index
    %c0_1 = arith.constant 0 : index
    %c0_2 = arith.constant 0 : index
    %0 = vector.load %arg2[%c0, %c0_0, %c0_1, %c0_2] : memref<1x10x24x4xf32, #tpu.memory_space<vmem>>, vector<1x10x24x4xf32>
    %1 = vector.shape_cast %0 : vector<1x10x24x4xf32> to vector<10x24x4xf32>
    %c0_3 = arith.constant 0 : index
    %c0_4 = arith.constant 0 : index
    %2 = vector.load %arg4[%c0_3, %c0_4] : memref<1x128xf32, #tpu.memory_space<vmem>>, vector<1x128xf32>
    %3 = vector.shape_cast %2 : vector<1x128xf32> to vector<1x1x128xf32>
    %4 = vector.shape_cast %3 : vector<1x1x128xf32> to vector<1x1x128xf32>
    %5 = vector.broadcast %4 : vector<1x1x128xf32> to vector<8x16x128xf32>
    %c0_5 = arith.constant 0 : index
    %c0_6 = arith.constant 0 : index
    %c0_7 = arith.constant 0 : index
    %6 = vector.load %arg6[%c0_5, %c0_6, %c0_7] : memref<8x16x128xf32, #tpu.memory_space<vmem>>, vector<8x16x128xf32>
    tpu.vector_store %arg6[%c0_5, %c0_6, %c0_7], %5 {strides = array<i32>} : memref<8x16x128xf32, #tpu.memory_space<vmem>>, vector<8x16x128xf32>,
    %7 = vector.extract_strided_slice %1 {offsets = [0, 0, 0], sizes = [8, 24, 4], strides = [1, 1, 1]} : vector<10x24x4xf32> to vector<8x24x4xf32>
    %8 = vector.shape_cast %7 : vector<8x24x4xf32> to vector<192x4xf32>
    %c0_8 = arith.constant 0 : index
    %c0_9 = arith.constant 0 : index
    %c0_10 = arith.constant 0 : index
    %c0_11 = arith.constant 0 : index
    %9 = vector.load %arg3[%c0_8, %c0_9, %c0_10, %c0_11] : memref<1x9x4x128xf32, #tpu.memory_space<vmem>>, vector<1x1x4x128xf32>
    %10 = vector.shape_cast %9 : vector<1x1x4x128xf32> to vector<4x128xf32>
    %cst = arith.constant dense<0.000000e+00> : vector<192x128xf32>
    %11 = tpu.matmul %8, %10, %cst {dimension_numbers = #tpu.dot_dimension_numbers<[1], [0], [0], [1], [0, 0, 1, 1], [], []>} : vector<192x4xf32>, vector<4x128xf32>, vector<192x128xf32> -> vector<192x128xf32>
    %c0_12 = arith.constant 0 : index
    %c0_13 = arith.constant 0 : index
    %c0_14 = arith.constant 0 : index
    %12 = vector.load %arg6[%c0_12, %c0_13, %c0_14] : memref<8x16x128xf32, #tpu.memory_space<vmem>>, vector<8x16x128xf32>
    %13 = vector.shape_cast %11 : vector<192x128xf32> to vector<8x24x128xf32>
    %14 = vector.extract_strided_slice %13 {offsets = [0, 0, 0], sizes = [8, 16, 128], strides = [1, 1, 1]} : vector<8x24x128xf32> to vector<8x16x128xf32>
    %15 = arith.addf %12, %14 : vector<8x16x128xf32>
    %c0_15 = arith.constant 0 : index
    %c0_16 = arith.constant 0 : index
    %c0_17 = arith.constant 0 : index
    %16 = vector.load %arg6[%c0_15, %c0_16, %c0_17] : memref<8x16x128xf32, #tpu.memory_space<vmem>>, vector<8x16x128xf32>
    tpu.vector_store %arg6[%c0_15, %c0_16, %c0_17], %15 {strides = array<i32>} : memref<8x16x128xf32, #tpu.memory_space<vmem>>, vector<8x16x128xf32>,
    %c0_18 = arith.constant 0 : index
    %c1 = arith.constant 1 : index
    %c0_19 = arith.constant 0 : index
    %c0_20 = arith.constant 0 : index
    %17 = vector.load %arg3[%c0_18, %c1, %c0_19, %c0_20] : memref<1x9x4x128xf32, #tpu.memory_space<vmem>>, vector<1x1x4x128xf32>
    %18 = vector.shape_cast %17 : vector<1x1x4x128xf32> to vector<4x128xf32>
    %cst_21 = arith.constant dense<0.000000e+00> : vector<192x128xf32>
    %19 = tpu.matmul %8, %18, %cst_21 {dimension_numbers = #tpu.dot_dimension_numbers<[1], [0], [0], [1], [0, 0, 1, 1], [], []>} : vector<192x4xf32>, vector<4x128xf32>, vector<192x128xf32> -> vector<192x128xf32>
    %c0_22 = arith.constant 0 : index
    %c0_23 = arith.constant 0 : index
    %c0_24 = arith.constant 0 : index
    %20 = vector.load %arg6[%c0_22, %c0_23, %c0_24] : memref<8x16x128xf32, #tpu.memory_space<vmem>>, vector<8x16x128xf32>
    %21 = vector.shape_cast %19 : vector<192x128xf32> to vector<8x24x128xf32>
    %22 = vector.extract_strided_slice %21 {offsets = [0, 1, 0], sizes = [8, 16, 128], strides = [1, 1, 1]} : vector<8x24x128xf32> to vector<8x16x128xf32>
    %23 = arith.addf %20, %22 : vector<8x16x128xf32>
    %c0_25 = arith.constant 0 : index
    %c0_26 = arith.constant 0 : index
    %c0_27 = arith.constant 0 : index
    %24 = vector.load %arg6[%c0_25, %c0_26, %c0_27] : memref<8x16x128xf32, #tpu.memory_space<vmem>>, vector<8x16x128xf32>
    tpu.vector_store %arg6[%c0_25, %c0_26, %c0_27], %23 {strides = array<i32>} : memref<8x16x128xf32, #tpu.memory_space<vmem>>, vector<8x16x128xf32>,
    %c0_28 = arith.constant 0 : index
    %c2 = arith.constant 2 : index
    %c0_29 = arith.constant 0 : index
    %c0_30 = arith.constant 0 : index
    %25 = vector.load %arg3[%c0_28, %c2, %c0_29, %c0_30] : memref<1x9x4x128xf32, #tpu.memory_space<vmem>>, vector<1x1x4x128xf32>
    %26 = vector.shape_cast %25 : vector<1x1x4x128xf32> to vector<4x128xf32>
    %cst_31 = arith.constant dense<0.000000e+00> : vector<192x128xf32>
    %27 = tpu.matmul %8, %26, %cst_31 {dimension_numbers = #tpu.dot_dimension_numbers<[1], [0], [0], [1], [0, 0, 1, 1], [], []>} : vector<192x4xf32>, vector<4x128xf32>, vector<192x128xf32> -> vector<192x128xf32>
    %c0_32 = arith.constant 0 : index
    %c0_33 = arith.constant 0 : index
    %c0_34 = arith.constant 0 : index
    %28 = vector.load %arg6[%c0_32, %c0_33, %c0_34] : memref<8x16x128xf32, #tpu.memory_space<vmem>>, vector<8x16x128xf32>
    %29 = vector.shape_cast %27 : vector<192x128xf32> to vector<8x24x128xf32>
    %30 = vector.extract_strided_slice %29 {offsets = [0, 2, 0], sizes = [8, 16, 128], strides = [1, 1, 1]} : vector<8x24x128xf32> to vector<8x16x128xf32>
    %31 = arith.addf %28, %30 : vector<8x16x128xf32>
    %c0_35 = arith.constant 0 : index
    %c0_36 = arith.constant 0 : index
    %c0_37 = arith.constant 0 : index
    %32 = vector.load %arg6[%c0_35, %c0_36, %c0_37] : memref<8x16x128xf32, #tpu.memory_space<vmem>>, vector<8x16x128xf32>
    tpu.vector_store %arg6[%c0_35, %c0_36, %c0_37], %31 {strides = array<i32>} : memref<8x16x128xf32, #tpu.memory_space<vmem>>, vector<8x16x128xf32>,
    %33 = vector.extract_strided_slice %1 {offsets = [1, 0, 0], sizes = [8, 24, 4], strides = [1, 1, 1]} : vector<10x24x4xf32> to vector<8x24x4xf32>
    %34 = vector.shape_cast %33 : vector<8x24x4xf32> to vector<192x4xf32>
    %c0_38 = arith.constant 0 : index
    %c3 = arith.constant 3 : index
    %c0_39 = arith.constant 0 : index
    %c0_40 = arith.constant 0 : index
    %35 = vector.load %arg3[%c0_38, %c3, %c0_39, %c0_40] : memref<1x9x4x128xf32, #tpu.memory_space<vmem>>, vector<1x1x4x128xf32>
    %36 = vector.shape_cast %35 : vector<1x1x4x128xf32> to vector<4x128xf32>
    %cst_41 = arith.constant dense<0.000000e+00> : vector<192x128xf32>
    %37 = tpu.matmul %34, %36, %cst_41 {dimension_numbers = #tpu.dot_dimension_numbers<[1], [0], [0], [1], [0, 0, 1, 1], [], []>} : vector<192x4xf32>, vector<4x128xf32>, vector<192x128xf32> -> vector<192x128xf32>
    %c0_42 = arith.constant 0 : index
    %c0_43 = arith.constant 0 : index
    %c0_44 = arith.constant 0 : index
    %38 = vector.load %arg6[%c0_42, %c0_43, %c0_44] : memref<8x16x128xf32, #tpu.memory_space<vmem>>, vector<8x16x128xf32>
    %39 = vector.shape_cast %37 : vector<192x128xf32> to vector<8x24x128xf32>
    %40 = vector.extract_strided_slice %39 {offsets = [0, 0, 0], sizes = [8, 16, 128], strides = [1, 1, 1]} : vector<8x24x128xf32> to vector<8x16x128xf32>
    %41 = arith.addf %38, %40 : vector<8x16x128xf32>
    %c0_45 = arith.constant 0 : index
    %c0_46 = arith.constant 0 : index
    %c0_47 = arith.constant 0 : index
    %42 = vector.load %arg6[%c0_45, %c0_46, %c0_47] : memref<8x16x128xf32, #tpu.memory_space<vmem>>, vector<8x16x128xf32>
    tpu.vector_store %arg6[%c0_45, %c0_46, %c0_47], %41 {strides = array<i32>} : memref<8x16x128xf32, #tpu.memory_space<vmem>>, vector<8x16x128xf32>,
    %c0_48 = arith.constant 0 : index
    %c4 = arith.constant 4 : index
    %c0_49 = arith.constant 0 : index
    %c0_50 = arith.constant 0 : index
    %43 = vector.load %arg3[%c0_48, %c4, %c0_49, %c0_50] : memref<1x9x4x128xf32, #tpu.memory_space<vmem>>, vector<1x1x4x128xf32>
    %44 = vector.shape_cast %43 : vector<1x1x4x128xf32> to vector<4x128xf32>
    %cst_51 = arith.constant dense<0.000000e+00> : vector<192x128xf32>
    %45 = tpu.matmul %34, %44, %cst_51 {dimension_numbers = #tpu.dot_dimension_numbers<[1], [0], [0], [1], [0, 0, 1, 1], [], []>} : vector<192x4xf32>, vector<4x128xf32>, vector<192x128xf32> -> vector<192x128xf32>
    %c0_52 = arith.constant 0 : index
    %c0_53 = arith.constant 0 : index
    %c0_54 = arith.constant 0 : index
    %46 = vector.load %arg6[%c0_52, %c0_53, %c0_54] : memref<8x16x128xf32, #tpu.memory_space<vmem>>, vector<8x16x128xf32>
    %47 = vector.shape_cast %45 : vector<192x128xf32> to vector<8x24x128xf32>
    %48 = vector.extract_strided_slice %47 {offsets = [0, 1, 0], sizes = [8, 16, 128], strides = [1, 1, 1]} : vector<8x24x128xf32> to vector<8x16x128xf32>
    %49 = arith.addf %46, %48 : vector<8x16x128xf32>
    %c0_55 = arith.constant 0 : index
    %c0_56 = arith.constant 0 : index
    %c0_57 = arith.constant 0 : index
    %50 = vector.load %arg6[%c0_55, %c0_56, %c0_57] : memref<8x16x128xf32, #tpu.memory_space<vmem>>, vector<8x16x128xf32>
    tpu.vector_store %arg6[%c0_55, %c0_56, %c0_57], %49 {strides = array<i32>} : memref<8x16x128xf32, #tpu.memory_space<vmem>>, vector<8x16x128xf32>,
    %c0_58 = arith.constant 0 : index
    %c5 = arith.constant 5 : index
    %c0_59 = arith.constant 0 : index
    %c0_60 = arith.constant 0 : index
    %51 = vector.load %arg3[%c0_58, %c5, %c0_59, %c0_60] : memref<1x9x4x128xf32, #tpu.memory_space<vmem>>, vector<1x1x4x128xf32>
    %52 = vector.shape_cast %51 : vector<1x1x4x128xf32> to vector<4x128xf32>
    %cst_61 = arith.constant dense<0.000000e+00> : vector<192x128xf32>
    %53 = tpu.matmul %34, %52, %cst_61 {dimension_numbers = #tpu.dot_dimension_numbers<[1], [0], [0], [1], [0, 0, 1, 1], [], []>} : vector<192x4xf32>, vector<4x128xf32>, vector<192x128xf32> -> vector<192x128xf32>
    %c0_62 = arith.constant 0 : index
    %c0_63 = arith.constant 0 : index
    %c0_64 = arith.constant 0 : index
    %54 = vector.load %arg6[%c0_62, %c0_63, %c0_64] : memref<8x16x128xf32, #tpu.memory_space<vmem>>, vector<8x16x128xf32>
    %55 = vector.shape_cast %53 : vector<192x128xf32> to vector<8x24x128xf32>
    %56 = vector.extract_strided_slice %55 {offsets = [0, 2, 0], sizes = [8, 16, 128], strides = [1, 1, 1]} : vector<8x24x128xf32> to vector<8x16x128xf32>
    %57 = arith.addf %54, %56 : vector<8x16x128xf32>
    %c0_65 = arith.constant 0 : index
    %c0_66 = arith.constant 0 : index
    %c0_67 = arith.constant 0 : index
    %58 = vector.load %arg6[%c0_65, %c0_66, %c0_67] : memref<8x16x128xf32, #tpu.memory_space<vmem>>, vector<8x16x128xf32>
    tpu.vector_store %arg6[%c0_65, %c0_66, %c0_67], %57 {strides = array<i32>} : memref<8x16x128xf32, #tpu.memory_space<vmem>>, vector<8x16x128xf32>,
    %59 = vector.extract_strided_slice %1 {offsets = [2, 0, 0], sizes = [8, 24, 4], strides = [1, 1, 1]} : vector<10x24x4xf32> to vector<8x24x4xf32>
    %60 = vector.shape_cast %59 : vector<8x24x4xf32> to vector<192x4xf32>
    %c0_68 = arith.constant 0 : index
    %c6 = arith.constant 6 : index
    %c0_69 = arith.constant 0 : index
    %c0_70 = arith.constant 0 : index
    %61 = vector.load %arg3[%c0_68, %c6, %c0_69, %c0_70] : memref<1x9x4x128xf32, #tpu.memory_space<vmem>>, vector<1x1x4x128xf32>
    %62 = vector.shape_cast %61 : vector<1x1x4x128xf32> to vector<4x128xf32>
    %cst_71 = arith.constant dense<0.000000e+00> : vector<192x128xf32>
    %63 = tpu.matmul %60, %62, %cst_71 {dimension_numbers = #tpu.dot_dimension_numbers<[1], [0], [0], [1], [0, 0, 1, 1], [], []>} : vector<192x4xf32>, vector<4x128xf32>, vector<192x128xf32> -> vector<192x128xf32>
    %c0_72 = arith.constant 0 : index
    %c0_73 = arith.constant 0 : index
    %c0_74 = arith.constant 0 : index
    %64 = vector.load %arg6[%c0_72, %c0_73, %c0_74] : memref<8x16x128xf32, #tpu.memory_space<vmem>>, vector<8x16x128xf32>
    %65 = vector.shape_cast %63 : vector<192x128xf32> to vector<8x24x128xf32>
    %66 = vector.extract_strided_slice %65 {offsets = [0, 0, 0], sizes = [8, 16, 128], strides = [1, 1, 1]} : vector<8x24x128xf32> to vector<8x16x128xf32>
    %67 = arith.addf %64, %66 : vector<8x16x128xf32>
    %c0_75 = arith.constant 0 : index
    %c0_76 = arith.constant 0 : index
    %c0_77 = arith.constant 0 : index
    %68 = vector.load %arg6[%c0_75, %c0_76, %c0_77] : memref<8x16x128xf32, #tpu.memory_space<vmem>>, vector<8x16x128xf32>
    tpu.vector_store %arg6[%c0_75, %c0_76, %c0_77], %67 {strides = array<i32>} : memref<8x16x128xf32, #tpu.memory_space<vmem>>, vector<8x16x128xf32>,
    %c0_78 = arith.constant 0 : index
    %c7 = arith.constant 7 : index
    %c0_79 = arith.constant 0 : index
    %c0_80 = arith.constant 0 : index
    %69 = vector.load %arg3[%c0_78, %c7, %c0_79, %c0_80] : memref<1x9x4x128xf32, #tpu.memory_space<vmem>>, vector<1x1x4x128xf32>
    %70 = vector.shape_cast %69 : vector<1x1x4x128xf32> to vector<4x128xf32>
    %cst_81 = arith.constant dense<0.000000e+00> : vector<192x128xf32>
    %71 = tpu.matmul %60, %70, %cst_81 {dimension_numbers = #tpu.dot_dimension_numbers<[1], [0], [0], [1], [0, 0, 1, 1], [], []>} : vector<192x4xf32>, vector<4x128xf32>, vector<192x128xf32> -> vector<192x128xf32>
    %c0_82 = arith.constant 0 : index
    %c0_83 = arith.constant 0 : index
    %c0_84 = arith.constant 0 : index
    %72 = vector.load %arg6[%c0_82, %c0_83, %c0_84] : memref<8x16x128xf32, #tpu.memory_space<vmem>>, vector<8x16x128xf32>
    %73 = vector.shape_cast %71 : vector<192x128xf32> to vector<8x24x128xf32>
    %74 = vector.extract_strided_slice %73 {offsets = [0, 1, 0], sizes = [8, 16, 128], strides = [1, 1, 1]} : vector<8x24x128xf32> to vector<8x16x128xf32>
    %75 = arith.addf %72, %74 : vector<8x16x128xf32>
    %c0_85 = arith.constant 0 : index
    %c0_86 = arith.constant 0 : index
    %c0_87 = arith.constant 0 : index
    %76 = vector.load %arg6[%c0_85, %c0_86, %c0_87] : memref<8x16x128xf32, #tpu.memory_space<vmem>>, vector<8x16x128xf32>
    tpu.vector_store %arg6[%c0_85, %c0_86, %c0_87], %75 {strides = array<i32>} : memref<8x16x128xf32, #tpu.memory_space<vmem>>, vector<8x16x128xf32>,
    %c0_88 = arith.constant 0 : index
    %c8 = arith.constant 8 : index
    %c0_89 = arith.constant 0 : index
    %c0_90 = arith.constant 0 : index
    %77 = vector.load %arg3[%c0_88, %c8, %c0_89, %c0_90] : memref<1x9x4x128xf32, #tpu.memory_space<vmem>>, vector<1x1x4x128xf32>
    %78 = vector.shape_cast %77 : vector<1x1x4x128xf32> to vector<4x128xf32>
    %cst_91 = arith.constant dense<0.000000e+00> : vector<192x128xf32>
    %79 = tpu.matmul %60, %78, %cst_91 {dimension_numbers = #tpu.dot_dimension_numbers<[1], [0], [0], [1], [0, 0, 1, 1], [], []>} : vector<192x4xf32>, vector<4x128xf32>, vector<192x128xf32> -> vector<192x128xf32>
    %c0_92 = arith.constant 0 : index
    %c0_93 = arith.constant 0 : index
    %c0_94 = arith.constant 0 : index
    %80 = vector.load %arg6[%c0_92, %c0_93, %c0_94] : memref<8x16x128xf32, #tpu.memory_space<vmem>>, vector<8x16x128xf32>
    %81 = vector.shape_cast %79 : vector<192x128xf32> to vector<8x24x128xf32>
    %82 = vector.extract_strided_slice %81 {offsets = [0, 2, 0], sizes = [8, 16, 128], strides = [1, 1, 1]} : vector<8x24x128xf32> to vector<8x16x128xf32>
    %83 = arith.addf %80, %82 : vector<8x16x128xf32>
    %c0_95 = arith.constant 0 : index
    %c0_96 = arith.constant 0 : index
    %c0_97 = arith.constant 0 : index
    %84 = vector.load %arg6[%c0_95, %c0_96, %c0_97] : memref<8x16x128xf32, #tpu.memory_space<vmem>>, vector<8x16x128xf32>
    tpu.vector_store %arg6[%c0_95, %c0_96, %c0_97], %83 {strides = array<i32>} : memref<8x16x128xf32, #tpu.memory_space<vmem>>, vector<8x16x128xf32>,
    %c0_98 = arith.constant 0 : index
    %c0_99 = arith.constant 0 : index
    %c0_100 = arith.constant 0 : index
    %85 = vector.load %arg6[%c0_98, %c0_99, %c0_100] : memref<8x16x128xf32, #tpu.memory_space<vmem>>, vector<8x16x128xf32>
    %c0_101 = arith.constant 0 : index
    %c0_102 = arith.constant 0 : index
    %c0_103 = arith.constant 0 : index
    %c0_104 = arith.constant 0 : index
    %86 = vector.load %arg5[%c0_101, %c0_102, %c0_103, %c0_104] : memref<1x8x16x128xf32, #tpu.memory_space<vmem>>, vector<1x8x16x128xf32>
    %87 = vector.shape_cast %86 : vector<1x8x16x128xf32> to vector<8x16x128xf32>
    %88 = vector.shape_cast %85 : vector<8x16x128xf32> to vector<1x8x16x128xf32>
    tpu.vector_store %arg5[%c0_101, %c0_102, %c0_103, %c0_104], %88 {strides = array<i32>} : memref<1x8x16x128xf32, #tpu.memory_space<vmem>>, vector<1x8x16x128xf32>,
    return
  }
  func.func @transform_0(%arg0: i32, %arg1: i32) -> (i32, i32, i32, i32) {
    %c2_i32 = arith.constant 2 : i32
    %0 = arith.muli %arg0, %c2_i32 : i32
    %1 = arith.addi %0, %arg1 : i32
    %c0_i32 = arith.constant 0 : i32
    %c0_i32_0 = arith.constant 0 : i32
    %c0_i32_1 = arith.constant 0 : i32
    %c0_i32_2 = arith.constant 0 : i32
    return %1, %c0_i32, %c0_i32_0, %c0_i32_1 : i32, i32, i32, i32
  }
  func.func @transform_1(%arg0: i32, %arg1: i32) -> (i32, i32, i32, i32) {
    %c0_i32 = arith.constant 0 : i32
    %c0_i32_0 = arith.constant 0 : i32
    %c0_i32_1 = arith.constant 0 : i32
    %c0_i32_2 = arith.constant 0 : i32
    return %arg0, %c0_i32, %c0_i32_0, %c0_i32_1 : i32, i32, i32, i32
  }
  func.func @transform_2(%arg0: i32, %arg1: i32) -> (i32, i32) {
    %c0_i32 = arith.constant 0 : i32
    %c0_i32_0 = arith.constant 0 : i32
    %c0_i32_1 = arith.constant 0 : i32
    return %c0_i32, %c0_i32_0 : i32, i32
  }
  func.func @transform_3(%arg0: i32, %arg1: i32) -> (i32, i32, i32, i32) {
    %c2_i32 = arith.constant 2 : i32
    %0 = arith.muli %arg0, %c2_i32 : i32
    %1 = arith.addi %0, %arg1 : i32
    %c0_i32 = arith.constant 0 : i32
    %c0_i32_0 = arith.constant 0 : i32
    %c0_i32_1 = arith.constant 0 : i32
    %c0_i32_2 = arith.constant 0 : i32
    return %1, %c0_i32, %c0_i32_0, %c0_i32_1 : i32, i32, i32, i32
  }
}

</mosaic_0001>

<llo_original>
// kernel: tpu_custom_call.1
$region0: #{tpu_custom_call.1}
  #allocation0 [shape = 'u32[]', space=smem, size = 0x4, offset = 0x4, fixed_abs, tag = 'smem constant byte address 0x4 - core index']
  #allocation1 [shape = 'u32[144,128]{1,0:T(1,128)}', space=vmem, size = 0x12000, scoped, tag = 'internal scratch']
  #allocation2 [shape = 'f32[8,16,128]{2,1,0:T(8,128)}', space=vmem, size = 0x10000, scoped, tag = 'scratch operand']
  %s0 = inlined_call_operand.vmem [shape: f32[4,10,24,4], index: 0, kind: input, shape index: {}]
  %s1 = inlined_call_operand.vmem [shape: f32[2,9,4,128], index: 1, kind: input, shape index: {}]
  %s2 = inlined_call_operand.vmem [shape: f32[1,128], index: 2, kind: input, shape index: {}]
  %s3 = inlined_call_operand.hbm [shape: f32[4,8,16,128], index: 3, kind: output, shape index: {}]
  %s4 = sld [smem:[#allocation0]]
  $region45: #{tpu_custom_call.1} parent=0
    _
  %s6 = ssub.s32 1, %s4
  %s7 = scalar_select 0, %s6, %s4
  $region1: #{tpu_custom_call.1} parent=0
    #allocation3 [shape = 'u8[131072]{0}', space=vmem, size = 0x20000, scoped, tag = 'output window, operand 0']
    #allocation4 [shape = 's32[2]{0}', space=sflag, size = 0x8, scoped, tag = 'scoped memory for tpu_custom_call.1']
    %8 = vsyncpa [#allocation4], 0
    %s9 = scalar_lea.sflag [#allocation4], 1
    %10 = vsyncpa %s9, 0
    loop: start=0, step=1, limit=6
    $region2: #{tpu_custom_call.1} parent=1 // loop_pre_header
      _
    $region3: #{tpu_custom_call.1} parent=1 // loop_header
      %s12 = sphi 0, %s16
      %p13 = scmp.ge.s32.totalorder %s12, 6
      %s19 = sphi 0, %s31
      %s20 = sphi 0, %s27
      %s21 = sphi 0, %s19
      %s22 = sphi 0, %s20
      %s23 = sphi 0, %s21
      %s24 = sphi 0, %s22
      %s38 = sphi 0, %s40
      %s41 = sphi 0, %s38
      %s42 = sphi 0, %s41
      %s58 = sphi 0, %s42
      %s64 = sphi 0, %s66
      %s67 = sphi 0, %s64
      %s68 = sphi 0, %s67
      %s84 = sphi 0, %s68
      %s88 = sphi 0, %s88
      %s90 = sphi 0, %s88
      %s91 = sphi 0, %s90
      %s105 = sphi 0, %s91
      %s115 = sphi 0, %s117
      %s118 = sphi 0, %s115
      %s119 = sphi 0, %s118
      %s135 = sphi 0, %s119
    $region4: #{tpu_custom_call.1} parent=1 // loop_header_branch
      %15 = sbr.rel (%p13) target = $region8
    $region5: #{tpu_custom_call.1} parent=1 // loop_body
      %s17 = ssub.s32 %s12, 1
      %s18 = ssub.s32 %s12, 2
      %s25 = sadd.s32 1, %s20
      %p26 = scmp.ge.s32.totalorder %s25, 2
      %s27 = scalar_select %p26, 0, %s25
      %s28 = sadd.s32 1, %s19
      %s29 = scalar_select %p26, %s28, %s19
      %p30 = scmp.ge.s32.totalorder %s29, 2
      %s31 = scalar_select %p30, 0, %s29
      %s32 = smul.u32 %s19, 2
      %s33 = sadd.s32 %s32, %s20
      %s34 = smul.u32 %s31, 2
      %s35 = sadd.s32 %s34, %s27
      %s36 = ssub.s32 %s33, %s35
      %p37 = scmp.eq.s32.totalorder %s36, 0
      %s39 = sadd.s32 %s38, 1
      %s40 = scalar_select %p37, %s38, %s39
      %p43 = pneg %p37
      %p44 = scmp.eq.s32.totalorder %s12, 3
      %p45 = por %p43, %p44
      %p46 = scmp.ne.s32.totalorder %s38, %s41
      %p47 = scmp.eq.s32.totalorder %s12, 0
      %p48 = por %p46, %p47
      %p49 = scmp.ne.s32.totalorder %s38, %s41
      %p50 = scmp.eq.s32.totalorder %s17, 3
      %p51 = por %p49, %p50
      %p52 = scmp.ne.s32.totalorder %s41, %s42
      %p53 = scmp.eq.s32.totalorder %s17, 0
      %p54 = por %p52, %p53
      %p55 = scmp.ne.s32.totalorder %s41, %s42
      %p56 = scmp.eq.s32.totalorder %s18, 3
      %p57 = por %p55, %p56
      %p59 = scmp.ne.s32.totalorder %s42, %s58
      %p60 = scmp.eq.s32.totalorder %s18, 0
      %p61 = por %p59, %p60
      %s62 = ssub.s32 %s19, %s31
      %p63 = scmp.eq.s32.totalorder %s62, 0
      %s65 = sadd.s32 %s64, 1
      %s66 = scalar_select %p63, %s64, %s65
      %p69 = pneg %p63
      %p70 = scmp.eq.s32.totalorder %s12, 3
      %p71 = por %p69, %p70
      %p72 = scmp.ne.s32.totalorder %s64, %s67
      %p73 = scmp.eq.s32.totalorder %s12, 0
      %p74 = por %p72, %p73
      %p75 = scmp.ne.s32.totalorder %s64, %s67
      %p76 = scmp.eq.s32.totalorder %s17, 3
      %p77 = por %p75, %p76
      %p78 = scmp.ne.s32.totalorder %s67, %s68
      %p79 = scmp.eq.s32.totalorder %s17, 0
      %p80 = por %p78, %p79
      %p81 = scmp.ne.s32.totalorder %s67, %s68
      %p82 = scmp.eq.s32.totalorder %s18, 3
      %p83 = por %p81, %p82
      %p85 = scmp.ne.s32.totalorder %s68, %s84
      %p86 = scmp.eq.s32.totalorder %s18, 0
      %p87 = por %p85, %p86
      %s89 = sadd.s32 %s88, 1
      %p92 = scmp.eq.s32.totalorder %s12, 3
      %p93 = scmp.ne.s32.totalorder %s88, %s90
      %p94 = scmp.eq.s32.totalorder %s12, 0
      %p95 = por %p93, %p94
      %p96 = scmp.ne.s32.totalorder %s88, %s90
      %p97 = scmp.eq.s32.totalorder %s17, 3
      %p98 = por %p96, %p97
      %p99 = scmp.ne.s32.totalorder %s90, %s91
      %p100 = scmp.eq.s32.totalorder %s17, 0
      %p101 = por %p99, %p100
      %p102 = scmp.ne.s32.totalorder %s90, %s91
      %p103 = scmp.eq.s32.totalorder %s18, 3
      %p104 = por %p102, %p103
      %p106 = scmp.ne.s32.totalorder %s91, %s105
      %p107 = scmp.eq.s32.totalorder %s18, 0
      %p108 = por %p106, %p107
      %s109 = smul.u32 %s19, 2
      %s110 = sadd.s32 %s109, %s20
      %s111 = smul.u32 %s31, 2
      %s112 = sadd.s32 %s111, %s27
      %s113 = ssub.s32 %s110, %s112
      %p114 = scmp.eq.s32.totalorder %s113, 0
      %s116 = sadd.s32 %s115, 1
      %s117 = scalar_select %p114, %s115, %s116
      %p120 = pneg %p114
      %p121 = scmp.eq.s32.totalorder %s12, 3
      %p122 = por %p120, %p121
      %p123 = scmp.ne.s32.totalorder %s115, %s118
      %p124 = scmp.eq.s32.totalorder %s12, 0
      %p125 = por %p123, %p124
      %p126 = scmp.ne.s32.totalorder %s115, %s118
      %p127 = scmp.eq.s32.totalorder %s17, 3
      %p128 = por %p126, %p127
      %p129 = scmp.ne.s32.totalorder %s118, %s119
      %p130 = scmp.eq.s32.totalorder %s17, 0
      %p131 = por %p129, %p130
      %p132 = scmp.ne.s32.totalorder %s118, %s119
      %p133 = scmp.eq.s32.totalorder %s18, 3
      %p134 = por %p132, %p133
      %p136 = scmp.ne.s32.totalorder %s119, %s135
      %p137 = scmp.eq.s32.totalorder %s18, 0
      %p138 = por %p136, %p137
      %p139 = scmp.le.s32.totalorder 1, %s12
      %p140 = scmp.lt.s32.totalorder %s12, 5
      %p141 = pnand %p139, %p140
      %p142 = pneg %p141
      // Predicated region
      $region9: #{tpu_custom_call.1} parent=5 // pred_check
        _
      $region10: #{tpu_custom_call.1} parent=5 // pred_check_branch
        %144 = sbr.rel (%p141) target = $region12
      $region11: #{tpu_custom_call.1} parent=5 // pred_region
        %s145 = ssub.s32 %s12, 1
        // Predicated region
        $region13: #{tpu_custom_call.1} parent=11 // pred_check
          %p146 = pneg %p101
        $region14: #{tpu_custom_call.1} parent=11 // pred_check_branch
          %148 = sbr.rel (%p146) target = $region16
        $region15: #{tpu_custom_call.1} parent=11 // pred_region
          _
        $region16: #{tpu_custom_call.1} parent=11 // pred_fallthru
          _
      $region12: #{tpu_custom_call.1} parent=5 // pred_fallthru
        _
      %p149 = scmp.lt.s32.totalorder %s12, 4
      // Predicated region
      $region17: #{tpu_custom_call.1} parent=5 // pred_check
        %p150 = pneg %p149
      $region18: #{tpu_custom_call.1} parent=5 // pred_check_branch
        %152 = sbr.rel (%p150) target = $region20
      $region19: #{tpu_custom_call.1} parent=5 // pred_region
        // Predicated region
        $region21: #{tpu_custom_call.1} parent=19 // pred_check
          %p153 = pneg %p48
        $region22: #{tpu_custom_call.1} parent=19 // pred_check_branch
          %155 = sbr.rel (%p153) target = $region24
        $region23: #{tpu_custom_call.1} parent=19 // pred_region
          %s156 = smul.u32 %s19, 2
          %s157 = sadd.s32 %s156, %s20
          %p158 = scmp.lt.s32.totalorder %s157, 3
          %s159 = scalar_select %p158, %s157, 3
          %s160 = smul.addr %s159, 30
          %s161 = smul.addr %s160, 8
          %s162 = scalar_lea.vmem %s0, %s161
          %s163 = smul.u32 %s19, 2
          %s164 = sadd.s32 %s163, %s20
        $region24: #{tpu_custom_call.1} parent=19 // pred_fallthru
          _
        // Predicated region
        $region25: #{tpu_custom_call.1} parent=19 // pred_check
          %p165 = pneg %p74
        $region26: #{tpu_custom_call.1} parent=19 // pred_check_branch
          %167 = sbr.rel (%p165) target = $region28
        $region27: #{tpu_custom_call.1} parent=19 // pred_region
          %p168 = scmp.lt.s32.totalorder %s19, 1
          %s169 = scalar_select %p168, %s19, 1
          %s170 = smul.addr %s169, 9
          %s171 = smul.addr %s170, 4
          %s172 = scalar_lea.vmem %s1, %s171
        $region28: #{tpu_custom_call.1} parent=19 // pred_fallthru
          _
      $region20: #{tpu_custom_call.1} parent=5 // pred_fallthru
        _
      %p173 = scmp.le.s32.totalorder 1, %s12
      %p174 = scmp.lt.s32.totalorder %s12, 5
      %p175 = pnand %p173, %p174
      %p176 = pneg %p175
      // Predicated region
      $region29: #{tpu_custom_call.1} parent=5 // pred_check
        _
      $region30: #{tpu_custom_call.1} parent=5 // pred_check_branch
        %178 = sbr.rel (%p175) target = $region32
      $region31: #{tpu_custom_call.1} parent=5 // pred_region
        %s179 = ssub.s32 %s12, 1
        %s180 = smul.u32 %s21, 2
        %s181 = sadd.s32 %s180, %s22
        %p182 = scmp.lt.s32.totalorder %s181, 3
        %s183 = scalar_select %p182, %s181, 3
        %s184 = smul.addr %s183, 30
        %s185 = smul.addr %s184, 8
        %s186 = scalar_lea.vmem %s0, %s185
        %p187 = pneg %p54
        %p188 = pneg %p51
        %p189 = scmp.lt.s32.totalorder %s21, 1
        %s190 = scalar_select %p189, %s21, 1
        %s191 = smul.addr %s190, 9
        %s192 = smul.addr %s191, 4
        %s193 = scalar_lea.vmem %s1, %s192
        %p194 = pneg %p80
        %p195 = pneg %p77
        %p196 = pneg %p101
        %p197 = pneg %p98
        %p198 = pneg %p131
        %p199 = pneg %p128
        %s200 = sand.u32 %s118, 1
        %s201 = scalar_lea.sflag [#allocation4], %s200
        %s202 = sand.u32 %s118, 1
        %s203 = smul.addr %s202, 128
        %s204 = scalar_lea.vmem [#allocation3], %s203
        %s205 = smul.u32 %s21, 2
        %s206 = sadd.s32 %s205, %s22
        %p207 = scmp.lt.s32.totalorder %s206, 3
        %s208 = scalar_select %p207, %s206, 3
        %s209 = smul.addr %s208, 30
        %s210 = smul.addr %s209, 8
        %s211 = scalar_lea.vmem %s0, %s210
        %s212 = smul.u32 %s21, 2
        %s213 = sadd.s32 %s212, %s22
        %p214 = scmp.lt.s32.totalorder %s21, 1
        %s215 = scalar_select %p214, %s21, 1
        %s216 = smul.addr %s215, 9
        %s217 = smul.addr %s216, 4
        %s218 = scalar_lea.vmem %s1, %s217
        %s219 = smul.u32 %s21, 2
        %s220 = sadd.s32 %s219, %s22
        %v221 = vld [vmem:[%s211] sm:$0xff]
        %v222 = vld [vmem:[%s211 + $0x8] sm:$0xff]
        %v223 = vld [vmem:[%s211 + $0x10] sm:$0xff]
        %v224 = vld [vmem:[%s211 + $0x18] sm:$0xff]
        %v225 = vld [vmem:[%s211 + $0x20] sm:$0xff]
        %v226 = vld [vmem:[%s211 + $0x28] sm:$0xff]
        %v227 = vld [vmem:[%s211 + $0x30] sm:$0xff]
        %v228 = vld [vmem:[%s211 + $0x38] sm:$0xff]
        %v229 = vld [vmem:[%s211 + $0x40] sm:$0xff]
        %v230 = vld [vmem:[%s211 + $0x48] sm:$0xff]
        %v231 = vld [vmem:[%s211 + $0x50] sm:$0xff]
        %v232 = vld [vmem:[%s211 + $0x58] sm:$0xff]
        %v233 = vld [vmem:[%s211 + $0x60] sm:$0xff]
        %v234 = vld [vmem:[%s211 + $0x68] sm:$0xff]
        %v235 = vld [vmem:[%s211 + $0x70] sm:$0xff]
        %v236 = vld [vmem:[%s211 + $0x78] sm:$0xff]
        %v237 = vld [vmem:[%s211 + $0x80] sm:$0xff]
        %v238 = vld [vmem:[%s211 + $0x88] sm:$0xff]
        %v239 = vld [vmem:[%s211 + $0x90] sm:$0xff]
        %v240 = vld [vmem:[%s211 + $0x98] sm:$0xff]
        %v241 = vld [vmem:[%s211 + $0xa0] sm:$0xff]
        %v242 = vld [vmem:[%s211 + $0xa8] sm:$0xff]
        %v243 = vld [vmem:[%s211 + $0xb0] sm:$0xff]
        %v244 = vld [vmem:[%s211 + $0xb8] sm:$0xff]
        %v245 = vld [vmem:[%s211 + $0xc0] sm:$0xff]
        %v246 = vld [vmem:[%s211 + $0xc8] sm:$0xff]
        %v247 = vld [vmem:[%s211 + $0xd0] sm:$0xff]
        %v248 = vld [vmem:[%s211 + $0xd8] sm:$0xff]
        %v249 = vld [vmem:[%s211 + $0xe0] sm:$0xff]
        %v250 = vld [vmem:[%s211 + $0xe8] sm:$0xff]
        %v251 = vld [vmem:[%s2] sm:$0x1]
        %v253 = vlaneseq
        %v254 = vshrl.u32 %v253, 7
        %v255 = vsub.s32 0, %v254
        %v256 = vrot.slane %v251, %v255
        %258 = vst [vmem:[#allocation2] sm:$0xff] %v256
        %259 = vst [vmem:[#allocation2 + $0x8] sm:$0xff] %v256
        %260 = vst [vmem:[#allocation2 + $0x10] sm:$0xff] %v256
        %261 = vst [vmem:[#allocation2 + $0x18] sm:$0xff] %v256
        %262 = vst [vmem:[#allocation2 + $0x20] sm:$0xff] %v256
        %263 = vst [vmem:[#allocation2 + $0x28] sm:$0xff] %v256
        %264 = vst [vmem:[#allocation2 + $0x30] sm:$0xff] %v256
        %265 = vst [vmem:[#allocation2 + $0x38] sm:$0xff] %v256
        %266 = vst [vmem:[#allocation2 + $0x40] sm:$0xff] %v256
        %267 = vst [vmem:[#allocation2 + $0x48] sm:$0xff] %v256
        %268 = vst [vmem:[#allocation2 + $0x50] sm:$0xff] %v256
        %269 = vst [vmem:[#allocation2 + $0x58] sm:$0xff] %v256
        %270 = vst [vmem:[#allocation2 + $0x60] sm:$0xff] %v256
        %271 = vst [vmem:[#allocation2 + $0x68] sm:$0xff] %v256
        %272 = vst [vmem:[#allocation2 + $0x70] sm:$0xff] %v256
        %273 = vst [vmem:[#allocation2 + $0x78] sm:$0xff] %v256
        %v274 = vld [vmem:[%s218] sm:$0xf]
        %vm275 = vcmask 31744
        %v277 = vsel %vm275, %v221, 0
        %v280 = vsel %vm275, %v222, 0
        %v283 = vsel %vm275, %v223, 0
        %v286 = vsel %vm275, %v224, 0
        %v289 = vsel %vm275, %v225, 0
        %v292 = vsel %vm275, %v226, 0
        %v295 = vsel %vm275, %v227, 0
        %v298 = vsel %vm275, %v228, 0
        %v301 = vsel %vm275, %v229, 0
        %v304 = vsel %vm275, %v230, 0
        %v307 = vsel %vm275, %v231, 0
        %v310 = vsel %vm275, %v232, 0
        %v313 = vsel %vm275, %v233, 0
        %v316 = vsel %vm275, %v234, 0
        %v319 = vsel %vm275, %v235, 0
        %v322 = vsel %vm275, %v236, 0
        %v325 = vsel %vm275, %v237, 0
        %v328 = vsel %vm275, %v238, 0
        %v331 = vsel %vm275, %v239, 0
        %v334 = vsel %vm275, %v240, 0
        %v337 = vsel %vm275, %v241, 0
        %v340 = vsel %vm275, %v242, 0
        %v343 = vsel %vm275, %v243, 0
        %v346 = vsel %vm275, %v244, 0
        %vm348 = vcmask 1043456
        %v350 = vsel %vm348, %v274, 0
        %352 = vmatprep.subr.mxu0 0.0
        %353 = vmatpush1.msra.mxu0 %v350
        %354 = vmatprep.subr.mxu0 0.0
        %355 = vmatpush1.msra.mxu0 0.0
        %356 = vmatprep.subr.mxu0 0.0
        %357 = vmatpush1.msra.mxu0 0.0
        %358 = vmatprep.subr.mxu0 0.0
        %359 = vmatpush1.msra.mxu0 0.0
        %360 = vmatprep.subr.mxu0 0.0
        %361 = vmatpush1.msra.mxu0 0.0
        %362 = vmatprep.subr.mxu0 0.0
        %363 = vmatpush1.msra.mxu0 0.0
        %364 = vmatprep.subr.mxu0 0.0
        %365 = vmatpush1.msra.mxu0 0.0
        %366 = vmatprep.subr.mxu0 0.0
        %367 = vmatpush1.msra.mxu0 0.0
        %368 = vmatprep.subr.mxu0 0.0
        %369 = vmatpush1.msra.mxu0 0.0
        %370 = vmatprep.subr.mxu0 0.0
        %371 = vmatpush1.msra.mxu0 0.0
        %372 = vmatprep.subr.mxu0 0.0
        %373 = vmatpush1.msra.mxu0 0.0
        %374 = vmatprep.subr.mxu0 0.0
        %375 = vmatpush1.msra.mxu0 0.0
        %376 = vmatprep.subr.mxu0 0.0
        %377 = vmatpush1.msra.mxu0 0.0
        %378 = vmatprep.subr.mxu0 0.0
        %379 = vmatpush1.msra.mxu0 0.0
        %380 = vmatprep.subr.mxu0 0.0
        %381 = vmatpush1.msra.mxu0 0.0
        %382 = vmatprep.subr.mxu0 0.0
        %383 = vmatpush1.msra.mxu0 0.0
        %384 = vmatprep.subr.mxu0 0.0
        %385 = vmatpush1.msra.mxu0 0.0
        %386 = vmatprep.subr.mxu0 0.0
        %387 = vmatpush1.msra.mxu0 0.0
        %388 = vmatprep.subr.mxu0 0.0
        %389 = vmatpush1.msra.mxu0 0.0
        %390 = vmatprep.subr.mxu0 0.0
        %391 = vmatpush1.msra.mxu0 0.0
        %392 = vmatprep.subr.mxu0 0.0
        %393 = vmatpush1.msra.mxu0 0.0
        %394 = vmatprep.subr.mxu0 0.0
        %395 = vmatpush1.msra.mxu0 0.0
        %396 = vmatprep.subr.mxu0 0.0
        %397 = vmatpush1.msra.mxu0 0.0
        %398 = vmatprep.subr.mxu0 0.0
        %399 = vmatpush1.msra.mxu0 0.0
        %400 = vmatprep.subr.mxu0 0.0
        %401 = vmatpush1.msra.mxu0 0.0
        %402 = vmatprep.subr.mxu0 0.0
        %403 = vmatpush1.msra.mxu0 0.0
        %404 = vmatprep.subr.mxu0 0.0
        %405 = vmatpush1.msra.mxu0 0.0
        %406 = vmatprep.subr.mxu0 0.0
        %407 = vmatpush1.msra.mxu0 0.0
        %408 = vmatprep.subr.mxu0 0.0
        %409 = vmatpush1.msra.mxu0 0.0
        %410 = vmatprep.subr.mxu0 0.0
        %411 = vmatpush1.msra.mxu0 0.0
        %412 = vmatprep.subr.mxu0 0.0
        %413 = vmatpush1.msra.mxu0 0.0
        %414 = vmatprep.subr.mxu0 0.0
        %415 = vmatpush1.msra.mxu0 0.0
        %416 = vmatprep.mubr.f32.mxu0 0.0
        %417 = vmatmul.mubr.f32.gmra.mrb[0].mxu0 %v277
        %v418 = vpop.f32.mrb[0].mxu0
        %v419 = vadd.f32 0.0, %v418
        %v420 = vpop.f32.mrb[0].mxu0
        %421 = vmatprep.mubr.f32.mxu0 0.0
        %422 = vmatmul.mubr.f32.gmra.mrb[0].mxu0 %v280
        %v423 = vpop.f32.mrb[0].mxu0
        %v424 = vadd.f32 0.0, %v423
        %v425 = vpop.f32.mrb[0].mxu0
        %426 = vmatprep.mubr.f32.mxu0 0.0
        %427 = vmatmul.mubr.f32.gmra.mrb[0].mxu0 %v283
        %v428 = vpop.f32.mrb[0].mxu0
        %v429 = vpop.f32.mrb[0].mxu0
        %430 = vmatprep.mubr.f32.mxu0 0.0
        %431 = vmatmul.mubr.f32.gmra.mrb[0].mxu0 %v286
        %v432 = vpop.f32.mrb[0].mxu0
        %v433 = vadd.f32 0.0, %v432
        %v434 = vpop.f32.mrb[0].mxu0
        %435 = vmatprep.mubr.f32.mxu0 0.0
        %436 = vmatmul.mubr.f32.gmra.mrb[0].mxu0 %v289
        %v437 = vpop.f32.mrb[0].mxu0
        %v438 = vadd.f32 0.0, %v437
        %v439 = vpop.f32.mrb[0].mxu0
        %440 = vmatprep.mubr.f32.mxu0 0.0
        %441 = vmatmul.mubr.f32.gmra.mrb[0].mxu0 %v292
        %v442 = vpop.f32.mrb[0].mxu0
        %v443 = vpop.f32.mrb[0].mxu0
        %444 = vmatprep.mubr.f32.mxu0 0.0
        %445 = vmatmul.mubr.f32.gmra.mrb[0].mxu0 %v295
        %v446 = vpop.f32.mrb[0].mxu0
        %v447 = vadd.f32 0.0, %v446
        %v448 = vpop.f32.mrb[0].mxu0
        %449 = vmatprep.mubr.f32.mxu0 0.0
        %450 = vmatmul.mubr.f32.gmra.mrb[0].mxu0 %v298
        %v451 = vpop.f32.mrb[0].mxu0
        %v452 = vadd.f32 0.0, %v451
        %v453 = vpop.f32.mrb[0].mxu0
        %454 = vmatprep.mubr.f32.mxu0 0.0
        %455 = vmatmul.mubr.f32.gmra.mrb[0].mxu0 %v301
        %v456 = vpop.f32.mrb[0].mxu0
        %v457 = vpop.f32.mrb[0].mxu0
        %458 = vmatprep.mubr.f32.mxu0 0.0
        %459 = vmatmul.mubr.f32.gmra.mrb[0].mxu0 %v304
        %v460 = vpop.f32.mrb[0].mxu0
        %v461 = vadd.f32 0.0, %v460
        %v462 = vpop.f32.mrb[0].mxu0
        %463 = vmatprep.mubr.f32.mxu0 0.0
        %464 = vmatmul.mubr.f32.gmra.mrb[0].mxu0 %v307
        %v465 = vpop.f32.mrb[0].mxu0
        %v466 = vadd.f32 0.0, %v465
        %v467 = vpop.f32.mrb[0].mxu0
        %468 = vmatprep.mubr.f32.mxu0 0.0
        %469 = vmatmul.mubr.f32.gmra.mrb[0].mxu0 %v310
        %v470 = vpop.f32.mrb[0].mxu0
        %v471 = vpop.f32.mrb[0].mxu0
        %472 = vmatprep.mubr.f32.mxu0 0.0
        %473 = vmatmul.mubr.f32.gmra.mrb[0].mxu0 %v313
        %v474 = vpop.f32.mrb[0].mxu0
        %v475 = vadd.f32 0.0, %v474
        %v476 = vpop.f32.mrb[0].mxu0
        %477 = vmatprep.mubr.f32.mxu0 0.0
        %478 = vmatmul.mubr.f32.gmra.mrb[0].mxu0 %v316
        %v479 = vpop.f32.mrb[0].mxu0
        %v480 = vadd.f32 0.0, %v479
        %v481 = vpop.f32.mrb[0].mxu0
        %482 = vmatprep.mubr.f32.mxu0 0.0
        %483 = vmatmul.mubr.f32.gmra.mrb[0].mxu0 %v319
        %v484 = vpop.f32.mrb[0].mxu0
        %v485 = vpop.f32.mrb[0].mxu0
        %486 = vmatprep.mubr.f32.mxu0 0.0
        %487 = vmatmul.mubr.f32.gmra.mrb[0].mxu0 %v322
        %v488 = vpop.f32.mrb[0].mxu0
        %v489 = vadd.f32 0.0, %v488
        %v490 = vpop.f32.mrb[0].mxu0
        %491 = vmatprep.mubr.f32.mxu0 0.0
        %492 = vmatmul.mubr.f32.gmra.mrb[0].mxu0 %v325
        %v493 = vpop.f32.mrb[0].mxu0
        %v494 = vadd.f32 0.0, %v493
        %v495 = vpop.f32.mrb[0].mxu0
        %496 = vmatprep.mubr.f32.mxu0 0.0
        %497 = vmatmul.mubr.f32.gmra.mrb[0].mxu0 %v328
        %v498 = vpop.f32.mrb[0].mxu0
        %v499 = vpop.f32.mrb[0].mxu0
        %500 = vmatprep.mubr.f32.mxu0 0.0
        %501 = vmatmul.mubr.f32.gmra.mrb[0].mxu0 %v331
        %v502 = vpop.f32.mrb[0].mxu0
        %v503 = vadd.f32 0.0, %v502
        %v504 = vpop.f32.mrb[0].mxu0
        %505 = vmatprep.mubr.f32.mxu0 0.0
        %506 = vmatmul.mubr.f32.gmra.mrb[0].mxu0 %v334
        %v507 = vpop.f32.mrb[0].mxu0
        %v508 = vadd.f32 0.0, %v507
        %v509 = vpop.f32.mrb[0].mxu0
        %510 = vmatprep.mubr.f32.mxu0 0.0
        %511 = vmatmul.mubr.f32.gmra.mrb[0].mxu0 %v337
        %v512 = vpop.f32.mrb[0].mxu0
        %v513 = vpop.f32.mrb[0].mxu0
        %514 = vmatprep.mubr.f32.mxu0 0.0
        %515 = vmatmul.mubr.f32.gmra.mrb[0].mxu0 %v340
        %v516 = vpop.f32.mrb[0].mxu0
        %v517 = vadd.f32 0.0, %v516
        %v518 = vpop.f32.mrb[0].mxu0
        %519 = vmatprep.mubr.f32.mxu0 0.0
        %520 = vmatmul.mubr.f32.gmra.mrb[0].mxu0 %v343
        %v521 = vpop.f32.mrb[0].mxu0
        %v522 = vadd.f32 0.0, %v521
        %v523 = vpop.f32.mrb[0].mxu0
        %524 = vmatprep.mubr.f32.mxu0 0.0
        %525 = vmatmul.mubr.f32.gmra.mrb[0].mxu0 %v346
        %v526 = vpop.f32.mrb[0].mxu0
        %v527 = vpop.f32.mrb[0].mxu0
        %528 = vdwg.mxu0
        %v529 = vld [vmem:[#allocation2] sm:$0xff]
        %v530 = vld [vmem:[#allocation2 + $0x8] sm:$0xff]
        %v531 = vld [vmem:[#allocation2 + $0x10] sm:$0xff]
        %v532 = vld [vmem:[#allocation2 + $0x18] sm:$0xff]
        %v533 = vld [vmem:[#allocation2 + $0x20] sm:$0xff]
        %v534 = vld [vmem:[#allocation2 + $0x28] sm:$0xff]
        %v535 = vld [vmem:[#allocation2 + $0x30] sm:$0xff]
        %v536 = vld [vmem:[#allocation2 + $0x38] sm:$0xff]
        %v537 = vld [vmem:[#allocation2 + $0x40] sm:$0xff]
        %v538 = vld [vmem:[#allocation2 + $0x48] sm:$0xff]
        %v539 = vld [vmem:[#allocation2 + $0x50] sm:$0xff]
        %v540 = vld [vmem:[#allocation2 + $0x58] sm:$0xff]
        %v541 = vld [vmem:[#allocation2 + $0x60] sm:$0xff]
        %v542 = vld [vmem:[#allocation2 + $0x68] sm:$0xff]
        %v543 = vld [vmem:[#allocation2 + $0x70] sm:$0xff]
        %v544 = vld [vmem:[#allocation2 + $0x78] sm:$0xff]
        %v545 = vadd.f32 %v529, %v419
        %v546 = vadd.f32 %v530, %v424
        %v547 = vadd.f32 %v531, %v433
        %v548 = vadd.f32 %v532, %v438
        %v549 = vadd.f32 %v533, %v447
        %v550 = vadd.f32 %v534, %v452
        %v551 = vadd.f32 %v535, %v461
        %v552 = vadd.f32 %v536, %v466
        %v553 = vadd.f32 %v537, %v475
        %v554 = vadd.f32 %v538, %v480
        %v555 = vadd.f32 %v539, %v489
        %v556 = vadd.f32 %v540, %v494
        %v557 = vadd.f32 %v541, %v503
        %v558 = vadd.f32 %v542, %v508
        %v559 = vadd.f32 %v543, %v517
        %v560 = vadd.f32 %v544, %v522
        %561 = vst [vmem:[#allocation2] sm:$0xff] %v545
        %562 = vst [vmem:[#allocation2 + $0x8] sm:$0xff] %v546
        %563 = vst [vmem:[#allocation2 + $0x10] sm:$0xff] %v547
        %564 = vst [vmem:[#allocation2 + $0x18] sm:$0xff] %v548
        %565 = vst [vmem:[#allocation2 + $0x20] sm:$0xff] %v549
        %566 = vst [vmem:[#allocation2 + $0x28] sm:$0xff] %v550
        %567 = vst [vmem:[#allocation2 + $0x30] sm:$0xff] %v551
        %568 = vst [vmem:[#allocation2 + $0x38] sm:$0xff] %v552
        %569 = vst [vmem:[#allocation2 + $0x40] sm:$0xff] %v553
        %570 = vst [vmem:[#allocation2 + $0x48] sm:$0xff] %v554
        %571 = vst [vmem:[#allocation2 + $0x50] sm:$0xff] %v555
        %572 = vst [vmem:[#allocation2 + $0x58] sm:$0xff] %v556
        %573 = vst [vmem:[#allocation2 + $0x60] sm:$0xff] %v557
        %574 = vst [vmem:[#allocation2 + $0x68] sm:$0xff] %v558
        %575 = vst [vmem:[#allocation2 + $0x70] sm:$0xff] %v559
        %576 = vst [vmem:[#allocation2 + $0x78] sm:$0xff] %v560
        %s577 = scalar_lea.vmem %s218, 4
        %v578 = vld [vmem:[%s577] sm:$0xf]
        %v580 = vsel %vm348, %v578, 0
        %582 = vmatprep.subr.mxu0 0.0
        %583 = vmatpush1.msra.mxu0 %v580
        %584 = vmatprep.subr.mxu0 0.0
        %585 = vmatpush1.msra.mxu0 0.0
        %586 = vmatprep.subr.mxu0 0.0
        %587 = vmatpush1.msra.mxu0 0.0
        %588 = vmatprep.subr.mxu0 0.0
        %589 = vmatpush1.msra.mxu0 0.0
        %590 = vmatprep.subr.mxu0 0.0
        %591 = vmatpush1.msra.mxu0 0.0
        %592 = vmatprep.subr.mxu0 0.0
        %593 = vmatpush1.msra.mxu0 0.0
        %594 = vmatprep.subr.mxu0 0.0
        %595 = vmatpush1.msra.mxu0 0.0
        %596 = vmatprep.subr.mxu0 0.0
        %597 = vmatpush1.msra.mxu0 0.0
        %598 = vmatprep.subr.mxu0 0.0
        %599 = vmatpush1.msra.mxu0 0.0
        %600 = vmatprep.subr.mxu0 0.0
        %601 = vmatpush1.msra.mxu0 0.0
        %602 = vmatprep.subr.mxu0 0.0
        %603 = vmatpush1.msra.mxu0 0.0
        %604 = vmatprep.subr.mxu0 0.0
        %605 = vmatpush1.msra.mxu0 0.0
        %606 = vmatprep.subr.mxu0 0.0
        %607 = vmatpush1.msra.mxu0 0.0
        %608 = vmatprep.subr.mxu0 0.0
        %609 = vmatpush1.msra.mxu0 0.0
        %610 = vmatprep.subr.mxu0 0.0
        %611 = vmatpush1.msra.mxu0 0.0
        %612 = vmatprep.subr.mxu0 0.0
        %613 = vmatpush1.msra.mxu0 0.0
        %614 = vmatprep.subr.mxu0 0.0
        %615 = vmatpush1.msra.mxu0 0.0
        %616 = vmatprep.subr.mxu0 0.0
        %617 = vmatpush1.msra.mxu0 0.0
        %618 = vmatprep.subr.mxu0 0.0
        %619 = vmatpush1.msra.mxu0 0.0
        %620 = vmatprep.subr.mxu0 0.0
        %621 = vmatpush1.msra.mxu0 0.0
        %622 = vmatprep.subr.mxu0 0.0
        %623 = vmatpush1.msra.mxu0 0.0
        %624 = vmatprep.subr.mxu0 0.0
        %625 = vmatpush1.msra.mxu0 0.0
        %626 = vmatprep.subr.mxu0 0.0
        %627 = vmatpush1.msra.mxu0 0.0
        %628 = vmatprep.subr.mxu0 0.0
        %629 = vmatpush1.msra.mxu0 0.0
        %630 = vmatprep.subr.mxu0 0.0
        %631 = vmatpush1.msra.mxu0 0.0
        %632 = vmatprep.subr.mxu0 0.0
        %633 = vmatpush1.msra.mxu0 0.0
        %634 = vmatprep.subr.mxu0 0.0
        %635 = vmatpush1.msra.mxu0 0.0
        %636 = vmatprep.subr.mxu0 0.0
        %637 = vmatpush1.msra.mxu0 0.0
        %638 = vmatprep.subr.mxu0 0.0
        %639 = vmatpush1.msra.mxu0 0.0
        %640 = vmatprep.subr.mxu0 0.0
        %641 = vmatpush1.msra.mxu0 0.0
        %642 = vmatprep.subr.mxu0 0.0
        %643 = vmatpush1.msra.mxu0 0.0
        %644 = vmatprep.subr.mxu0 0.0
        %645 = vmatpush1.msra.mxu0 0.0
        %646 = vmatprep.mubr.f32.mxu0 0.0
        %647 = vmatmul.mubr.f32.gmra.mrb[0].mxu0 %v277
        %v648 = vpop.f32.mrb[0].mxu0
        %v649 = vadd.f32 0.0, %v648
        %v650 = vpop.f32.mrb[0].mxu0
        %651 = vmatprep.mubr.f32.mxu0 0.0
        %652 = vmatmul.mubr.f32.gmra.mrb[0].mxu0 %v280
        %v653 = vpop.f32.mrb[0].mxu0
        %v654 = vadd.f32 0.0, %v653
        %v655 = vpop.f32.mrb[0].mxu0
        %656 = vmatprep.mubr.f32.mxu0 0.0
        %657 = vmatmul.mubr.f32.gmra.mrb[0].mxu0 %v283
        %v658 = vpop.f32.mrb[0].mxu0
        %v659 = vadd.f32 0.0, %v658
        %v660 = vpop.f32.mrb[0].mxu0
        %661 = vmatprep.mubr.f32.mxu0 0.0
        %662 = vmatmul.mubr.f32.gmra.mrb[0].mxu0 %v286
        %v663 = vpop.f32.mrb[0].mxu0
        %v664 = vadd.f32 0.0, %v663
        %v665 = vpop.f32.mrb[0].mxu0
        %666 = vmatprep.mubr.f32.mxu0 0.0
        %667 = vmatmul.mubr.f32.gmra.mrb[0].mxu0 %v289
        %v668 = vpop.f32.mrb[0].mxu0
        %v669 = vadd.f32 0.0, %v668
        %v670 = vpop.f32.mrb[0].mxu0
        %671 = vmatprep.mubr.f32.mxu0 0.0
        %672 = vmatmul.mubr.f32.gmra.mrb[0].mxu0 %v292
        %v673 = vpop.f32.mrb[0].mxu0
        %v674 = vadd.f32 0.0, %v673
        %v675 = vpop.f32.mrb[0].mxu0
        %676 = vmatprep.mubr.f32.mxu0 0.0
        %677 = vmatmul.mubr.f32.gmra.mrb[0].mxu0 %v295
        %v678 = vpop.f32.mrb[0].mxu0
        %v679 = vadd.f32 0.0, %v678
        %v680 = vpop.f32.mrb[0].mxu0
        %681 = vmatprep.mubr.f32.mxu0 0.0
        %682 = vmatmul.mubr.f32.gmra.mrb[0].mxu0 %v298
        %v683 = vpop.f32.mrb[0].mxu0
        %v684 = vadd.f32 0.0, %v683
        %v685 = vpop.f32.mrb[0].mxu0
        %686 = vmatprep.mubr.f32.mxu0 0.0
        %687 = vmatmul.mubr.f32.gmra.mrb[0].mxu0 %v301
        %v688 = vpop.f32.mrb[0].mxu0
        %v689 = vadd.f32 0.0, %v688
        %v690 = vpop.f32.mrb[0].mxu0
        %691 = vmatprep.mubr.f32.mxu0 0.0
        %692 = vmatmul.mubr.f32.gmra.mrb[0].mxu0 %v304
        %v693 = vpop.f32.mrb[0].mxu0
        %v694 = vadd.f32 0.0, %v693
        %v695 = vpop.f32.mrb[0].mxu0
        %696 = vmatprep.mubr.f32.mxu0 0.0
        %697 = vmatmul.mubr.f32.gmra.mrb[0].mxu0 %v307
        %v698 = vpop.f32.mrb[0].mxu0
        %v699 = vadd.f32 0.0, %v698
        %v700 = vpop.f32.mrb[0].mxu0
        %701 = vmatprep.mubr.f32.mxu0 0.0
        %702 = vmatmul.mubr.f32.gmra.mrb[0].mxu0 %v310
        %v703 = vpop.f32.mrb[0].mxu0
        %v704 = vadd.f32 0.0, %v703
        %v705 = vpop.f32.mrb[0].mxu0
        %706 = vmatprep.mubr.f32.mxu0 0.0
        %707 = vmatmul.mubr.f32.gmra.mrb[0].mxu0 %v313
        %v708 = vpop.f32.mrb[0].mxu0
        %v709 = vadd.f32 0.0, %v708
        %v710 = vpop.f32.mrb[0].mxu0
        %711 = vmatprep.mubr.f32.mxu0 0.0
        %712 = vmatmul.mubr.f32.gmra.mrb[0].mxu0 %v316
        %v713 = vpop.f32.mrb[0].mxu0
        %v714 = vadd.f32 0.0, %v713
        %v715 = vpop.f32.mrb[0].mxu0
        %716 = vmatprep.mubr.f32.mxu0 0.0
        %717 = vmatmul.mubr.f32.gmra.mrb[0].mxu0 %v319
        %v718 = vpop.f32.mrb[0].mxu0
        %v719 = vadd.f32 0.0, %v718
        %v720 = vpop.f32.mrb[0].mxu0
        %721 = vmatprep.mubr.f32.mxu0 0.0
        %722 = vmatmul.mubr.f32.gmra.mrb[0].mxu0 %v322
        %v723 = vpop.f32.mrb[0].mxu0
        %v724 = vadd.f32 0.0, %v723
        %v725 = vpop.f32.mrb[0].mxu0
        %726 = vmatprep.mubr.f32.mxu0 0.0
        %727 = vmatmul.mubr.f32.gmra.mrb[0].mxu0 %v325
        %v728 = vpop.f32.mrb[0].mxu0
        %v729 = vadd.f32 0.0, %v728
        %v730 = vpop.f32.mrb[0].mxu0
        %731 = vmatprep.mubr.f32.mxu0 0.0
        %732 = vmatmul.mubr.f32.gmra.mrb[0].mxu0 %v328
        %v733 = vpop.f32.mrb[0].mxu0
        %v734 = vadd.f32 0.0, %v733
        %v735 = vpop.f32.mrb[0].mxu0
        %736 = vmatprep.mubr.f32.mxu0 0.0
        %737 = vmatmul.mubr.f32.gmra.mrb[0].mxu0 %v331
        %v738 = vpop.f32.mrb[0].mxu0
        %v739 = vadd.f32 0.0, %v738
        %v740 = vpop.f32.mrb[0].mxu0
        %741 = vmatprep.mubr.f32.mxu0 0.0
        %742 = vmatmul.mubr.f32.gmra.mrb[0].mxu0 %v334
        %v743 = vpop.f32.mrb[0].mxu0
        %v744 = vadd.f32 0.0, %v743
        %v745 = vpop.f32.mrb[0].mxu0
        %746 = vmatprep.mubr.f32.mxu0 0.0
        %747 = vmatmul.mubr.f32.gmra.mrb[0].mxu0 %v337
        %v748 = vpop.f32.mrb[0].mxu0
        %v749 = vadd.f32 0.0, %v748
        %v750 = vpop.f32.mrb[0].mxu0
        %751 = vmatprep.mubr.f32.mxu0 0.0
        %752 = vmatmul.mubr.f32.gmra.mrb[0].mxu0 %v340
        %v753 = vpop.f32.mrb[0].mxu0
        %v754 = vadd.f32 0.0, %v753
        %v755 = vpop.f32.mrb[0].mxu0
        %756 = vmatprep.mubr.f32.mxu0 0.0
        %757 = vmatmul.mubr.f32.gmra.mrb[0].mxu0 %v343
        %v758 = vpop.f32.mrb[0].mxu0
        %v759 = vadd.f32 0.0, %v758
        %v760 = vpop.f32.mrb[0].mxu0
        %761 = vmatprep.mubr.f32.mxu0 0.0
        %762 = vmatmul.mubr.f32.gmra.mrb[0].mxu0 %v346
        %v763 = vpop.f32.mrb[0].mxu0
        %v764 = vadd.f32 0.0, %v763
        %v765 = vpop.f32.mrb[0].mxu0
        %766 = vdwg.mxu0
        %v767 = vld [vmem:[#allocation2] sm:$0xff]
        %v768 = vld [vmem:[#allocation2 + $0x8] sm:$0xff]
        %v769 = vld [vmem:[#allocation2 + $0x10] sm:$0xff]
        %v770 = vld [vmem:[#allocation2 + $0x18] sm:$0xff]
        %v771 = vld [vmem:[#allocation2 + $0x20] sm:$0xff]
        %v772 = vld [vmem:[#allocation2 + $0x28] sm:$0xff]
        %v773 = vld [vmem:[#allocation2 + $0x30] sm:$0xff]
        %v774 = vld [vmem:[#allocation2 + $0x38] sm:$0xff]
        %v775 = vld [vmem:[#allocation2 + $0x40] sm:$0xff]
        %v776 = vld [vmem:[#allocation2 + $0x48] sm:$0xff]
        %v777 = vld [vmem:[#allocation2 + $0x50] sm:$0xff]
        %v778 = vld [vmem:[#allocation2 + $0x58] sm:$0xff]
        %v779 = vld [vmem:[#allocation2 + $0x60] sm:$0xff]
        %v780 = vld [vmem:[#allocation2 + $0x68] sm:$0xff]
        %v781 = vld [vmem:[#allocation2 + $0x70] sm:$0xff]
        %v782 = vld [vmem:[#allocation2 + $0x78] sm:$0xff]
        %vm807 = vcmask 1046528
        %v808 = vrot.slane %v649, 1
        %v809 = vrot.slane %v654, 1
        %v810 = vsel %vm807, %v808, %v809
        %v811 = vrot.slane %v659, 1
        %v812 = vsel %vm807, %v809, %v811
        %v813 = vrot.slane %v664, 1
        %v814 = vrot.slane %v669, 1
        %v815 = vsel %vm807, %v813, %v814
        %v816 = vrot.slane %v674, 1
        %v817 = vsel %vm807, %v814, %v816
        %v818 = vrot.slane %v679, 1
        %v819 = vrot.slane %v684, 1
        %v820 = vsel %vm807, %v818, %v819
        %v821 = vrot.slane %v689, 1
        %v822 = vsel %vm807, %v819, %v821
        %v823 = vrot.slane %v694, 1
        %v824 = vrot.slane %v699, 1
        %v825 = vsel %vm807, %v823, %v824
        %v826 = vrot.slane %v704, 1
        %v827 = vsel %vm807, %v824, %v826
        %v828 = vrot.slane %v709, 1
        %v829 = vrot.slane %v714, 1
        %v830 = vsel %vm807, %v828, %v829
        %v831 = vrot.slane %v719, 1
        %v832 = vsel %vm807, %v829, %v831
        %v833 = vrot.slane %v724, 1
        %v834 = vrot.slane %v729, 1
        %v835 = vsel %vm807, %v833, %v834
        %v836 = vrot.slane %v734, 1
        %v837 = vsel %vm807, %v834, %v836
        %v838 = vrot.slane %v739, 1
        %v839 = vrot.slane %v744, 1
        %v840 = vsel %vm807, %v838, %v839
        %v841 = vrot.slane %v749, 1
        %v842 = vsel %vm807, %v839, %v841
        %v843 = vrot.slane %v754, 1
        %v844 = vrot.slane %v759, 1
        %v845 = vsel %vm807, %v843, %v844
        %v846 = vrot.slane %v764, 1
        %v847 = vsel %vm807, %v844, %v846
        %v864 = vadd.f32 %v767, %v810
        %v865 = vadd.f32 %v768, %v812
        %v866 = vadd.f32 %v769, %v815
        %v867 = vadd.f32 %v770, %v817
        %v868 = vadd.f32 %v771, %v820
        %v869 = vadd.f32 %v772, %v822
        %v870 = vadd.f32 %v773, %v825
        %v871 = vadd.f32 %v774, %v827
        %v872 = vadd.f32 %v775, %v830
        %v873 = vadd.f32 %v776, %v832
        %v874 = vadd.f32 %v777, %v835
        %v875 = vadd.f32 %v778, %v837
        %v876 = vadd.f32 %v779, %v840
        %v877 = vadd.f32 %v780, %v842
        %v878 = vadd.f32 %v781, %v845
        %v879 = vadd.f32 %v782, %v847
        %880 = vst [vmem:[#allocation2] sm:$0xff] %v864
        %881 = vst [vmem:[#allocation2 + $0x8] sm:$0xff] %v865
        %882 = vst [vmem:[#allocation2 + $0x10] sm:$0xff] %v866
        %883 = vst [vmem:[#allocation2 + $0x18] sm:$0xff] %v867
        %884 = vst [vmem:[#allocation2 + $0x20] sm:$0xff] %v868
        %885 = vst [vmem:[#allocation2 + $0x28] sm:$0xff] %v869
        %886 = vst [vmem:[#allocation2 + $0x30] sm:$0xff] %v870
        %887 = vst [vmem:[#allocation2 + $0x38] sm:$0xff] %v871
        %888 = vst [vmem:[#allocation2 + $0x40] sm:$0xff] %v872
        %889 = vst [vmem:[#allocation2 + $0x48] sm:$0xff] %v873
        %890 = vst [vmem:[#allocation2 + $0x50] sm:$0xff] %v874
        %891 = vst [vmem:[#allocation2 + $0x58] sm:$0xff] %v875
        %892 = vst [vmem:[#allocation2 + $0x60] sm:$0xff] %v876
        %893 = vst [vmem:[#allocation2 + $0x68] sm:$0xff] %v877
        %894 = vst [vmem:[#allocation2 + $0x70] sm:$0xff] %v878
        %895 = vst [vmem:[#allocation2 + $0x78] sm:$0xff] %v879
        %s896 = scalar_lea.vmem %s218, 8
        %v897 = vld [vmem:[%s896] sm:$0xf]
        %v899 = vsel %vm348, %v897, 0
        %901 = vmatprep.subr.mxu0 0.0
        %902 = vmatpush1.msra.mxu0 %v899
        %903 = vmatprep.subr.mxu0 0.0
        %904 = vmatpush1.msra.mxu0 0.0
        %905 = vmatprep.subr.mxu0 0.0
        %906 = vmatpush1.msra.mxu0 0.0
        %907 = vmatprep.subr.mxu0 0.0
        %908 = vmatpush1.msra.mxu0 0.0
        %909 = vmatprep.subr.mxu0 0.0
        %910 = vmatpush1.msra.mxu0 0.0
        %911 = vmatprep.subr.mxu0 0.0
        %912 = vmatpush1.msra.mxu0 0.0
        %913 = vmatprep.subr.mxu0 0.0
        %914 = vmatpush1.msra.mxu0 0.0
        %915 = vmatprep.subr.mxu0 0.0
        %916 = vmatpush1.msra.mxu0 0.0
        %917 = vmatprep.subr.mxu0 0.0
        %918 = vmatpush1.msra.mxu0 0.0
        %919 = vmatprep.subr.mxu0 0.0
        %920 = vmatpush1.msra.mxu0 0.0
        %921 = vmatprep.subr.mxu0 0.0
        %922 = vmatpush1.msra.mxu0 0.0
        %923 = vmatprep.subr.mxu0 0.0
        %924 = vmatpush1.msra.mxu0 0.0
        %925 = vmatprep.subr.mxu0 0.0
        %926 = vmatpush1.msra.mxu0 0.0
        %927 = vmatprep.subr.mxu0 0.0
        %928 = vmatpush1.msra.mxu0 0.0
        %929 = vmatprep.subr.mxu0 0.0
        %930 = vmatpush1.msra.mxu0 0.0
        %931 = vmatprep.subr.mxu0 0.0
        %932 = vmatpush1.msra.mxu0 0.0
        %933 = vmatprep.subr.mxu0 0.0
        %934 = vmatpush1.msra.mxu0 0.0
        %935 = vmatprep.subr.mxu0 0.0
        %936 = vmatpush1.msra.mxu0 0.0
        %937 = vmatprep.subr.mxu0 0.0
        %938 = vmatpush1.msra.mxu0 0.0
        %939 = vmatprep.subr.mxu0 0.0
        %940 = vmatpush1.msra.mxu0 0.0
        %941 = vmatprep.subr.mxu0 0.0
        %942 = vmatpush1.msra.mxu0 0.0
        %943 = vmatprep.subr.mxu0 0.0
        %944 = vmatpush1.msra.mxu0 0.0
        %945 = vmatprep.subr.mxu0 0.0
        %946 = vmatpush1.msra.mxu0 0.0
        %947 = vmatprep.subr.mxu0 0.0
        %948 = vmatpush1.msra.mxu0 0.0
        %949 = vmatprep.subr.mxu0 0.0
        %950 = vmatpush1.msra.mxu0 0.0
        %951 = vmatprep.subr.mxu0 0.0
        %952 = vmatpush1.msra.mxu0 0.0
        %953 = vmatprep.subr.mxu0 0.0
        %954 = vmatpush1.msra.mxu0 0.0
        %955 = vmatprep.subr.mxu0 0.0
        %956 = vmatpush1.msra.mxu0 0.0
        %957 = vmatprep.subr.mxu0 0.0
        %958 = vmatpush1.msra.mxu0 0.0
        %959 = vmatprep.subr.mxu0 0.0
        %960 = vmatpush1.msra.mxu0 0.0
        %961 = vmatprep.subr.mxu0 0.0
        %962 = vmatpush1.msra.mxu0 0.0
        %963 = vmatprep.subr.mxu0 0.0
        %964 = vmatpush1.msra.mxu0 0.0
        %965 = vmatprep.mubr.f32.mxu0 0.0
        %966 = vmatmul.mubr.f32.gmra.mrb[0].mxu0 %v277
        %v967 = vpop.f32.mrb[0].mxu0
        %v968 = vadd.f32 0.0, %v967
        %v969 = vpop.f32.mrb[0].mxu0
        %970 = vmatprep.mubr.f32.mxu0 0.0
        %971 = vmatmul.mubr.f32.gmra.mrb[0].mxu0 %v280
        %v972 = vpop.f32.mrb[0].mxu0
        %v973 = vadd.f32 0.0, %v972
        %v974 = vpop.f32.mrb[0].mxu0
        %975 = vmatprep.mubr.f32.mxu0 0.0
        %976 = vmatmul.mubr.f32.gmra.mrb[0].mxu0 %v283
        %v977 = vpop.f32.mrb[0].mxu0
        %v978 = vadd.f32 0.0, %v977
        %v979 = vpop.f32.mrb[0].mxu0
        %980 = vmatprep.mubr.f32.mxu0 0.0
        %981 = vmatmul.mubr.f32.gmra.mrb[0].mxu0 %v286
        %v982 = vpop.f32.mrb[0].mxu0
        %v983 = vadd.f32 0.0, %v982
        %v984 = vpop.f32.mrb[0].mxu0
        %985 = vmatprep.mubr.f32.mxu0 0.0
        %986 = vmatmul.mubr.f32.gmra.mrb[0].mxu0 %v289
        %v987 = vpop.f32.mrb[0].mxu0
        %v988 = vadd.f32 0.0, %v987
        %v989 = vpop.f32.mrb[0].mxu0
        %990 = vmatprep.mubr.f32.mxu0 0.0
        %991 = vmatmul.mubr.f32.gmra.mrb[0].mxu0 %v292
        %v992 = vpop.f32.mrb[0].mxu0
        %v993 = vadd.f32 0.0, %v992
        %v994 = vpop.f32.mrb[0].mxu0
        %995 = vmatprep.mubr.f32.mxu0 0.0
        %996 = vmatmul.mubr.f32.gmra.mrb[0].mxu0 %v295
        %v997 = vpop.f32.mrb[0].mxu0
        %v998 = vadd.f32 0.0, %v997
        %v999 = vpop.f32.mrb[0].mxu0
        %1000 = vmatprep.mubr.f32.mxu0 0.0
        %1001 = vmatmul.mubr.f32.gmra.mrb[0].mxu0 %v298
        %v1002 = vpop.f32.mrb[0].mxu0
        %v1003 = vadd.f32 0.0, %v1002
        %v1004 = vpop.f32.mrb[0].mxu0
        %1005 = vmatprep.mubr.f32.mxu0 0.0
        %1006 = vmatmul.mubr.f32.gmra.mrb[0].mxu0 %v301
        %v1007 = vpop.f32.mrb[0].mxu0
        %v1008 = vadd.f32 0.0, %v1007
        %v1009 = vpop.f32.mrb[0].mxu0
        %1010 = vmatprep.mubr.f32.mxu0 0.0
        %1011 = vmatmul.mubr.f32.gmra.mrb[0].mxu0 %v304
        %v1012 = vpop.f32.mrb[0].mxu0
        %v1013 = vadd.f32 0.0, %v1012
        %v1014 = vpop.f32.mrb[0].mxu0
        %1015 = vmatprep.mubr.f32.mxu0 0.0
        %1016 = vmatmul.mubr.f32.gmra.mrb[0].mxu0 %v307
        %v1017 = vpop.f32.mrb[0].mxu0
        %v1018 = vadd.f32 0.0, %v1017
        %v1019 = vpop.f32.mrb[0].mxu0
        %1020 = vmatprep.mubr.f32.mxu0 0.0
        %1021 = vmatmul.mubr.f32.gmra.mrb[0].mxu0 %v310
        %v1022 = vpop.f32.mrb[0].mxu0
        %v1023 = vadd.f32 0.0, %v1022
        %v1024 = vpop.f32.mrb[0].mxu0
        %1025 = vmatprep.mubr.f32.mxu0 0.0
        %1026 = vmatmul.mubr.f32.gmra.mrb[0].mxu0 %v313
        %v1027 = vpop.f32.mrb[0].mxu0
        %v1028 = vadd.f32 0.0, %v1027
        %v1029 = vpop.f32.mrb[0].mxu0
        %1030 = vmatprep.mubr.f32.mxu0 0.0
        %1031 = vmatmul.mubr.f32.gmra.mrb[0].mxu0 %v316
        %v1032 = vpop.f32.mrb[0].mxu0
        %v1033 = vadd.f32 0.0, %v1032
        %v1034 = vpop.f32.mrb[0].mxu0
        %1035 = vmatprep.mubr.f32.mxu0 0.0
        %1036 = vmatmul.mubr.f32.gmra.mrb[0].mxu0 %v319
        %v1037 = vpop.f32.mrb[0].mxu0
        %v1038 = vadd.f32 0.0, %v1037
        %v1039 = vpop.f32.mrb[0].mxu0
        %1040 = vmatprep.mubr.f32.mxu0 0.0
        %1041 = vmatmul.mubr.f32.gmra.mrb[0].mxu0 %v322
        %v1042 = vpop.f32.mrb[0].mxu0
        %v1043 = vadd.f32 0.0, %v1042
        %v1044 = vpop.f32.mrb[0].mxu0
        %1045 = vmatprep.mubr.f32.mxu0 0.0
        %1046 = vmatmul.mubr.f32.gmra.mrb[0].mxu0 %v325
        %v1047 = vpop.f32.mrb[0].mxu0
        %v1048 = vadd.f32 0.0, %v1047
        %v1049 = vpop.f32.mrb[0].mxu0
        %1050 = vmatprep.mubr.f32.mxu0 0.0
        %1051 = vmatmul.mubr.f32.gmra.mrb[0].mxu0 %v328
        %v1052 = vpop.f32.mrb[0].mxu0
        %v1053 = vadd.f32 0.0, %v1052
        %v1054 = vpop.f32.mrb[0].mxu0
        %1055 = vmatprep.mubr.f32.mxu0 0.0
        %1056 = vmatmul.mubr.f32.gmra.mrb[0].mxu0 %v331
        %v1057 = vpop.f32.mrb[0].mxu0
        %v1058 = vadd.f32 0.0, %v1057
        %v1059 = vpop.f32.mrb[0].mxu0
        %1060 = vmatprep.mubr.f32.mxu0 0.0
        %1061 = vmatmul.mubr.f32.gmra.mrb[0].mxu0 %v334
        %v1062 = vpop.f32.mrb[0].mxu0
        %v1063 = vadd.f32 0.0, %v1062
        %v1064 = vpop.f32.mrb[0].mxu0
        %1065 = vmatprep.mubr.f32.mxu0 0.0
        %1066 = vmatmul.mubr.f32.gmra.mrb[0].mxu0 %v337
        %v1067 = vpop.f32.mrb[0].mxu0
        %v1068 = vadd.f32 0.0, %v1067
        %v1069 = vpop.f32.mrb[0].mxu0
        %1070 = vmatprep.mubr.f32.mxu0 0.0
        %1071 = vmatmul.mubr.f32.gmra.mrb[0].mxu0 %v340
        %v1072 = vpop.f32.mrb[0].mxu0
        %v1073 = vadd.f32 0.0, %v1072
        %v1074 = vpop.f32.mrb[0].mxu0
        %1075 = vmatprep.mubr.f32.mxu0 0.0
        %1076 = vmatmul.mubr.f32.gmra.mrb[0].mxu0 %v343
        %v1077 = vpop.f32.mrb[0].mxu0
        %v1078 = vadd.f32 0.0, %v1077
        %v1079 = vpop.f32.mrb[0].mxu0
        %1080 = vmatprep.mubr.f32.mxu0 0.0
        %1081 = vmatmul.mubr.f32.gmra.mrb[0].mxu0 %v346
        %v1082 = vpop.f32.mrb[0].mxu0
        %v1083 = vadd.f32 0.0, %v1082
        %v1084 = vpop.f32.mrb[0].mxu0
        %1085 = vdwg.mxu0
        %v1086 = vld [vmem:[#allocation2] sm:$0xff]
        %v1087 = vld [vmem:[#allocation2 + $0x8] sm:$0xff]
        %v1088 = vld [vmem:[#allocation2 + $0x10] sm:$0xff]
        %v1089 = vld [vmem:[#allocation2 + $0x18] sm:$0xff]
        %v1090 = vld [vmem:[#allocation2 + $0x20] sm:$0xff]
        %v1091 = vld [vmem:[#allocation2 + $0x28] sm:$0xff]
        %v1092 = vld [vmem:[#allocation2 + $0x30] sm:$0xff]
        %v1093 = vld [vmem:[#allocation2 + $0x38] sm:$0xff]
        %v1094 = vld [vmem:[#allocation2 + $0x40] sm:$0xff]
        %v1095 = vld [vmem:[#allocation2 + $0x48] sm:$0xff]
        %v1096 = vld [vmem:[#allocation2 + $0x50] sm:$0xff]
        %v1097 = vld [vmem:[#allocation2 + $0x58] sm:$0xff]
        %v1098 = vld [vmem:[#allocation2 + $0x60] sm:$0xff]
        %v1099 = vld [vmem:[#allocation2 + $0x68] sm:$0xff]
        %v1100 = vld [vmem:[#allocation2 + $0x70] sm:$0xff]
        %v1101 = vld [vmem:[#allocation2 + $0x78] sm:$0xff]
        %vm1126 = vcmask 1045504
        %v1127 = vrot.slane %v968, 2
        %v1128 = vrot.slane %v973, 2
        %v1129 = vsel %vm1126, %v1127, %v1128
        %v1130 = vrot.slane %v978, 2
        %v1131 = vsel %vm1126, %v1128, %v1130
        %v1132 = vrot.slane %v983, 2
        %v1133 = vrot.slane %v988, 2
        %v1134 = vsel %vm1126, %v1132, %v1133
        %v1135 = vrot.slane %v993, 2
        %v1136 = vsel %vm1126, %v1133, %v1135
        %v1137 = vrot.slane %v998, 2
        %v1138 = vrot.slane %v1003, 2
        %v1139 = vsel %vm1126, %v1137, %v1138
        %v1140 = vrot.slane %v1008, 2
        %v1141 = vsel %vm1126, %v1138, %v1140
        %v1142 = vrot.slane %v1013, 2
        %v1143 = vrot.slane %v1018, 2
        %v1144 = vsel %vm1126, %v1142, %v1143
        %v1145 = vrot.slane %v1023, 2
        %v1146 = vsel %vm1126, %v1143, %v1145
        %v1147 = vrot.slane %v1028, 2
        %v1148 = vrot.slane %v1033, 2
        %v1149 = vsel %vm1126, %v1147, %v1148
        %v1150 = vrot.slane %v1038, 2
        %v1151 = vsel %vm1126, %v1148, %v1150
        %v1152 = vrot.slane %v1043, 2
        %v1153 = vrot.slane %v1048, 2
        %v1154 = vsel %vm1126, %v1152, %v1153
        %v1155 = vrot.slane %v1053, 2
        %v1156 = vsel %vm1126, %v1153, %v1155
        %v1157 = vrot.slane %v1058, 2
        %v1158 = vrot.slane %v1063, 2
        %v1159 = vsel %vm1126, %v1157, %v1158
        %v1160 = vrot.slane %v1068, 2
        %v1161 = vsel %vm1126, %v1158, %v1160
        %v1162 = vrot.slane %v1073, 2
        %v1163 = vrot.slane %v1078, 2
        %v1164 = vsel %vm1126, %v1162, %v1163
        %v1165 = vrot.slane %v1083, 2
        %v1166 = vsel %vm1126, %v1163, %v1165
        %v1183 = vadd.f32 %v1086, %v1129
        %v1184 = vadd.f32 %v1087, %v1131
        %v1185 = vadd.f32 %v1088, %v1134
        %v1186 = vadd.f32 %v1089, %v1136
        %v1187 = vadd.f32 %v1090, %v1139
        %v1188 = vadd.f32 %v1091, %v1141
        %v1189 = vadd.f32 %v1092, %v1144
        %v1190 = vadd.f32 %v1093, %v1146
        %v1191 = vadd.f32 %v1094, %v1149
        %v1192 = vadd.f32 %v1095, %v1151
        %v1193 = vadd.f32 %v1096, %v1154
        %v1194 = vadd.f32 %v1097, %v1156
        %v1195 = vadd.f32 %v1098, %v1159
        %v1196 = vadd.f32 %v1099, %v1161
        %v1197 = vadd.f32 %v1100, %v1164
        %v1198 = vadd.f32 %v1101, %v1166
        %1199 = vst [vmem:[#allocation2] sm:$0xff] %v1183
        %1200 = vst [vmem:[#allocation2 + $0x8] sm:$0xff] %v1184
        %1201 = vst [vmem:[#allocation2 + $0x10] sm:$0xff] %v1185
        %1202 = vst [vmem:[#allocation2 + $0x18] sm:$0xff] %v1186
        %1203 = vst [vmem:[#allocation2 + $0x20] sm:$0xff] %v1187
        %1204 = vst [vmem:[#allocation2 + $0x28] sm:$0xff] %v1188
        %1205 = vst [vmem:[#allocation2 + $0x30] sm:$0xff] %v1189
        %1206 = vst [vmem:[#allocation2 + $0x38] sm:$0xff] %v1190
        %1207 = vst [vmem:[#allocation2 + $0x40] sm:$0xff] %v1191
        %1208 = vst [vmem:[#allocation2 + $0x48] sm:$0xff] %v1192
        %1209 = vst [vmem:[#allocation2 + $0x50] sm:$0xff] %v1193
        %1210 = vst [vmem:[#allocation2 + $0x58] sm:$0xff] %v1194
        %1211 = vst [vmem:[#allocation2 + $0x60] sm:$0xff] %v1195
        %1212 = vst [vmem:[#allocation2 + $0x68] sm:$0xff] %v1196
        %1213 = vst [vmem:[#allocation2 + $0x70] sm:$0xff] %v1197
        %1214 = vst [vmem:[#allocation2 + $0x78] sm:$0xff] %v1198
        %s1215 = scalar_lea.vmem %s218, 12
        %v1216 = vld [vmem:[%s1215] sm:$0xf]
        %v1218 = vsel %vm275, %v245, 0
        %v1221 = vsel %vm275, %v246, 0
        %v1224 = vsel %vm275, %v247, 0
        %v1227 = vsel %vm348, %v1216, 0
        %1229 = vmatprep.subr.mxu0 0.0
        %1230 = vmatpush1.msra.mxu0 %v1227
        %1231 = vmatprep.subr.mxu0 0.0
        %1232 = vmatpush1.msra.mxu0 0.0
        %1233 = vmatprep.subr.mxu0 0.0
        %1234 = vmatpush1.msra.mxu0 0.0
        %1235 = vmatprep.subr.mxu0 0.0
        %1236 = vmatpush1.msra.mxu0 0.0
        %1237 = vmatprep.subr.mxu0 0.0
        %1238 = vmatpush1.msra.mxu0 0.0
        %1239 = vmatprep.subr.mxu0 0.0
        %1240 = vmatpush1.msra.mxu0 0.0
        %1241 = vmatprep.subr.mxu0 0.0
        %1242 = vmatpush1.msra.mxu0 0.0
        %1243 = vmatprep.subr.mxu0 0.0
        %1244 = vmatpush1.msra.mxu0 0.0
        %1245 = vmatprep.subr.mxu0 0.0
        %1246 = vmatpush1.msra.mxu0 0.0
        %1247 = vmatprep.subr.mxu0 0.0
        %1248 = vmatpush1.msra.mxu0 0.0
        %1249 = vmatprep.subr.mxu0 0.0
        %1250 = vmatpush1.msra.mxu0 0.0
        %1251 = vmatprep.subr.mxu0 0.0
        %1252 = vmatpush1.msra.mxu0 0.0
        %1253 = vmatprep.subr.mxu0 0.0
        %1254 = vmatpush1.msra.mxu0 0.0
        %1255 = vmatprep.subr.mxu0 0.0
        %1256 = vmatpush1.msra.mxu0 0.0
        %1257 = vmatprep.subr.mxu0 0.0
        %1258 = vmatpush1.msra.mxu0 0.0
        %1259 = vmatprep.subr.mxu0 0.0
        %1260 = vmatpush1.msra.mxu0 0.0
        %1261 = vmatprep.subr.mxu0 0.0
        %1262 = vmatpush1.msra.mxu0 0.0
        %1263 = vmatprep.subr.mxu0 0.0
        %1264 = vmatpush1.msra.mxu0 0.0
        %1265 = vmatprep.subr.mxu0 0.0
        %1266 = vmatpush1.msra.mxu0 0.0
        %1267 = vmatprep.subr.mxu0 0.0
        %1268 = vmatpush1.msra.mxu0 0.0
        %1269 = vmatprep.subr.mxu0 0.0
        %1270 = vmatpush1.msra.mxu0 0.0
        %1271 = vmatprep.subr.mxu0 0.0
        %1272 = vmatpush1.msra.mxu0 0.0
        %1273 = vmatprep.subr.mxu0 0.0
        %1274 = vmatpush1.msra.mxu0 0.0
        %1275 = vmatprep.subr.mxu0 0.0
        %1276 = vmatpush1.msra.mxu0 0.0
        %1277 = vmatprep.subr.mxu0 0.0
        %1278 = vmatpush1.msra.mxu0 0.0
        %1279 = vmatprep.subr.mxu0 0.0
        %1280 = vmatpush1.msra.mxu0 0.0
        %1281 = vmatprep.subr.mxu0 0.0
        %1282 = vmatpush1.msra.mxu0 0.0
        %1283 = vmatprep.subr.mxu0 0.0
        %1284 = vmatpush1.msra.mxu0 0.0
        %1285 = vmatprep.subr.mxu0 0.0
        %1286 = vmatpush1.msra.mxu0 0.0
        %1287 = vmatprep.subr.mxu0 0.0
        %1288 = vmatpush1.msra.mxu0 0.0
        %1289 = vmatprep.subr.mxu0 0.0
        %1290 = vmatpush1.msra.mxu0 0.0
        %1291 = vmatprep.subr.mxu0 0.0
        %1292 = vmatpush1.msra.mxu0 0.0
        %1293 = vmatprep.mubr.f32.mxu0 0.0
        %1294 = vmatmul.mubr.f32.gmra.mrb[0].mxu0 %v286
        %v1295 = vpop.f32.mrb[0].mxu0
        %v1296 = vadd.f32 0.0, %v1295
        %v1297 = vpop.f32.mrb[0].mxu0
        %1298 = vmatprep.mubr.f32.mxu0 0.0
        %1299 = vmatmul.mubr.f32.gmra.mrb[0].mxu0 %v289
        %v1300 = vpop.f32.mrb[0].mxu0
        %v1301 = vadd.f32 0.0, %v1300
        %v1302 = vpop.f32.mrb[0].mxu0
        %1303 = vmatprep.mubr.f32.mxu0 0.0
        %1304 = vmatmul.mubr.f32.gmra.mrb[0].mxu0 %v292
        %v1305 = vpop.f32.mrb[0].mxu0
        %v1306 = vpop.f32.mrb[0].mxu0
        %1307 = vmatprep.mubr.f32.mxu0 0.0
        %1308 = vmatmul.mubr.f32.gmra.mrb[0].mxu0 %v295
        %v1309 = vpop.f32.mrb[0].mxu0
        %v1310 = vadd.f32 0.0, %v1309
        %v1311 = vpop.f32.mrb[0].mxu0
        %1312 = vmatprep.mubr.f32.mxu0 0.0
        %1313 = vmatmul.mubr.f32.gmra.mrb[0].mxu0 %v298
        %v1314 = vpop.f32.mrb[0].mxu0
        %v1315 = vadd.f32 0.0, %v1314
        %v1316 = vpop.f32.mrb[0].mxu0
        %1317 = vmatprep.mubr.f32.mxu0 0.0
        %1318 = vmatmul.mubr.f32.gmra.mrb[0].mxu0 %v301
        %v1319 = vpop.f32.mrb[0].mxu0
        %v1320 = vpop.f32.mrb[0].mxu0
        %1321 = vmatprep.mubr.f32.mxu0 0.0
        %1322 = vmatmul.mubr.f32.gmra.mrb[0].mxu0 %v304
        %v1323 = vpop.f32.mrb[0].mxu0
        %v1324 = vadd.f32 0.0, %v1323
        %v1325 = vpop.f32.mrb[0].mxu0
        %1326 = vmatprep.mubr.f32.mxu0 0.0
        %1327 = vmatmul.mubr.f32.gmra.mrb[0].mxu0 %v307
        %v1328 = vpop.f32.mrb[0].mxu0
        %v1329 = vadd.f32 0.0, %v1328
        %v1330 = vpop.f32.mrb[0].mxu0
        %1331 = vmatprep.mubr.f32.mxu0 0.0
        %1332 = vmatmul.mubr.f32.gmra.mrb[0].mxu0 %v310
        %v1333 = vpop.f32.mrb[0].mxu0
        %v1334 = vpop.f32.mrb[0].mxu0
        %1335 = vmatprep.mubr.f32.mxu0 0.0
        %1336 = vmatmul.mubr.f32.gmra.mrb[0].mxu0 %v313
        %v1337 = vpop.f32.mrb[0].mxu0
        %v1338 = vadd.f32 0.0, %v1337
        %v1339 = vpop.f32.mrb[0].mxu0
        %1340 = vmatprep.mubr.f32.mxu0 0.0
        %1341 = vmatmul.mubr.f32.gmra.mrb[0].mxu0 %v316
        %v1342 = vpop.f32.mrb[0].mxu0
        %v1343 = vadd.f32 0.0, %v1342
        %v1344 = vpop.f32.mrb[0].mxu0
        %1345 = vmatprep.mubr.f32.mxu0 0.0
        %1346 = vmatmul.mubr.f32.gmra.mrb[0].mxu0 %v319
        %v1347 = vpop.f32.mrb[0].mxu0
        %v1348 = vpop.f32.mrb[0].mxu0
        %1349 = vmatprep.mubr.f32.mxu0 0.0
        %1350 = vmatmul.mubr.f32.gmra.mrb[0].mxu0 %v322
        %v1351 = vpop.f32.mrb[0].mxu0
        %v1352 = vadd.f32 0.0, %v1351
        %v1353 = vpop.f32.mrb[0].mxu0
        %1354 = vmatprep.mubr.f32.mxu0 0.0
        %1355 = vmatmul.mubr.f32.gmra.mrb[0].mxu0 %v325
        %v1356 = vpop.f32.mrb[0].mxu0
        %v1357 = vadd.f32 0.0, %v1356
        %v1358 = vpop.f32.mrb[0].mxu0
        %1359 = vmatprep.mubr.f32.mxu0 0.0
        %1360 = vmatmul.mubr.f32.gmra.mrb[0].mxu0 %v328
        %v1361 = vpop.f32.mrb[0].mxu0
        %v1362 = vpop.f32.mrb[0].mxu0
        %1363 = vmatprep.mubr.f32.mxu0 0.0
        %1364 = vmatmul.mubr.f32.gmra.mrb[0].mxu0 %v331
        %v1365 = vpop.f32.mrb[0].mxu0
        %v1366 = vadd.f32 0.0, %v1365
        %v1367 = vpop.f32.mrb[0].mxu0
        %1368 = vmatprep.mubr.f32.mxu0 0.0
        %1369 = vmatmul.mubr.f32.gmra.mrb[0].mxu0 %v334
        %v1370 = vpop.f32.mrb[0].mxu0
        %v1371 = vadd.f32 0.0, %v1370
        %v1372 = vpop.f32.mrb[0].mxu0
        %1373 = vmatprep.mubr.f32.mxu0 0.0
        %1374 = vmatmul.mubr.f32.gmra.mrb[0].mxu0 %v337
        %v1375 = vpop.f32.mrb[0].mxu0
        %v1376 = vpop.f32.mrb[0].mxu0
        %1377 = vmatprep.mubr.f32.mxu0 0.0
        %1378 = vmatmul.mubr.f32.gmra.mrb[0].mxu0 %v340
        %v1379 = vpop.f32.mrb[0].mxu0
        %v1380 = vadd.f32 0.0, %v1379
        %v1381 = vpop.f32.mrb[0].mxu0
        %1382 = vmatprep.mubr.f32.mxu0 0.0
        %1383 = vmatmul.mubr.f32.gmra.mrb[0].mxu0 %v343
        %v1384 = vpop.f32.mrb[0].mxu0
        %v1385 = vadd.f32 0.0, %v1384
        %v1386 = vpop.f32.mrb[0].mxu0
        %1387 = vmatprep.mubr.f32.mxu0 0.0
        %1388 = vmatmul.mubr.f32.gmra.mrb[0].mxu0 %v346
        %v1389 = vpop.f32.mrb[0].mxu0
        %v1390 = vpop.f32.mrb[0].mxu0
        %1391 = vmatprep.mubr.f32.mxu0 0.0
        %1392 = vmatmul.mubr.f32.gmra.mrb[0].mxu0 %v1218
        %v1393 = vpop.f32.mrb[0].mxu0
        %v1394 = vadd.f32 0.0, %v1393
        %v1395 = vpop.f32.mrb[0].mxu0
        %1396 = vmatprep.mubr.f32.mxu0 0.0
        %1397 = vmatmul.mubr.f32.gmra.mrb[0].mxu0 %v1221
        %v1398 = vpop.f32.mrb[0].mxu0
        %v1399 = vadd.f32 0.0, %v1398
        %v1400 = vpop.f32.mrb[0].mxu0
        %1401 = vmatprep.mubr.f32.mxu0 0.0
        %1402 = vmatmul.mubr.f32.gmra.mrb[0].mxu0 %v1224
        %v1403 = vpop.f32.mrb[0].mxu0
        %v1404 = vpop.f32.mrb[0].mxu0
        %1405 = vdwg.mxu0
        %v1406 = vld [vmem:[#allocation2] sm:$0xff]
        %v1407 = vld [vmem:[#allocation2 + $0x8] sm:$0xff]
        %v1408 = vld [vmem:[#allocation2 + $0x10] sm:$0xff]
        %v1409 = vld [vmem:[#allocation2 + $0x18] sm:$0xff]
        %v1410 = vld [vmem:[#allocation2 + $0x20] sm:$0xff]
        %v1411 = vld [vmem:[#allocation2 + $0x28] sm:$0xff]
        %v1412 = vld [vmem:[#allocation2 + $0x30] sm:$0xff]
        %v1413 = vld [vmem:[#allocation2 + $0x38] sm:$0xff]
        %v1414 = vld [vmem:[#allocation2 + $0x40] sm:$0xff]
        %v1415 = vld [vmem:[#allocation2 + $0x48] sm:$0xff]
        %v1416 = vld [vmem:[#allocation2 + $0x50] sm:$0xff]
        %v1417 = vld [vmem:[#allocation2 + $0x58] sm:$0xff]
        %v1418 = vld [vmem:[#allocation2 + $0x60] sm:$0xff]
        %v1419 = vld [vmem:[#allocation2 + $0x68] sm:$0xff]
        %v1420 = vld [vmem:[#allocation2 + $0x70] sm:$0xff]
        %v1421 = vld [vmem:[#allocation2 + $0x78] sm:$0xff]
        %v1422 = vadd.f32 %v1406, %v1296
        %v1423 = vadd.f32 %v1407, %v1301
        %v1424 = vadd.f32 %v1408, %v1310
        %v1425 = vadd.f32 %v1409, %v1315
        %v1426 = vadd.f32 %v1410, %v1324
        %v1427 = vadd.f32 %v1411, %v1329
        %v1428 = vadd.f32 %v1412, %v1338
        %v1429 = vadd.f32 %v1413, %v1343
        %v1430 = vadd.f32 %v1414, %v1352
        %v1431 = vadd.f32 %v1415, %v1357
        %v1432 = vadd.f32 %v1416, %v1366
        %v1433 = vadd.f32 %v1417, %v1371
        %v1434 = vadd.f32 %v1418, %v1380
        %v1435 = vadd.f32 %v1419, %v1385
        %v1436 = vadd.f32 %v1420, %v1394
        %v1437 = vadd.f32 %v1421, %v1399
        %1438 = vst [vmem:[#allocation2] sm:$0xff] %v1422
        %1439 = vst [vmem:[#allocation2 + $0x8] sm:$0xff] %v1423
        %1440 = vst [vmem:[#allocation2 + $0x10] sm:$0xff] %v1424
        %1441 = vst [vmem:[#allocation2 + $0x18] sm:$0xff] %v1425
        %1442 = vst [vmem:[#allocation2 + $0x20] sm:$0xff] %v1426
        %1443 = vst [vmem:[#allocation2 + $0x28] sm:$0xff] %v1427
        %1444 = vst [vmem:[#allocation2 + $0x30] sm:$0xff] %v1428
        %1445 = vst [vmem:[#allocation2 + $0x38] sm:$0xff] %v1429
        %1446 = vst [vmem:[#allocation2 + $0x40] sm:$0xff] %v1430
        %1447 = vst [vmem:[#allocation2 + $0x48] sm:$0xff] %v1431
        %1448 = vst [vmem:[#allocation2 + $0x50] sm:$0xff] %v1432
        %1449 = vst [vmem:[#allocation2 + $0x58] sm:$0xff] %v1433
        %1450 = vst [vmem:[#allocation2 + $0x60] sm:$0xff] %v1434
        %1451 = vst [vmem:[#allocation2 + $0x68] sm:$0xff] %v1435
        %1452 = vst [vmem:[#allocation2 + $0x70] sm:$0xff] %v1436
        %1453 = vst [vmem:[#allocation2 + $0x78] sm:$0xff] %v1437
        %s1454 = scalar_lea.vmem %s218, 16
        %v1455 = vld [vmem:[%s1454] sm:$0xf]
        %v1457 = vsel %vm348, %v1455, 0
        %1459 = vmatprep.subr.mxu0 0.0
        %1460 = vmatpush1.msra.mxu0 %v1457
        %1461 = vmatprep.subr.mxu0 0.0
        %1462 = vmatpush1.msra.mxu0 0.0
        %1463 = vmatprep.subr.mxu0 0.0
        %1464 = vmatpush1.msra.mxu0 0.0
        %1465 = vmatprep.subr.mxu0 0.0
        %1466 = vmatpush1.msra.mxu0 0.0
        %1467 = vmatprep.subr.mxu0 0.0
        %1468 = vmatpush1.msra.mxu0 0.0
        %1469 = vmatprep.subr.mxu0 0.0
        %1470 = vmatpush1.msra.mxu0 0.0
        %1471 = vmatprep.subr.mxu0 0.0
        %1472 = vmatpush1.msra.mxu0 0.0
        %1473 = vmatprep.subr.mxu0 0.0
        %1474 = vmatpush1.msra.mxu0 0.0
        %1475 = vmatprep.subr.mxu0 0.0
        %1476 = vmatpush1.msra.mxu0 0.0
        %1477 = vmatprep.subr.mxu0 0.0
        %1478 = vmatpush1.msra.mxu0 0.0
        %1479 = vmatprep.subr.mxu0 0.0
        %1480 = vmatpush1.msra.mxu0 0.0
        %1481 = vmatprep.subr.mxu0 0.0
        %1482 = vmatpush1.msra.mxu0 0.0
        %1483 = vmatprep.subr.mxu0 0.0
        %1484 = vmatpush1.msra.mxu0 0.0
        %1485 = vmatprep.subr.mxu0 0.0
        %1486 = vmatpush1.msra.mxu0 0.0
        %1487 = vmatprep.subr.mxu0 0.0
        %1488 = vmatpush1.msra.mxu0 0.0
        %1489 = vmatprep.subr.mxu0 0.0
        %1490 = vmatpush1.msra.mxu0 0.0
        %1491 = vmatprep.subr.mxu0 0.0
        %1492 = vmatpush1.msra.mxu0 0.0
        %1493 = vmatprep.subr.mxu0 0.0
        %1494 = vmatpush1.msra.mxu0 0.0
        %1495 = vmatprep.subr.mxu0 0.0
        %1496 = vmatpush1.msra.mxu0 0.0
        %1497 = vmatprep.subr.mxu0 0.0
        %1498 = vmatpush1.msra.mxu0 0.0
        %1499 = vmatprep.subr.mxu0 0.0
        %1500 = vmatpush1.msra.mxu0 0.0
        %1501 = vmatprep.subr.mxu0 0.0
        %1502 = vmatpush1.msra.mxu0 0.0
        %1503 = vmatprep.subr.mxu0 0.0
        %1504 = vmatpush1.msra.mxu0 0.0
        %1505 = vmatprep.subr.mxu0 0.0
        %1506 = vmatpush1.msra.mxu0 0.0
        %1507 = vmatprep.subr.mxu0 0.0
        %1508 = vmatpush1.msra.mxu0 0.0
        %1509 = vmatprep.subr.mxu0 0.0
        %1510 = vmatpush1.msra.mxu0 0.0
        %1511 = vmatprep.subr.mxu0 0.0
        %1512 = vmatpush1.msra.mxu0 0.0
        %1513 = vmatprep.subr.mxu0 0.0
        %1514 = vmatpush1.msra.mxu0 0.0
        %1515 = vmatprep.subr.mxu0 0.0
        %1516 = vmatpush1.msra.mxu0 0.0
        %1517 = vmatprep.subr.mxu0 0.0
        %1518 = vmatpush1.msra.mxu0 0.0
        %1519 = vmatprep.subr.mxu0 0.0
        %1520 = vmatpush1.msra.mxu0 0.0
        %1521 = vmatprep.subr.mxu0 0.0
        %1522 = vmatpush1.msra.mxu0 0.0
        %1523 = vmatprep.mubr.f32.mxu0 0.0
        %1524 = vmatmul.mubr.f32.gmra.mrb[0].mxu0 %v286
        %v1525 = vpop.f32.mrb[0].mxu0
        %v1526 = vadd.f32 0.0, %v1525
        %v1527 = vpop.f32.mrb[0].mxu0
        %1528 = vmatprep.mubr.f32.mxu0 0.0
        %1529 = vmatmul.mubr.f32.gmra.mrb[0].mxu0 %v289
        %v1530 = vpop.f32.mrb[0].mxu0
        %v1531 = vadd.f32 0.0, %v1530
        %v1532 = vpop.f32.mrb[0].mxu0
        %1533 = vmatprep.mubr.f32.mxu0 0.0
        %1534 = vmatmul.mubr.f32.gmra.mrb[0].mxu0 %v292
        %v1535 = vpop.f32.mrb[0].mxu0
        %v1536 = vadd.f32 0.0, %v1535
        %v1537 = vpop.f32.mrb[0].mxu0
        %1538 = vmatprep.mubr.f32.mxu0 0.0
        %1539 = vmatmul.mubr.f32.gmra.mrb[0].mxu0 %v295
        %v1540 = vpop.f32.mrb[0].mxu0
        %v1541 = vadd.f32 0.0, %v1540
        %v1542 = vpop.f32.mrb[0].mxu0
        %1543 = vmatprep.mubr.f32.mxu0 0.0
        %1544 = vmatmul.mubr.f32.gmra.mrb[0].mxu0 %v298
        %v1545 = vpop.f32.mrb[0].mxu0
        %v1546 = vadd.f32 0.0, %v1545
        %v1547 = vpop.f32.mrb[0].mxu0
        %1548 = vmatprep.mubr.f32.mxu0 0.0
        %1549 = vmatmul.mubr.f32.gmra.mrb[0].mxu0 %v301
        %v1550 = vpop.f32.mrb[0].mxu0
        %v1551 = vadd.f32 0.0, %v1550
        %v1552 = vpop.f32.mrb[0].mxu0
        %1553 = vmatprep.mubr.f32.mxu0 0.0
        %1554 = vmatmul.mubr.f32.gmra.mrb[0].mxu0 %v304
        %v1555 = vpop.f32.mrb[0].mxu0
        %v1556 = vadd.f32 0.0, %v1555
        %v1557 = vpop.f32.mrb[0].mxu0
        %1558 = vmatprep.mubr.f32.mxu0 0.0
        %1559 = vmatmul.mubr.f32.gmra.mrb[0].mxu0 %v307
        %v1560 = vpop.f32.mrb[0].mxu0
        %v1561 = vadd.f32 0.0, %v1560
        %v1562 = vpop.f32.mrb[0].mxu0
        %1563 = vmatprep.mubr.f32.mxu0 0.0
        %1564 = vmatmul.mubr.f32.gmra.mrb[0].mxu0 %v310
        %v1565 = vpop.f32.mrb[0].mxu0
        %v1566 = vadd.f32 0.0, %v1565
        %v1567 = vpop.f32.mrb[0].mxu0
        %1568 = vmatprep.mubr.f32.mxu0 0.0
        %1569 = vmatmul.mubr.f32.gmra.mrb[0].mxu0 %v313
        %v1570 = vpop.f32.mrb[0].mxu0
        %v1571 = vadd.f32 0.0, %v1570
        %v1572 = vpop.f32.mrb[0].mxu0
        %1573 = vmatprep.mubr.f32.mxu0 0.0
        %1574 = vmatmul.mubr.f32.gmra.mrb[0].mxu0 %v316
        %v1575 = vpop.f32.mrb[0].mxu0
        %v1576 = vadd.f32 0.0, %v1575
        %v1577 = vpop.f32.mrb[0].mxu0
        %1578 = vmatprep.mubr.f32.mxu0 0.0
        %1579 = vmatmul.mubr.f32.gmra.mrb[0].mxu0 %v319
        %v1580 = vpop.f32.mrb[0].mxu0
        %v1581 = vadd.f32 0.0, %v1580
        %v1582 = vpop.f32.mrb[0].mxu0
        %1583 = vmatprep.mubr.f32.mxu0 0.0
        %1584 = vmatmul.mubr.f32.gmra.mrb[0].mxu0 %v322
        %v1585 = vpop.f32.mrb[0].mxu0
        %v1586 = vadd.f32 0.0, %v1585
        %v1587 = vpop.f32.mrb[0].mxu0
        %1588 = vmatprep.mubr.f32.mxu0 0.0
        %1589 = vmatmul.mubr.f32.gmra.mrb[0].mxu0 %v325
        %v1590 = vpop.f32.mrb[0].mxu0
        %v1591 = vadd.f32 0.0, %v1590
        %v1592 = vpop.f32.mrb[0].mxu0
        %1593 = vmatprep.mubr.f32.mxu0 0.0
        %1594 = vmatmul.mubr.f32.gmra.mrb[0].mxu0 %v328
        %v1595 = vpop.f32.mrb[0].mxu0
        %v1596 = vadd.f32 0.0, %v1595
        %v1597 = vpop.f32.mrb[0].mxu0
        %1598 = vmatprep.mubr.f32.mxu0 0.0
        %1599 = vmatmul.mubr.f32.gmra.mrb[0].mxu0 %v331
        %v1600 = vpop.f32.mrb[0].mxu0
        %v1601 = vadd.f32 0.0, %v1600
        %v1602 = vpop.f32.mrb[0].mxu0
        %1603 = vmatprep.mubr.f32.mxu0 0.0
        %1604 = vmatmul.mubr.f32.gmra.mrb[0].mxu0 %v334
        %v1605 = vpop.f32.mrb[0].mxu0
        %v1606 = vadd.f32 0.0, %v1605
        %v1607 = vpop.f32.mrb[0].mxu0
        %1608 = vmatprep.mubr.f32.mxu0 0.0
        %1609 = vmatmul.mubr.f32.gmra.mrb[0].mxu0 %v337
        %v1610 = vpop.f32.mrb[0].mxu0
        %v1611 = vadd.f32 0.0, %v1610
        %v1612 = vpop.f32.mrb[0].mxu0
        %1613 = vmatprep.mubr.f32.mxu0 0.0
        %1614 = vmatmul.mubr.f32.gmra.mrb[0].mxu0 %v340
        %v1615 = vpop.f32.mrb[0].mxu0
        %v1616 = vadd.f32 0.0, %v1615
        %v1617 = vpop.f32.mrb[0].mxu0
        %1618 = vmatprep.mubr.f32.mxu0 0.0
        %1619 = vmatmul.mubr.f32.gmra.mrb[0].mxu0 %v343
        %v1620 = vpop.f32.mrb[0].mxu0
        %v1621 = vadd.f32 0.0, %v1620
        %v1622 = vpop.f32.mrb[0].mxu0
        %1623 = vmatprep.mubr.f32.mxu0 0.0
        %1624 = vmatmul.mubr.f32.gmra.mrb[0].mxu0 %v346
        %v1625 = vpop.f32.mrb[0].mxu0
        %v1626 = vadd.f32 0.0, %v1625
        %v1627 = vpop.f32.mrb[0].mxu0
        %1628 = vmatprep.mubr.f32.mxu0 0.0
        %1629 = vmatmul.mubr.f32.gmra.mrb[0].mxu0 %v1218
        %v1630 = vpop.f32.mrb[0].mxu0
        %v1631 = vadd.f32 0.0, %v1630
        %v1632 = vpop.f32.mrb[0].mxu0
        %1633 = vmatprep.mubr.f32.mxu0 0.0
        %1634 = vmatmul.mubr.f32.gmra.mrb[0].mxu0 %v1221
        %v1635 = vpop.f32.mrb[0].mxu0
        %v1636 = vadd.f32 0.0, %v1635
        %v1637 = vpop.f32.mrb[0].mxu0
        %1638 = vmatprep.mubr.f32.mxu0 0.0
        %1639 = vmatmul.mubr.f32.gmra.mrb[0].mxu0 %v1224
        %v1640 = vpop.f32.mrb[0].mxu0
        %v1641 = vadd.f32 0.0, %v1640
        %v1642 = vpop.f32.mrb[0].mxu0
        %1643 = vdwg.mxu0
        %v1644 = vld [vmem:[#allocation2] sm:$0xff]
        %v1645 = vld [vmem:[#allocation2 + $0x8] sm:$0xff]
        %v1646 = vld [vmem:[#allocation2 + $0x10] sm:$0xff]
        %v1647 = vld [vmem:[#allocation2 + $0x18] sm:$0xff]
        %v1648 = vld [vmem:[#allocation2 + $0x20] sm:$0xff]
        %v1649 = vld [vmem:[#allocation2 + $0x28] sm:$0xff]
        %v1650 = vld [vmem:[#allocation2 + $0x30] sm:$0xff]
        %v1651 = vld [vmem:[#allocation2 + $0x38] sm:$0xff]
        %v1652 = vld [vmem:[#allocation2 + $0x40] sm:$0xff]
        %v1653 = vld [vmem:[#allocation2 + $0x48] sm:$0xff]
        %v1654 = vld [vmem:[#allocation2 + $0x50] sm:$0xff]
        %v1655 = vld [vmem:[#allocation2 + $0x58] sm:$0xff]
        %v1656 = vld [vmem:[#allocation2 + $0x60] sm:$0xff]
        %v1657 = vld [vmem:[#allocation2 + $0x68] sm:$0xff]
        %v1658 = vld [vmem:[#allocation2 + $0x70] sm:$0xff]
        %v1659 = vld [vmem:[#allocation2 + $0x78] sm:$0xff]
        %v1684 = vrot.slane %v1526, 1
        %v1685 = vrot.slane %v1531, 1
        %v1686 = vsel %vm807, %v1684, %v1685
        %v1687 = vrot.slane %v1536, 1
        %v1688 = vsel %vm807, %v1685, %v1687
        %v1689 = vrot.slane %v1541, 1
        %v1690 = vrot.slane %v1546, 1
        %v1691 = vsel %vm807, %v1689, %v1690
        %v1692 = vrot.slane %v1551, 1
        %v1693 = vsel %vm807, %v1690, %v1692
        %v1694 = vrot.slane %v1556, 1
        %v1695 = vrot.slane %v1561, 1
        %v1696 = vsel %vm807, %v1694, %v1695
        %v1697 = vrot.slane %v1566, 1
        %v1698 = vsel %vm807, %v1695, %v1697
        %v1699 = vrot.slane %v1571, 1
        %v1700 = vrot.slane %v1576, 1
        %v1701 = vsel %vm807, %v1699, %v1700
        %v1702 = vrot.slane %v1581, 1
        %v1703 = vsel %vm807, %v1700, %v1702
        %v1704 = vrot.slane %v1586, 1
        %v1705 = vrot.slane %v1591, 1
        %v1706 = vsel %vm807, %v1704, %v1705
        %v1707 = vrot.slane %v1596, 1
        %v1708 = vsel %vm807, %v1705, %v1707
        %v1709 = vrot.slane %v1601, 1
        %v1710 = vrot.slane %v1606, 1
        %v1711 = vsel %vm807, %v1709, %v1710
        %v1712 = vrot.slane %v1611, 1
        %v1713 = vsel %vm807, %v1710, %v1712
        %v1714 = vrot.slane %v1616, 1
        %v1715 = vrot.slane %v1621, 1
        %v1716 = vsel %vm807, %v1714, %v1715
        %v1717 = vrot.slane %v1626, 1
        %v1718 = vsel %vm807, %v1715, %v1717
        %v1719 = vrot.slane %v1631, 1
        %v1720 = vrot.slane %v1636, 1
        %v1721 = vsel %vm807, %v1719, %v1720
        %v1722 = vrot.slane %v1641, 1
        %v1723 = vsel %vm807, %v1720, %v1722
        %v1740 = vadd.f32 %v1644, %v1686
        %v1741 = vadd.f32 %v1645, %v1688
        %v1742 = vadd.f32 %v1646, %v1691
        %v1743 = vadd.f32 %v1647, %v1693
        %v1744 = vadd.f32 %v1648, %v1696
        %v1745 = vadd.f32 %v1649, %v1698
        %v1746 = vadd.f32 %v1650, %v1701
        %v1747 = vadd.f32 %v1651, %v1703
        %v1748 = vadd.f32 %v1652, %v1706
        %v1749 = vadd.f32 %v1653, %v1708
        %v1750 = vadd.f32 %v1654, %v1711
        %v1751 = vadd.f32 %v1655, %v1713
        %v1752 = vadd.f32 %v1656, %v1716
        %v1753 = vadd.f32 %v1657, %v1718
        %v1754 = vadd.f32 %v1658, %v1721
        %v1755 = vadd.f32 %v1659, %v1723
        %1756 = vst [vmem:[#allocation2] sm:$0xff] %v1740
        %1757 = vst [vmem:[#allocation2 + $0x8] sm:$0xff] %v1741
        %1758 = vst [vmem:[#allocation2 + $0x10] sm:$0xff] %v1742
        %1759 = vst [vmem:[#allocation2 + $0x18] sm:$0xff] %v1743
        %1760 = vst [vmem:[#allocation2 + $0x20] sm:$0xff] %v1744
        %1761 = vst [vmem:[#allocation2 + $0x28] sm:$0xff] %v1745
        %1762 = vst [vmem:[#allocation2 + $0x30] sm:$0xff] %v1746
        %1763 = vst [vmem:[#allocation2 + $0x38] sm:$0xff] %v1747
        %1764 = vst [vmem:[#allocation2 + $0x40] sm:$0xff] %v1748
        %1765 = vst [vmem:[#allocation2 + $0x48] sm:$0xff] %v1749
        %1766 = vst [vmem:[#allocation2 + $0x50] sm:$0xff] %v1750
        %1767 = vst [vmem:[#allocation2 + $0x58] sm:$0xff] %v1751
        %1768 = vst [vmem:[#allocation2 + $0x60] sm:$0xff] %v1752
        %1769 = vst [vmem:[#allocation2 + $0x68] sm:$0xff] %v1753
        %1770 = vst [vmem:[#allocation2 + $0x70] sm:$0xff] %v1754
        %1771 = vst [vmem:[#allocation2 + $0x78] sm:$0xff] %v1755
        %s1772 = scalar_lea.vmem %s218, 20
        %v1773 = vld [vmem:[%s1772] sm:$0xf]
        %v1775 = vsel %vm348, %v1773, 0
        %1777 = vmatprep.subr.mxu0 0.0
        %1778 = vmatpush1.msra.mxu0 %v1775
        %1779 = vmatprep.subr.mxu0 0.0
        %1780 = vmatpush1.msra.mxu0 0.0
        %1781 = vmatprep.subr.mxu0 0.0
        %1782 = vmatpush1.msra.mxu0 0.0
        %1783 = vmatprep.subr.mxu0 0.0
        %1784 = vmatpush1.msra.mxu0 0.0
        %1785 = vmatprep.subr.mxu0 0.0
        %1786 = vmatpush1.msra.mxu0 0.0
        %1787 = vmatprep.subr.mxu0 0.0
        %1788 = vmatpush1.msra.mxu0 0.0
        %1789 = vmatprep.subr.mxu0 0.0
        %1790 = vmatpush1.msra.mxu0 0.0
        %1791 = vmatprep.subr.mxu0 0.0
        %1792 = vmatpush1.msra.mxu0 0.0
        %1793 = vmatprep.subr.mxu0 0.0
        %1794 = vmatpush1.msra.mxu0 0.0
        %1795 = vmatprep.subr.mxu0 0.0
        %1796 = vmatpush1.msra.mxu0 0.0
        %1797 = vmatprep.subr.mxu0 0.0
        %1798 = vmatpush1.msra.mxu0 0.0
        %1799 = vmatprep.subr.mxu0 0.0
        %1800 = vmatpush1.msra.mxu0 0.0
        %1801 = vmatprep.subr.mxu0 0.0
        %1802 = vmatpush1.msra.mxu0 0.0
        %1803 = vmatprep.subr.mxu0 0.0
        %1804 = vmatpush1.msra.mxu0 0.0
        %1805 = vmatprep.subr.mxu0 0.0
        %1806 = vmatpush1.msra.mxu0 0.0
        %1807 = vmatprep.subr.mxu0 0.0
        %1808 = vmatpush1.msra.mxu0 0.0
        %1809 = vmatprep.subr.mxu0 0.0
        %1810 = vmatpush1.msra.mxu0 0.0
        %1811 = vmatprep.subr.mxu0 0.0
        %1812 = vmatpush1.msra.mxu0 0.0
        %1813 = vmatprep.subr.mxu0 0.0
        %1814 = vmatpush1.msra.mxu0 0.0
        %1815 = vmatprep.subr.mxu0 0.0
        %1816 = vmatpush1.msra.mxu0 0.0
        %1817 = vmatprep.subr.mxu0 0.0
        %1818 = vmatpush1.msra.mxu0 0.0
        %1819 = vmatprep.subr.mxu0 0.0
        %1820 = vmatpush1.msra.mxu0 0.0
        %1821 = vmatprep.subr.mxu0 0.0
        %1822 = vmatpush1.msra.mxu0 0.0
        %1823 = vmatprep.subr.mxu0 0.0
        %1824 = vmatpush1.msra.mxu0 0.0
        %1825 = vmatprep.subr.mxu0 0.0
        %1826 = vmatpush1.msra.mxu0 0.0
        %1827 = vmatprep.subr.mxu0 0.0
        %1828 = vmatpush1.msra.mxu0 0.0
        %1829 = vmatprep.subr.mxu0 0.0
        %1830 = vmatpush1.msra.mxu0 0.0
        %1831 = vmatprep.subr.mxu0 0.0
        %1832 = vmatpush1.msra.mxu0 0.0
        %1833 = vmatprep.subr.mxu0 0.0
        %1834 = vmatpush1.msra.mxu0 0.0
        %1835 = vmatprep.subr.mxu0 0.0
        %1836 = vmatpush1.msra.mxu0 0.0
        %1837 = vmatprep.subr.mxu0 0.0
        %1838 = vmatpush1.msra.mxu0 0.0
        %1839 = vmatprep.subr.mxu0 0.0
        %1840 = vmatpush1.msra.mxu0 0.0
        %1841 = vmatprep.mubr.f32.mxu0 0.0
        %1842 = vmatmul.mubr.f32.gmra.mrb[0].mxu0 %v286
        %v1843 = vpop.f32.mrb[0].mxu0
        %v1844 = vadd.f32 0.0, %v1843
        %v1845 = vpop.f32.mrb[0].mxu0
        %1846 = vmatprep.mubr.f32.mxu0 0.0
        %1847 = vmatmul.mubr.f32.gmra.mrb[0].mxu0 %v289
        %v1848 = vpop.f32.mrb[0].mxu0
        %v1849 = vadd.f32 0.0, %v1848
        %v1850 = vpop.f32.mrb[0].mxu0
        %1851 = vmatprep.mubr.f32.mxu0 0.0
        %1852 = vmatmul.mubr.f32.gmra.mrb[0].mxu0 %v292
        %v1853 = vpop.f32.mrb[0].mxu0
        %v1854 = vadd.f32 0.0, %v1853
        %v1855 = vpop.f32.mrb[0].mxu0
        %1856 = vmatprep.mubr.f32.mxu0 0.0
        %1857 = vmatmul.mubr.f32.gmra.mrb[0].mxu0 %v295
        %v1858 = vpop.f32.mrb[0].mxu0
        %v1859 = vadd.f32 0.0, %v1858
        %v1860 = vpop.f32.mrb[0].mxu0
        %1861 = vmatprep.mubr.f32.mxu0 0.0
        %1862 = vmatmul.mubr.f32.gmra.mrb[0].mxu0 %v298
        %v1863 = vpop.f32.mrb[0].mxu0
        %v1864 = vadd.f32 0.0, %v1863
        %v1865 = vpop.f32.mrb[0].mxu0
        %1866 = vmatprep.mubr.f32.mxu0 0.0
        %1867 = vmatmul.mubr.f32.gmra.mrb[0].mxu0 %v301
        %v1868 = vpop.f32.mrb[0].mxu0
        %v1869 = vadd.f32 0.0, %v1868
        %v1870 = vpop.f32.mrb[0].mxu0
        %1871 = vmatprep.mubr.f32.mxu0 0.0
        %1872 = vmatmul.mubr.f32.gmra.mrb[0].mxu0 %v304
        %v1873 = vpop.f32.mrb[0].mxu0
        %v1874 = vadd.f32 0.0, %v1873
        %v1875 = vpop.f32.mrb[0].mxu0
        %1876 = vmatprep.mubr.f32.mxu0 0.0
        %1877 = vmatmul.mubr.f32.gmra.mrb[0].mxu0 %v307
        %v1878 = vpop.f32.mrb[0].mxu0
        %v1879 = vadd.f32 0.0, %v1878
        %v1880 = vpop.f32.mrb[0].mxu0
        %1881 = vmatprep.mubr.f32.mxu0 0.0
        %1882 = vmatmul.mubr.f32.gmra.mrb[0].mxu0 %v310
        %v1883 = vpop.f32.mrb[0].mxu0
        %v1884 = vadd.f32 0.0, %v1883
        %v1885 = vpop.f32.mrb[0].mxu0
        %1886 = vmatprep.mubr.f32.mxu0 0.0
        %1887 = vmatmul.mubr.f32.gmra.mrb[0].mxu0 %v313
        %v1888 = vpop.f32.mrb[0].mxu0
        %v1889 = vadd.f32 0.0, %v1888
        %v1890 = vpop.f32.mrb[0].mxu0
        %1891 = vmatprep.mubr.f32.mxu0 0.0
        %1892 = vmatmul.mubr.f32.gmra.mrb[0].mxu0 %v316
        %v1893 = vpop.f32.mrb[0].mxu0
        %v1894 = vadd.f32 0.0, %v1893
        %v1895 = vpop.f32.mrb[0].mxu0
        %1896 = vmatprep.mubr.f32.mxu0 0.0
        %1897 = vmatmul.mubr.f32.gmra.mrb[0].mxu0 %v319
        %v1898 = vpop.f32.mrb[0].mxu0
        %v1899 = vadd.f32 0.0, %v1898
        %v1900 = vpop.f32.mrb[0].mxu0
        %1901 = vmatprep.mubr.f32.mxu0 0.0
        %1902 = vmatmul.mubr.f32.gmra.mrb[0].mxu0 %v322
        %v1903 = vpop.f32.mrb[0].mxu0
        %v1904 = vadd.f32 0.0, %v1903
        %v1905 = vpop.f32.mrb[0].mxu0
        %1906 = vmatprep.mubr.f32.mxu0 0.0
        %1907 = vmatmul.mubr.f32.gmra.mrb[0].mxu0 %v325
        %v1908 = vpop.f32.mrb[0].mxu0
        %v1909 = vadd.f32 0.0, %v1908
        %v1910 = vpop.f32.mrb[0].mxu0
        %1911 = vmatprep.mubr.f32.mxu0 0.0
        %1912 = vmatmul.mubr.f32.gmra.mrb[0].mxu0 %v328
        %v1913 = vpop.f32.mrb[0].mxu0
        %v1914 = vadd.f32 0.0, %v1913
        %v1915 = vpop.f32.mrb[0].mxu0
        %1916 = vmatprep.mubr.f32.mxu0 0.0
        %1917 = vmatmul.mubr.f32.gmra.mrb[0].mxu0 %v331
        %v1918 = vpop.f32.mrb[0].mxu0
        %v1919 = vadd.f32 0.0, %v1918
        %v1920 = vpop.f32.mrb[0].mxu0
        %1921 = vmatprep.mubr.f32.mxu0 0.0
        %1922 = vmatmul.mubr.f32.gmra.mrb[0].mxu0 %v334
        %v1923 = vpop.f32.mrb[0].mxu0
        %v1924 = vadd.f32 0.0, %v1923
        %v1925 = vpop.f32.mrb[0].mxu0
        %1926 = vmatprep.mubr.f32.mxu0 0.0
        %1927 = vmatmul.mubr.f32.gmra.mrb[0].mxu0 %v337
        %v1928 = vpop.f32.mrb[0].mxu0
        %v1929 = vadd.f32 0.0, %v1928
        %v1930 = vpop.f32.mrb[0].mxu0
        %1931 = vmatprep.mubr.f32.mxu0 0.0
        %1932 = vmatmul.mubr.f32.gmra.mrb[0].mxu0 %v340
        %v1933 = vpop.f32.mrb[0].mxu0
        %v1934 = vadd.f32 0.0, %v1933
        %v1935 = vpop.f32.mrb[0].mxu0
        %1936 = vmatprep.mubr.f32.mxu0 0.0
        %1937 = vmatmul.mubr.f32.gmra.mrb[0].mxu0 %v343
        %v1938 = vpop.f32.mrb[0].mxu0
        %v1939 = vadd.f32 0.0, %v1938
        %v1940 = vpop.f32.mrb[0].mxu0
        %1941 = vmatprep.mubr.f32.mxu0 0.0
        %1942 = vmatmul.mubr.f32.gmra.mrb[0].mxu0 %v346
        %v1943 = vpop.f32.mrb[0].mxu0
        %v1944 = vadd.f32 0.0, %v1943
        %v1945 = vpop.f32.mrb[0].mxu0
        %1946 = vmatprep.mubr.f32.mxu0 0.0
        %1947 = vmatmul.mubr.f32.gmra.mrb[0].mxu0 %v1218
        %v1948 = vpop.f32.mrb[0].mxu0
        %v1949 = vadd.f32 0.0, %v1948
        %v1950 = vpop.f32.mrb[0].mxu0
        %1951 = vmatprep.mubr.f32.mxu0 0.0
        %1952 = vmatmul.mubr.f32.gmra.mrb[0].mxu0 %v1221
        %v1953 = vpop.f32.mrb[0].mxu0
        %v1954 = vadd.f32 0.0, %v1953
        %v1955 = vpop.f32.mrb[0].mxu0
        %1956 = vmatprep.mubr.f32.mxu0 0.0
        %1957 = vmatmul.mubr.f32.gmra.mrb[0].mxu0 %v1224
        %v1958 = vpop.f32.mrb[0].mxu0
        %v1959 = vadd.f32 0.0, %v1958
        %v1960 = vpop.f32.mrb[0].mxu0
        %1961 = vdwg.mxu0
        %v1962 = vld [vmem:[#allocation2] sm:$0xff]
        %v1963 = vld [vmem:[#allocation2 + $0x8] sm:$0xff]
        %v1964 = vld [vmem:[#allocation2 + $0x10] sm:$0xff]
        %v1965 = vld [vmem:[#allocation2 + $0x18] sm:$0xff]
        %v1966 = vld [vmem:[#allocation2 + $0x20] sm:$0xff]
        %v1967 = vld [vmem:[#allocation2 + $0x28] sm:$0xff]
        %v1968 = vld [vmem:[#allocation2 + $0x30] sm:$0xff]
        %v1969 = vld [vmem:[#allocation2 + $0x38] sm:$0xff]
        %v1970 = vld [vmem:[#allocation2 + $0x40] sm:$0xff]
        %v1971 = vld [vmem:[#allocation2 + $0x48] sm:$0xff]
        %v1972 = vld [vmem:[#allocation2 + $0x50] sm:$0xff]
        %v1973 = vld [vmem:[#allocation2 + $0x58] sm:$0xff]
        %v1974 = vld [vmem:[#allocation2 + $0x60] sm:$0xff]
        %v1975 = vld [vmem:[#allocation2 + $0x68] sm:$0xff]
        %v1976 = vld [vmem:[#allocation2 + $0x70] sm:$0xff]
        %v1977 = vld [vmem:[#allocation2 + $0x78] sm:$0xff]
        %v2002 = vrot.slane %v1844, 2
        %v2003 = vrot.slane %v1849, 2
        %v2004 = vsel %vm1126, %v2002, %v2003
        %v2005 = vrot.slane %v1854, 2
        %v2006 = vsel %vm1126, %v2003, %v2005
        %v2007 = vrot.slane %v1859, 2
        %v2008 = vrot.slane %v1864, 2
        %v2009 = vsel %vm1126, %v2007, %v2008
        %v2010 = vrot.slane %v1869, 2
        %v2011 = vsel %vm1126, %v2008, %v2010
        %v2012 = vrot.slane %v1874, 2
        %v2013 = vrot.slane %v1879, 2
        %v2014 = vsel %vm1126, %v2012, %v2013
        %v2015 = vrot.slane %v1884, 2
        %v2016 = vsel %vm1126, %v2013, %v2015
        %v2017 = vrot.slane %v1889, 2
        %v2018 = vrot.slane %v1894, 2
        %v2019 = vsel %vm1126, %v2017, %v2018
        %v2020 = vrot.slane %v1899, 2
        %v2021 = vsel %vm1126, %v2018, %v2020
        %v2022 = vrot.slane %v1904, 2
        %v2023 = vrot.slane %v1909, 2
        %v2024 = vsel %vm1126, %v2022, %v2023
        %v2025 = vrot.slane %v1914, 2
        %v2026 = vsel %vm1126, %v2023, %v2025
        %v2027 = vrot.slane %v1919, 2
        %v2028 = vrot.slane %v1924, 2
        %v2029 = vsel %vm1126, %v2027, %v2028
        %v2030 = vrot.slane %v1929, 2
        %v2031 = vsel %vm1126, %v2028, %v2030
        %v2032 = vrot.slane %v1934, 2
        %v2033 = vrot.slane %v1939, 2
        %v2034 = vsel %vm1126, %v2032, %v2033
        %v2035 = vrot.slane %v1944, 2
        %v2036 = vsel %vm1126, %v2033, %v2035
        %v2037 = vrot.slane %v1949, 2
        %v2038 = vrot.slane %v1954, 2
        %v2039 = vsel %vm1126, %v2037, %v2038
        %v2040 = vrot.slane %v1959, 2
        %v2041 = vsel %vm1126, %v2038, %v2040
        %v2058 = vadd.f32 %v1962, %v2004
        %v2059 = vadd.f32 %v1963, %v2006
        %v2060 = vadd.f32 %v1964, %v2009
        %v2061 = vadd.f32 %v1965, %v2011
        %v2062 = vadd.f32 %v1966, %v2014
        %v2063 = vadd.f32 %v1967, %v2016
        %v2064 = vadd.f32 %v1968, %v2019
        %v2065 = vadd.f32 %v1969, %v2021
        %v2066 = vadd.f32 %v1970, %v2024
        %v2067 = vadd.f32 %v1971, %v2026
        %v2068 = vadd.f32 %v1972, %v2029
        %v2069 = vadd.f32 %v1973, %v2031
        %v2070 = vadd.f32 %v1974, %v2034
        %v2071 = vadd.f32 %v1975, %v2036
        %v2072 = vadd.f32 %v1976, %v2039
        %v2073 = vadd.f32 %v1977, %v2041
        %2074 = vst [vmem:[#allocation2] sm:$0xff] %v2058
        %2075 = vst [vmem:[#allocation2 + $0x8] sm:$0xff] %v2059
        %2076 = vst [vmem:[#allocation2 + $0x10] sm:$0xff] %v2060
        %2077 = vst [vmem:[#allocation2 + $0x18] sm:$0xff] %v2061
        %2078 = vst [vmem:[#allocation2 + $0x20] sm:$0xff] %v2062
        %2079 = vst [vmem:[#allocation2 + $0x28] sm:$0xff] %v2063
        %2080 = vst [vmem:[#allocation2 + $0x30] sm:$0xff] %v2064
        %2081 = vst [vmem:[#allocation2 + $0x38] sm:$0xff] %v2065
        %2082 = vst [vmem:[#allocation2 + $0x40] sm:$0xff] %v2066
        %2083 = vst [vmem:[#allocation2 + $0x48] sm:$0xff] %v2067
        %2084 = vst [vmem:[#allocation2 + $0x50] sm:$0xff] %v2068
        %2085 = vst [vmem:[#allocation2 + $0x58] sm:$0xff] %v2069
        %2086 = vst [vmem:[#allocation2 + $0x60] sm:$0xff] %v2070
        %2087 = vst [vmem:[#allocation2 + $0x68] sm:$0xff] %v2071
        %2088 = vst [vmem:[#allocation2 + $0x70] sm:$0xff] %v2072
        %2089 = vst [vmem:[#allocation2 + $0x78] sm:$0xff] %v2073
        %s2090 = scalar_lea.vmem %s218, 24
        %v2091 = vld [vmem:[%s2090] sm:$0xf]
        %v2093 = vsel %vm275, %v248, 0
        %v2096 = vsel %vm275, %v249, 0
        %v2099 = vsel %vm275, %v250, 0
        %v2102 = vsel %vm348, %v2091, 0
        %2104 = vmatprep.subr.mxu0 0.0
        %2105 = vmatpush1.msra.mxu0 %v2102
        %2106 = vmatprep.subr.mxu0 0.0
        %2107 = vmatpush1.msra.mxu0 0.0
        %2108 = vmatprep.subr.mxu0 0.0
        %2109 = vmatpush1.msra.mxu0 0.0
        %2110 = vmatprep.subr.mxu0 0.0
        %2111 = vmatpush1.msra.mxu0 0.0
        %2112 = vmatprep.subr.mxu0 0.0
        %2113 = vmatpush1.msra.mxu0 0.0
        %2114 = vmatprep.subr.mxu0 0.0
        %2115 = vmatpush1.msra.mxu0 0.0
        %2116 = vmatprep.subr.mxu0 0.0
        %2117 = vmatpush1.msra.mxu0 0.0
        %2118 = vmatprep.subr.mxu0 0.0
        %2119 = vmatpush1.msra.mxu0 0.0
        %2120 = vmatprep.subr.mxu0 0.0
        %2121 = vmatpush1.msra.mxu0 0.0
        %2122 = vmatprep.subr.mxu0 0.0
        %2123 = vmatpush1.msra.mxu0 0.0
        %2124 = vmatprep.subr.mxu0 0.0
        %2125 = vmatpush1.msra.mxu0 0.0
        %2126 = vmatprep.subr.mxu0 0.0
        %2127 = vmatpush1.msra.mxu0 0.0
        %2128 = vmatprep.subr.mxu0 0.0
        %2129 = vmatpush1.msra.mxu0 0.0
        %2130 = vmatprep.subr.mxu0 0.0
        %2131 = vmatpush1.msra.mxu0 0.0
        %2132 = vmatprep.subr.mxu0 0.0
        %2133 = vmatpush1.msra.mxu0 0.0
        %2134 = vmatprep.subr.mxu0 0.0
        %2135 = vmatpush1.msra.mxu0 0.0
        %2136 = vmatprep.subr.mxu0 0.0
        %2137 = vmatpush1.msra.mxu0 0.0
        %2138 = vmatprep.subr.mxu0 0.0
        %2139 = vmatpush1.msra.mxu0 0.0
        %2140 = vmatprep.subr.mxu0 0.0
        %2141 = vmatpush1.msra.mxu0 0.0
        %2142 = vmatprep.subr.mxu0 0.0
        %2143 = vmatpush1.msra.mxu0 0.0
        %2144 = vmatprep.subr.mxu0 0.0
        %2145 = vmatpush1.msra.mxu0 0.0
        %2146 = vmatprep.subr.mxu0 0.0
        %2147 = vmatpush1.msra.mxu0 0.0
        %2148 = vmatprep.subr.mxu0 0.0
        %2149 = vmatpush1.msra.mxu0 0.0
        %2150 = vmatprep.subr.mxu0 0.0
        %2151 = vmatpush1.msra.mxu0 0.0
        %2152 = vmatprep.subr.mxu0 0.0
        %2153 = vmatpush1.msra.mxu0 0.0
        %2154 = vmatprep.subr.mxu0 0.0
        %2155 = vmatpush1.msra.mxu0 0.0
        %2156 = vmatprep.subr.mxu0 0.0
        %2157 = vmatpush1.msra.mxu0 0.0
        %2158 = vmatprep.subr.mxu0 0.0
        %2159 = vmatpush1.msra.mxu0 0.0
        %2160 = vmatprep.subr.mxu0 0.0
        %2161 = vmatpush1.msra.mxu0 0.0
        %2162 = vmatprep.subr.mxu0 0.0
        %2163 = vmatpush1.msra.mxu0 0.0
        %2164 = vmatprep.subr.mxu0 0.0
        %2165 = vmatpush1.msra.mxu0 0.0
        %2166 = vmatprep.subr.mxu0 0.0
        %2167 = vmatpush1.msra.mxu0 0.0
        %2168 = vmatprep.mubr.f32.mxu0 0.0
        %2169 = vmatmul.mubr.f32.gmra.mrb[0].mxu0 %v295
        %v2170 = vpop.f32.mrb[0].mxu0
        %v2171 = vadd.f32 0.0, %v2170
        %v2172 = vpop.f32.mrb[0].mxu0
        %2173 = vmatprep.mubr.f32.mxu0 0.0
        %2174 = vmatmul.mubr.f32.gmra.mrb[0].mxu0 %v298
        %v2175 = vpop.f32.mrb[0].mxu0
        %v2176 = vadd.f32 0.0, %v2175
        %v2177 = vpop.f32.mrb[0].mxu0
        %2178 = vmatprep.mubr.f32.mxu0 0.0
        %2179 = vmatmul.mubr.f32.gmra.mrb[0].mxu0 %v301
        %v2180 = vpop.f32.mrb[0].mxu0
        %v2181 = vpop.f32.mrb[0].mxu0
        %2182 = vmatprep.mubr.f32.mxu0 0.0
        %2183 = vmatmul.mubr.f32.gmra.mrb[0].mxu0 %v304
        %v2184 = vpop.f32.mrb[0].mxu0
        %v2185 = vadd.f32 0.0, %v2184
        %v2186 = vpop.f32.mrb[0].mxu0
        %2187 = vmatprep.mubr.f32.mxu0 0.0
        %2188 = vmatmul.mubr.f32.gmra.mrb[0].mxu0 %v307
        %v2189 = vpop.f32.mrb[0].mxu0
        %v2190 = vadd.f32 0.0, %v2189
        %v2191 = vpop.f32.mrb[0].mxu0
        %2192 = vmatprep.mubr.f32.mxu0 0.0
        %2193 = vmatmul.mubr.f32.gmra.mrb[0].mxu0 %v310
        %v2194 = vpop.f32.mrb[0].mxu0
        %v2195 = vpop.f32.mrb[0].mxu0
        %2196 = vmatprep.mubr.f32.mxu0 0.0
        %2197 = vmatmul.mubr.f32.gmra.mrb[0].mxu0 %v313
        %v2198 = vpop.f32.mrb[0].mxu0
        %v2199 = vadd.f32 0.0, %v2198
        %v2200 = vpop.f32.mrb[0].mxu0
        %2201 = vmatprep.mubr.f32.mxu0 0.0
        %2202 = vmatmul.mubr.f32.gmra.mrb[0].mxu0 %v316
        %v2203 = vpop.f32.mrb[0].mxu0
        %v2204 = vadd.f32 0.0, %v2203
        %v2205 = vpop.f32.mrb[0].mxu0
        %2206 = vmatprep.mubr.f32.mxu0 0.0
        %2207 = vmatmul.mubr.f32.gmra.mrb[0].mxu0 %v319
        %v2208 = vpop.f32.mrb[0].mxu0
        %v2209 = vpop.f32.mrb[0].mxu0
        %2210 = vmatprep.mubr.f32.mxu0 0.0
        %2211 = vmatmul.mubr.f32.gmra.mrb[0].mxu0 %v322
        %v2212 = vpop.f32.mrb[0].mxu0
        %v2213 = vadd.f32 0.0, %v2212
        %v2214 = vpop.f32.mrb[0].mxu0
        %2215 = vmatprep.mubr.f32.mxu0 0.0
        %2216 = vmatmul.mubr.f32.gmra.mrb[0].mxu0 %v325
        %v2217 = vpop.f32.mrb[0].mxu0
        %v2218 = vadd.f32 0.0, %v2217
        %v2219 = vpop.f32.mrb[0].mxu0
        %2220 = vmatprep.mubr.f32.mxu0 0.0
        %2221 = vmatmul.mubr.f32.gmra.mrb[0].mxu0 %v328
        %v2222 = vpop.f32.mrb[0].mxu0
        %v2223 = vpop.f32.mrb[0].mxu0
        %2224 = vmatprep.mubr.f32.mxu0 0.0
        %2225 = vmatmul.mubr.f32.gmra.mrb[0].mxu0 %v331
        %v2226 = vpop.f32.mrb[0].mxu0
        %v2227 = vadd.f32 0.0, %v2226
        %v2228 = vpop.f32.mrb[0].mxu0
        %2229 = vmatprep.mubr.f32.mxu0 0.0
        %2230 = vmatmul.mubr.f32.gmra.mrb[0].mxu0 %v334
        %v2231 = vpop.f32.mrb[0].mxu0
        %v2232 = vadd.f32 0.0, %v2231
        %v2233 = vpop.f32.mrb[0].mxu0
        %2234 = vmatprep.mubr.f32.mxu0 0.0
        %2235 = vmatmul.mubr.f32.gmra.mrb[0].mxu0 %v337
        %v2236 = vpop.f32.mrb[0].mxu0
        %v2237 = vpop.f32.mrb[0].mxu0
        %2238 = vmatprep.mubr.f32.mxu0 0.0
        %2239 = vmatmul.mubr.f32.gmra.mrb[0].mxu0 %v340
        %v2240 = vpop.f32.mrb[0].mxu0
        %v2241 = vadd.f32 0.0, %v2240
        %v2242 = vpop.f32.mrb[0].mxu0
        %2243 = vmatprep.mubr.f32.mxu0 0.0
        %2244 = vmatmul.mubr.f32.gmra.mrb[0].mxu0 %v343
        %v2245 = vpop.f32.mrb[0].mxu0
        %v2246 = vadd.f32 0.0, %v2245
        %v2247 = vpop.f32.mrb[0].mxu0
        %2248 = vmatprep.mubr.f32.mxu0 0.0
        %2249 = vmatmul.mubr.f32.gmra.mrb[0].mxu0 %v346
        %v2250 = vpop.f32.mrb[0].mxu0
        %v2251 = vpop.f32.mrb[0].mxu0
        %2252 = vmatprep.mubr.f32.mxu0 0.0
        %2253 = vmatmul.mubr.f32.gmra.mrb[0].mxu0 %v1218
        %v2254 = vpop.f32.mrb[0].mxu0
        %v2255 = vadd.f32 0.0, %v2254
        %v2256 = vpop.f32.mrb[0].mxu0
        %2257 = vmatprep.mubr.f32.mxu0 0.0
        %2258 = vmatmul.mubr.f32.gmra.mrb[0].mxu0 %v1221
        %v2259 = vpop.f32.mrb[0].mxu0
        %v2260 = vadd.f32 0.0, %v2259
        %v2261 = vpop.f32.mrb[0].mxu0
        %2262 = vmatprep.mubr.f32.mxu0 0.0
        %2263 = vmatmul.mubr.f32.gmra.mrb[0].mxu0 %v1224
        %v2264 = vpop.f32.mrb[0].mxu0
        %v2265 = vpop.f32.mrb[0].mxu0
        %2266 = vmatprep.mubr.f32.mxu0 0.0
        %2267 = vmatmul.mubr.f32.gmra.mrb[0].mxu0 %v2093
        %v2268 = vpop.f32.mrb[0].mxu0
        %v2269 = vadd.f32 0.0, %v2268
        %v2270 = vpop.f32.mrb[0].mxu0
        %2271 = vmatprep.mubr.f32.mxu0 0.0
        %2272 = vmatmul.mubr.f32.gmra.mrb[0].mxu0 %v2096
        %v2273 = vpop.f32.mrb[0].mxu0
        %v2274 = vadd.f32 0.0, %v2273
        %v2275 = vpop.f32.mrb[0].mxu0
        %2276 = vmatprep.mubr.f32.mxu0 0.0
        %2277 = vmatmul.mubr.f32.gmra.mrb[0].mxu0 %v2099
        %v2278 = vpop.f32.mrb[0].mxu0
        %v2279 = vpop.f32.mrb[0].mxu0
        %2280 = vdwg.mxu0
        %v2281 = vld [vmem:[#allocation2] sm:$0xff]
        %v2282 = vld [vmem:[#allocation2 + $0x8] sm:$0xff]
        %v2283 = vld [vmem:[#allocation2 + $0x10] sm:$0xff]
        %v2284 = vld [vmem:[#allocation2 + $0x18] sm:$0xff]
        %v2285 = vld [vmem:[#allocation2 + $0x20] sm:$0xff]
        %v2286 = vld [vmem:[#allocation2 + $0x28] sm:$0xff]
        %v2287 = vld [vmem:[#allocation2 + $0x30] sm:$0xff]
        %v2288 = vld [vmem:[#allocation2 + $0x38] sm:$0xff]
        %v2289 = vld [vmem:[#allocation2 + $0x40] sm:$0xff]
        %v2290 = vld [vmem:[#allocation2 + $0x48] sm:$0xff]
        %v2291 = vld [vmem:[#allocation2 + $0x50] sm:$0xff]
        %v2292 = vld [vmem:[#allocation2 + $0x58] sm:$0xff]
        %v2293 = vld [vmem:[#allocation2 + $0x60] sm:$0xff]
        %v2294 = vld [vmem:[#allocation2 + $0x68] sm:$0xff]
        %v2295 = vld [vmem:[#allocation2 + $0x70] sm:$0xff]
        %v2296 = vld [vmem:[#allocation2 + $0x78] sm:$0xff]
        %v2297 = vadd.f32 %v2281, %v2171
        %v2298 = vadd.f32 %v2282, %v2176
        %v2299 = vadd.f32 %v2283, %v2185
        %v2300 = vadd.f32 %v2284, %v2190
        %v2301 = vadd.f32 %v2285, %v2199
        %v2302 = vadd.f32 %v2286, %v2204
        %v2303 = vadd.f32 %v2287, %v2213
        %v2304 = vadd.f32 %v2288, %v2218
        %v2305 = vadd.f32 %v2289, %v2227
        %v2306 = vadd.f32 %v2290, %v2232
        %v2307 = vadd.f32 %v2291, %v2241
        %v2308 = vadd.f32 %v2292, %v2246
        %v2309 = vadd.f32 %v2293, %v2255
        %v2310 = vadd.f32 %v2294, %v2260
        %v2311 = vadd.f32 %v2295, %v2269
        %v2312 = vadd.f32 %v2296, %v2274
        %2313 = vst [vmem:[#allocation2] sm:$0xff] %v2297
        %2314 = vst [vmem:[#allocation2 + $0x8] sm:$0xff] %v2298
        %2315 = vst [vmem:[#allocation2 + $0x10] sm:$0xff] %v2299
        %2316 = vst [vmem:[#allocation2 + $0x18] sm:$0xff] %v2300
        %2317 = vst [vmem:[#allocation2 + $0x20] sm:$0xff] %v2301
        %2318 = vst [vmem:[#allocation2 + $0x28] sm:$0xff] %v2302
        %2319 = vst [vmem:[#allocation2 + $0x30] sm:$0xff] %v2303
        %2320 = vst [vmem:[#allocation2 + $0x38] sm:$0xff] %v2304
        %2321 = vst [vmem:[#allocation2 + $0x40] sm:$0xff] %v2305
        %2322 = vst [vmem:[#allocation2 + $0x48] sm:$0xff] %v2306
        %2323 = vst [vmem:[#allocation2 + $0x50] sm:$0xff] %v2307
        %2324 = vst [vmem:[#allocation2 + $0x58] sm:$0xff] %v2308
        %2325 = vst [vmem:[#allocation2 + $0x60] sm:$0xff] %v2309
        %2326 = vst [vmem:[#allocation2 + $0x68] sm:$0xff] %v2310
        %2327 = vst [vmem:[#allocation2 + $0x70] sm:$0xff] %v2311
        %2328 = vst [vmem:[#allocation2 + $0x78] sm:$0xff] %v2312
        %s2329 = scalar_lea.vmem %s218, 28
        %v2330 = vld [vmem:[%s2329] sm:$0xf]
        %v2332 = vsel %vm348, %v2330, 0
        %2334 = vmatprep.subr.mxu0 0.0
        %2335 = vmatpush1.msra.mxu0 %v2332
        %2336 = vmatprep.subr.mxu0 0.0
        %2337 = vmatpush1.msra.mxu0 0.0
        %2338 = vmatprep.subr.mxu0 0.0
        %2339 = vmatpush1.msra.mxu0 0.0
        %2340 = vmatprep.subr.mxu0 0.0
        %2341 = vmatpush1.msra.mxu0 0.0
        %2342 = vmatprep.subr.mxu0 0.0
        %2343 = vmatpush1.msra.mxu0 0.0
        %2344 = vmatprep.subr.mxu0 0.0
        %2345 = vmatpush1.msra.mxu0 0.0
        %2346 = vmatprep.subr.mxu0 0.0
        %2347 = vmatpush1.msra.mxu0 0.0
        %2348 = vmatprep.subr.mxu0 0.0
        %2349 = vmatpush1.msra.mxu0 0.0
        %2350 = vmatprep.subr.mxu0 0.0
        %2351 = vmatpush1.msra.mxu0 0.0
        %2352 = vmatprep.subr.mxu0 0.0
        %2353 = vmatpush1.msra.mxu0 0.0
        %2354 = vmatprep.subr.mxu0 0.0
        %2355 = vmatpush1.msra.mxu0 0.0
        %2356 = vmatprep.subr.mxu0 0.0
        %2357 = vmatpush1.msra.mxu0 0.0
        %2358 = vmatprep.subr.mxu0 0.0
        %2359 = vmatpush1.msra.mxu0 0.0
        %2360 = vmatprep.subr.mxu0 0.0
        %2361 = vmatpush1.msra.mxu0 0.0
        %2362 = vmatprep.subr.mxu0 0.0
        %2363 = vmatpush1.msra.mxu0 0.0
        %2364 = vmatprep.subr.mxu0 0.0
        %2365 = vmatpush1.msra.mxu0 0.0
        %2366 = vmatprep.subr.mxu0 0.0
        %2367 = vmatpush1.msra.mxu0 0.0
        %2368 = vmatprep.subr.mxu0 0.0
        %2369 = vmatpush1.msra.mxu0 0.0
        %2370 = vmatprep.subr.mxu0 0.0
        %2371 = vmatpush1.msra.mxu0 0.0
        %2372 = vmatprep.subr.mxu0 0.0
        %2373 = vmatpush1.msra.mxu0 0.0
        %2374 = vmatprep.subr.mxu0 0.0
        %2375 = vmatpush1.msra.mxu0 0.0
        %2376 = vmatprep.subr.mxu0 0.0
        %2377 = vmatpush1.msra.mxu0 0.0
        %2378 = vmatprep.subr.mxu0 0.0
        %2379 = vmatpush1.msra.mxu0 0.0
        %2380 = vmatprep.subr.mxu0 0.0
        %2381 = vmatpush1.msra.mxu0 0.0
        %2382 = vmatprep.subr.mxu0 0.0
        %2383 = vmatpush1.msra.mxu0 0.0
        %2384 = vmatprep.subr.mxu0 0.0
        %2385 = vmatpush1.msra.mxu0 0.0
        %2386 = vmatprep.subr.mxu0 0.0
        %2387 = vmatpush1.msra.mxu0 0.0
        %2388 = vmatprep.subr.mxu0 0.0
        %2389 = vmatpush1.msra.mxu0 0.0
        %2390 = vmatprep.subr.mxu0 0.0
        %2391 = vmatpush1.msra.mxu0 0.0
        %2392 = vmatprep.subr.mxu0 0.0
        %2393 = vmatpush1.msra.mxu0 0.0
        %2394 = vmatprep.subr.mxu0 0.0
        %2395 = vmatpush1.msra.mxu0 0.0
        %2396 = vmatprep.subr.mxu0 0.0
        %2397 = vmatpush1.msra.mxu0 0.0
        %2398 = vmatprep.mubr.f32.mxu0 0.0
        %2399 = vmatmul.mubr.f32.gmra.mrb[0].mxu0 %v295
        %v2400 = vpop.f32.mrb[0].mxu0
        %v2401 = vadd.f32 0.0, %v2400
        %v2402 = vpop.f32.mrb[0].mxu0
        %2403 = vmatprep.mubr.f32.mxu0 0.0
        %2404 = vmatmul.mubr.f32.gmra.mrb[0].mxu0 %v298
        %v2405 = vpop.f32.mrb[0].mxu0
        %v2406 = vadd.f32 0.0, %v2405
        %v2407 = vpop.f32.mrb[0].mxu0
        %2408 = vmatprep.mubr.f32.mxu0 0.0
        %2409 = vmatmul.mubr.f32.gmra.mrb[0].mxu0 %v301
        %v2410 = vpop.f32.mrb[0].mxu0
        %v2411 = vadd.f32 0.0, %v2410
        %v2412 = vpop.f32.mrb[0].mxu0
        %2413 = vmatprep.mubr.f32.mxu0 0.0
        %2414 = vmatmul.mubr.f32.gmra.mrb[0].mxu0 %v304
        %v2415 = vpop.f32.mrb[0].mxu0
        %v2416 = vadd.f32 0.0, %v2415
        %v2417 = vpop.f32.mrb[0].mxu0
        %2418 = vmatprep.mubr.f32.mxu0 0.0
        %2419 = vmatmul.mubr.f32.gmra.mrb[0].mxu0 %v307
        %v2420 = vpop.f32.mrb[0].mxu0
        %v2421 = vadd.f32 0.0, %v2420
        %v2422 = vpop.f32.mrb[0].mxu0
        %2423 = vmatprep.mubr.f32.mxu0 0.0
        %2424 = vmatmul.mubr.f32.gmra.mrb[0].mxu0 %v310
        %v2425 = vpop.f32.mrb[0].mxu0
        %v2426 = vadd.f32 0.0, %v2425
        %v2427 = vpop.f32.mrb[0].mxu0
        %2428 = vmatprep.mubr.f32.mxu0 0.0
        %2429 = vmatmul.mubr.f32.gmra.mrb[0].mxu0 %v313
        %v2430 = vpop.f32.mrb[0].mxu0
        %v2431 = vadd.f32 0.0, %v2430
        %v2432 = vpop.f32.mrb[0].mxu0
        %2433 = vmatprep.mubr.f32.mxu0 0.0
        %2434 = vmatmul.mubr.f32.gmra.mrb[0].mxu0 %v316
        %v2435 = vpop.f32.mrb[0].mxu0
        %v2436 = vadd.f32 0.0, %v2435
        %v2437 = vpop.f32.mrb[0].mxu0
        %2438 = vmatprep.mubr.f32.mxu0 0.0
        %2439 = vmatmul.mubr.f32.gmra.mrb[0].mxu0 %v319
        %v2440 = vpop.f32.mrb[0].mxu0
        %v2441 = vadd.f32 0.0, %v2440
        %v2442 = vpop.f32.mrb[0].mxu0
        %2443 = vmatprep.mubr.f32.mxu0 0.0
        %2444 = vmatmul.mubr.f32.gmra.mrb[0].mxu0 %v322
        %v2445 = vpop.f32.mrb[0].mxu0
        %v2446 = vadd.f32 0.0, %v2445
        %v2447 = vpop.f32.mrb[0].mxu0
        %2448 = vmatprep.mubr.f32.mxu0 0.0
        %2449 = vmatmul.mubr.f32.gmra.mrb[0].mxu0 %v325
        %v2450 = vpop.f32.mrb[0].mxu0
        %v2451 = vadd.f32 0.0, %v2450
        %v2452 = vpop.f32.mrb[0].mxu0
        %2453 = vmatprep.mubr.f32.mxu0 0.0
        %2454 = vmatmul.mubr.f32.gmra.mrb[0].mxu0 %v328
        %v2455 = vpop.f32.mrb[0].mxu0
        %v2456 = vadd.f32 0.0, %v2455
        %v2457 = vpop.f32.mrb[0].mxu0
        %2458 = vmatprep.mubr.f32.mxu0 0.0
        %2459 = vmatmul.mubr.f32.gmra.mrb[0].mxu0 %v331
        %v2460 = vpop.f32.mrb[0].mxu0
        %v2461 = vadd.f32 0.0, %v2460
        %v2462 = vpop.f32.mrb[0].mxu0
        %2463 = vmatprep.mubr.f32.mxu0 0.0
        %2464 = vmatmul.mubr.f32.gmra.mrb[0].mxu0 %v334
        %v2465 = vpop.f32.mrb[0].mxu0
        %v2466 = vadd.f32 0.0, %v2465
        %v2467 = vpop.f32.mrb[0].mxu0
        %2468 = vmatprep.mubr.f32.mxu0 0.0
        %2469 = vmatmul.mubr.f32.gmra.mrb[0].mxu0 %v337
        %v2470 = vpop.f32.mrb[0].mxu0
        %v2471 = vadd.f32 0.0, %v2470
        %v2472 = vpop.f32.mrb[0].mxu0
        %2473 = vmatprep.mubr.f32.mxu0 0.0
        %2474 = vmatmul.mubr.f32.gmra.mrb[0].mxu0 %v340
        %v2475 = vpop.f32.mrb[0].mxu0
        %v2476 = vadd.f32 0.0, %v2475
        %v2477 = vpop.f32.mrb[0].mxu0
        %2478 = vmatprep.mubr.f32.mxu0 0.0
        %2479 = vmatmul.mubr.f32.gmra.mrb[0].mxu0 %v343
        %v2480 = vpop.f32.mrb[0].mxu0
        %v2481 = vadd.f32 0.0, %v2480
        %v2482 = vpop.f32.mrb[0].mxu0
        %2483 = vmatprep.mubr.f32.mxu0 0.0
        %2484 = vmatmul.mubr.f32.gmra.mrb[0].mxu0 %v346
        %v2485 = vpop.f32.mrb[0].mxu0
        %v2486 = vadd.f32 0.0, %v2485
        %v2487 = vpop.f32.mrb[0].mxu0
        %2488 = vmatprep.mubr.f32.mxu0 0.0
        %2489 = vmatmul.mubr.f32.gmra.mrb[0].mxu0 %v1218
        %v2490 = vpop.f32.mrb[0].mxu0
        %v2491 = vadd.f32 0.0, %v2490
        %v2492 = vpop.f32.mrb[0].mxu0
        %2493 = vmatprep.mubr.f32.mxu0 0.0
        %2494 = vmatmul.mubr.f32.gmra.mrb[0].mxu0 %v1221
        %v2495 = vpop.f32.mrb[0].mxu0
        %v2496 = vadd.f32 0.0, %v2495
        %v2497 = vpop.f32.mrb[0].mxu0
        %2498 = vmatprep.mubr.f32.mxu0 0.0
        %2499 = vmatmul.mubr.f32.gmra.mrb[0].mxu0 %v1224
        %v2500 = vpop.f32.mrb[0].mxu0
        %v2501 = vadd.f32 0.0, %v2500
        %v2502 = vpop.f32.mrb[0].mxu0
        %2503 = vmatprep.mubr.f32.mxu0 0.0
        %2504 = vmatmul.mubr.f32.gmra.mrb[0].mxu0 %v2093
        %v2505 = vpop.f32.mrb[0].mxu0
        %v2506 = vadd.f32 0.0, %v2505
        %v2507 = vpop.f32.mrb[0].mxu0
        %2508 = vmatprep.mubr.f32.mxu0 0.0
        %2509 = vmatmul.mubr.f32.gmra.mrb[0].mxu0 %v2096
        %v2510 = vpop.f32.mrb[0].mxu0
        %v2511 = vadd.f32 0.0, %v2510
        %v2512 = vpop.f32.mrb[0].mxu0
        %2513 = vmatprep.mubr.f32.mxu0 0.0
        %2514 = vmatmul.mubr.f32.gmra.mrb[0].mxu0 %v2099
        %v2515 = vpop.f32.mrb[0].mxu0
        %v2516 = vadd.f32 0.0, %v2515
        %v2517 = vpop.f32.mrb[0].mxu0
        %2518 = vdwg.mxu0
        %v2519 = vld [vmem:[#allocation2] sm:$0xff]
        %v2520 = vld [vmem:[#allocation2 + $0x8] sm:$0xff]
        %v2521 = vld [vmem:[#allocation2 + $0x10] sm:$0xff]
        %v2522 = vld [vmem:[#allocation2 + $0x18] sm:$0xff]
        %v2523 = vld [vmem:[#allocation2 + $0x20] sm:$0xff]
        %v2524 = vld [vmem:[#allocation2 + $0x28] sm:$0xff]
        %v2525 = vld [vmem:[#allocation2 + $0x30] sm:$0xff]
        %v2526 = vld [vmem:[#allocation2 + $0x38] sm:$0xff]
        %v2527 = vld [vmem:[#allocation2 + $0x40] sm:$0xff]
        %v2528 = vld [vmem:[#allocation2 + $0x48] sm:$0xff]
        %v2529 = vld [vmem:[#allocation2 + $0x50] sm:$0xff]
        %v2530 = vld [vmem:[#allocation2 + $0x58] sm:$0xff]
        %v2531 = vld [vmem:[#allocation2 + $0x60] sm:$0xff]
        %v2532 = vld [vmem:[#allocation2 + $0x68] sm:$0xff]
        %v2533 = vld [vmem:[#allocation2 + $0x70] sm:$0xff]
        %v2534 = vld [vmem:[#allocation2 + $0x78] sm:$0xff]
        %v2559 = vrot.slane %v2401, 1
        %v2560 = vrot.slane %v2406, 1
        %v2561 = vsel %vm807, %v2559, %v2560
        %v2562 = vrot.slane %v2411, 1
        %v2563 = vsel %vm807, %v2560, %v2562
        %v2564 = vrot.slane %v2416, 1
        %v2565 = vrot.slane %v2421, 1
        %v2566 = vsel %vm807, %v2564, %v2565
        %v2567 = vrot.slane %v2426, 1
        %v2568 = vsel %vm807, %v2565, %v2567
        %v2569 = vrot.slane %v2431, 1
        %v2570 = vrot.slane %v2436, 1
        %v2571 = vsel %vm807, %v2569, %v2570
        %v2572 = vrot.slane %v2441, 1
        %v2573 = vsel %vm807, %v2570, %v2572
        %v2574 = vrot.slane %v2446, 1
        %v2575 = vrot.slane %v2451, 1
        %v2576 = vsel %vm807, %v2574, %v2575
        %v2577 = vrot.slane %v2456, 1
        %v2578 = vsel %vm807, %v2575, %v2577
        %v2579 = vrot.slane %v2461, 1
        %v2580 = vrot.slane %v2466, 1
        %v2581 = vsel %vm807, %v2579, %v2580
        %v2582 = vrot.slane %v2471, 1
        %v2583 = vsel %vm807, %v2580, %v2582
        %v2584 = vrot.slane %v2476, 1
        %v2585 = vrot.slane %v2481, 1
        %v2586 = vsel %vm807, %v2584, %v2585
        %v2587 = vrot.slane %v2486, 1
        %v2588 = vsel %vm807, %v2585, %v2587
        %v2589 = vrot.slane %v2491, 1
        %v2590 = vrot.slane %v2496, 1
        %v2591 = vsel %vm807, %v2589, %v2590
        %v2592 = vrot.slane %v2501, 1
        %v2593 = vsel %vm807, %v2590, %v2592
        %v2594 = vrot.slane %v2506, 1
        %v2595 = vrot.slane %v2511, 1
        %v2596 = vsel %vm807, %v2594, %v2595
        %v2597 = vrot.slane %v2516, 1
        %v2598 = vsel %vm807, %v2595, %v2597
        %v2615 = vadd.f32 %v2519, %v2561
        %v2616 = vadd.f32 %v2520, %v2563
        %v2617 = vadd.f32 %v2521, %v2566
        %v2618 = vadd.f32 %v2522, %v2568
        %v2619 = vadd.f32 %v2523, %v2571
        %v2620 = vadd.f32 %v2524, %v2573
        %v2621 = vadd.f32 %v2525, %v2576
        %v2622 = vadd.f32 %v2526, %v2578
        %v2623 = vadd.f32 %v2527, %v2581
        %v2624 = vadd.f32 %v2528, %v2583
        %v2625 = vadd.f32 %v2529, %v2586
        %v2626 = vadd.f32 %v2530, %v2588
        %v2627 = vadd.f32 %v2531, %v2591
        %v2628 = vadd.f32 %v2532, %v2593
        %v2629 = vadd.f32 %v2533, %v2596
        %v2630 = vadd.f32 %v2534, %v2598
        %2631 = vst [vmem:[#allocation2] sm:$0xff] %v2615
        %2632 = vst [vmem:[#allocation2 + $0x8] sm:$0xff] %v2616
        %2633 = vst [vmem:[#allocation2 + $0x10] sm:$0xff] %v2617
        %2634 = vst [vmem:[#allocation2 + $0x18] sm:$0xff] %v2618
        %2635 = vst [vmem:[#allocation2 + $0x20] sm:$0xff] %v2619
        %2636 = vst [vmem:[#allocation2 + $0x28] sm:$0xff] %v2620
        %2637 = vst [vmem:[#allocation2 + $0x30] sm:$0xff] %v2621
        %2638 = vst [vmem:[#allocation2 + $0x38] sm:$0xff] %v2622
        %2639 = vst [vmem:[#allocation2 + $0x40] sm:$0xff] %v2623
        %2640 = vst [vmem:[#allocation2 + $0x48] sm:$0xff] %v2624
        %2641 = vst [vmem:[#allocation2 + $0x50] sm:$0xff] %v2625
        %2642 = vst [vmem:[#allocation2 + $0x58] sm:$0xff] %v2626
        %2643 = vst [vmem:[#allocation2 + $0x60] sm:$0xff] %v2627
        %2644 = vst [vmem:[#allocation2 + $0x68] sm:$0xff] %v2628
        %2645 = vst [vmem:[#allocation2 + $0x70] sm:$0xff] %v2629
        %2646 = vst [vmem:[#allocation2 + $0x78] sm:$0xff] %v2630
        %s2647 = scalar_lea.vmem %s218, 32
        %v2648 = vld [vmem:[%s2647] sm:$0xf]
        %v2650 = vsel %vm348, %v2648, 0
        %2652 = vmatprep.subr.mxu0 0.0
        %2653 = vmatpush1.msra.mxu0 %v2650
        %2654 = vmatprep.subr.mxu0 0.0
        %2655 = vmatpush1.msra.mxu0 0.0
        %2656 = vmatprep.subr.mxu0 0.0
        %2657 = vmatpush1.msra.mxu0 0.0
        %2658 = vmatprep.subr.mxu0 0.0
        %2659 = vmatpush1.msra.mxu0 0.0
        %2660 = vmatprep.subr.mxu0 0.0
        %2661 = vmatpush1.msra.mxu0 0.0
        %2662 = vmatprep.subr.mxu0 0.0
        %2663 = vmatpush1.msra.mxu0 0.0
        %2664 = vmatprep.subr.mxu0 0.0
        %2665 = vmatpush1.msra.mxu0 0.0
        %2666 = vmatprep.subr.mxu0 0.0
        %2667 = vmatpush1.msra.mxu0 0.0
        %2668 = vmatprep.subr.mxu0 0.0
        %2669 = vmatpush1.msra.mxu0 0.0
        %2670 = vmatprep.subr.mxu0 0.0
        %2671 = vmatpush1.msra.mxu0 0.0
        %2672 = vmatprep.subr.mxu0 0.0
        %2673 = vmatpush1.msra.mxu0 0.0
        %2674 = vmatprep.subr.mxu0 0.0
        %2675 = vmatpush1.msra.mxu0 0.0
        %2676 = vmatprep.subr.mxu0 0.0
        %2677 = vmatpush1.msra.mxu0 0.0
        %2678 = vmatprep.subr.mxu0 0.0
        %2679 = vmatpush1.msra.mxu0 0.0
        %2680 = vmatprep.subr.mxu0 0.0
        %2681 = vmatpush1.msra.mxu0 0.0
        %2682 = vmatprep.subr.mxu0 0.0
        %2683 = vmatpush1.msra.mxu0 0.0
        %2684 = vmatprep.subr.mxu0 0.0
        %2685 = vmatpush1.msra.mxu0 0.0
        %2686 = vmatprep.subr.mxu0 0.0
        %2687 = vmatpush1.msra.mxu0 0.0
        %2688 = vmatprep.subr.mxu0 0.0
        %2689 = vmatpush1.msra.mxu0 0.0
        %2690 = vmatprep.subr.mxu0 0.0
        %2691 = vmatpush1.msra.mxu0 0.0
        %2692 = vmatprep.subr.mxu0 0.0
        %2693 = vmatpush1.msra.mxu0 0.0
        %2694 = vmatprep.subr.mxu0 0.0
        %2695 = vmatpush1.msra.mxu0 0.0
        %2696 = vmatprep.subr.mxu0 0.0
        %2697 = vmatpush1.msra.mxu0 0.0
        %2698 = vmatprep.subr.mxu0 0.0
        %2699 = vmatpush1.msra.mxu0 0.0
        %2700 = vmatprep.subr.mxu0 0.0
        %2701 = vmatpush1.msra.mxu0 0.0
        %2702 = vmatprep.subr.mxu0 0.0
        %2703 = vmatpush1.msra.mxu0 0.0
        %2704 = vmatprep.subr.mxu0 0.0
        %2705 = vmatpush1.msra.mxu0 0.0
        %2706 = vmatprep.subr.mxu0 0.0
        %2707 = vmatpush1.msra.mxu0 0.0
        %2708 = vmatprep.subr.mxu0 0.0
        %2709 = vmatpush1.msra.mxu0 0.0
        %2710 = vmatprep.subr.mxu0 0.0
        %2711 = vmatpush1.msra.mxu0 0.0
        %2712 = vmatprep.subr.mxu0 0.0
        %2713 = vmatpush1.msra.mxu0 0.0
        %2714 = vmatprep.subr.mxu0 0.0
        %2715 = vmatpush1.msra.mxu0 0.0
        %2716 = vmatprep.mubr.f32.mxu0 0.0
        %2717 = vmatmul.mubr.f32.gmra.mrb[0].mxu0 %v295
        %v2718 = vpop.f32.mrb[0].mxu0
        %v2719 = vadd.f32 0.0, %v2718
        %v2720 = vpop.f32.mrb[0].mxu0
        %2721 = vmatprep.mubr.f32.mxu0 0.0
        %2722 = vmatmul.mubr.f32.gmra.mrb[0].mxu0 %v298
        %v2723 = vpop.f32.mrb[0].mxu0
        %v2724 = vadd.f32 0.0, %v2723
        %v2725 = vpop.f32.mrb[0].mxu0
        %2726 = vmatprep.mubr.f32.mxu0 0.0
        %2727 = vmatmul.mubr.f32.gmra.mrb[0].mxu0 %v301
        %v2728 = vpop.f32.mrb[0].mxu0
        %v2729 = vadd.f32 0.0, %v2728
        %v2730 = vpop.f32.mrb[0].mxu0
        %2731 = vmatprep.mubr.f32.mxu0 0.0
        %2732 = vmatmul.mubr.f32.gmra.mrb[0].mxu0 %v304
        %v2733 = vpop.f32.mrb[0].mxu0
        %v2734 = vadd.f32 0.0, %v2733
        %v2735 = vpop.f32.mrb[0].mxu0
        %2736 = vmatprep.mubr.f32.mxu0 0.0
        %2737 = vmatmul.mubr.f32.gmra.mrb[0].mxu0 %v307
        %v2738 = vpop.f32.mrb[0].mxu0
        %v2739 = vadd.f32 0.0, %v2738
        %v2740 = vpop.f32.mrb[0].mxu0
        %2741 = vmatprep.mubr.f32.mxu0 0.0
        %2742 = vmatmul.mubr.f32.gmra.mrb[0].mxu0 %v310
        %v2743 = vpop.f32.mrb[0].mxu0
        %v2744 = vadd.f32 0.0, %v2743
        %v2745 = vpop.f32.mrb[0].mxu0
        %2746 = vmatprep.mubr.f32.mxu0 0.0
        %2747 = vmatmul.mubr.f32.gmra.mrb[0].mxu0 %v313
        %v2748 = vpop.f32.mrb[0].mxu0
        %v2749 = vadd.f32 0.0, %v2748
        %v2750 = vpop.f32.mrb[0].mxu0
        %2751 = vmatprep.mubr.f32.mxu0 0.0
        %2752 = vmatmul.mubr.f32.gmra.mrb[0].mxu0 %v316
        %v2753 = vpop.f32.mrb[0].mxu0
        %v2754 = vadd.f32 0.0, %v2753
        %v2755 = vpop.f32.mrb[0].mxu0
        %2756 = vmatprep.mubr.f32.mxu0 0.0
        %2757 = vmatmul.mubr.f32.gmra.mrb[0].mxu0 %v319
        %v2758 = vpop.f32.mrb[0].mxu0
        %v2759 = vadd.f32 0.0, %v2758
        %v2760 = vpop.f32.mrb[0].mxu0
        %2761 = vmatprep.mubr.f32.mxu0 0.0
        %2762 = vmatmul.mubr.f32.gmra.mrb[0].mxu0 %v322
        %v2763 = vpop.f32.mrb[0].mxu0
        %v2764 = vadd.f32 0.0, %v2763
        %v2765 = vpop.f32.mrb[0].mxu0
        %2766 = vmatprep.mubr.f32.mxu0 0.0
        %2767 = vmatmul.mubr.f32.gmra.mrb[0].mxu0 %v325
        %v2768 = vpop.f32.mrb[0].mxu0
        %v2769 = vadd.f32 0.0, %v2768
        %v2770 = vpop.f32.mrb[0].mxu0
        %2771 = vmatprep.mubr.f32.mxu0 0.0
        %2772 = vmatmul.mubr.f32.gmra.mrb[0].mxu0 %v328
        %v2773 = vpop.f32.mrb[0].mxu0
        %v2774 = vadd.f32 0.0, %v2773
        %v2775 = vpop.f32.mrb[0].mxu0
        %2776 = vmatprep.mubr.f32.mxu0 0.0
        %2777 = vmatmul.mubr.f32.gmra.mrb[0].mxu0 %v331
        %v2778 = vpop.f32.mrb[0].mxu0
        %v2779 = vadd.f32 0.0, %v2778
        %v2780 = vpop.f32.mrb[0].mxu0
        %2781 = vmatprep.mubr.f32.mxu0 0.0
        %2782 = vmatmul.mubr.f32.gmra.mrb[0].mxu0 %v334
        %v2783 = vpop.f32.mrb[0].mxu0
        %v2784 = vadd.f32 0.0, %v2783
        %v2785 = vpop.f32.mrb[0].mxu0
        %2786 = vmatprep.mubr.f32.mxu0 0.0
        %2787 = vmatmul.mubr.f32.gmra.mrb[0].mxu0 %v337
        %v2788 = vpop.f32.mrb[0].mxu0
        %v2789 = vadd.f32 0.0, %v2788
        %v2790 = vpop.f32.mrb[0].mxu0
        %2791 = vmatprep.mubr.f32.mxu0 0.0
        %2792 = vmatmul.mubr.f32.gmra.mrb[0].mxu0 %v340
        %v2793 = vpop.f32.mrb[0].mxu0
        %v2794 = vadd.f32 0.0, %v2793
        %v2795 = vpop.f32.mrb[0].mxu0
        %2796 = vmatprep.mubr.f32.mxu0 0.0
        %2797 = vmatmul.mubr.f32.gmra.mrb[0].mxu0 %v343
        %v2798 = vpop.f32.mrb[0].mxu0
        %v2799 = vadd.f32 0.0, %v2798
        %v2800 = vpop.f32.mrb[0].mxu0
        %2801 = vmatprep.mubr.f32.mxu0 0.0
        %2802 = vmatmul.mubr.f32.gmra.mrb[0].mxu0 %v346
        %v2803 = vpop.f32.mrb[0].mxu0
        %v2804 = vadd.f32 0.0, %v2803
        %v2805 = vpop.f32.mrb[0].mxu0
        %2806 = vmatprep.mubr.f32.mxu0 0.0
        %2807 = vmatmul.mubr.f32.gmra.mrb[0].mxu0 %v1218
        %v2808 = vpop.f32.mrb[0].mxu0
        %v2809 = vadd.f32 0.0, %v2808
        %v2810 = vpop.f32.mrb[0].mxu0
        %2811 = vmatprep.mubr.f32.mxu0 0.0
        %2812 = vmatmul.mubr.f32.gmra.mrb[0].mxu0 %v1221
        %v2813 = vpop.f32.mrb[0].mxu0
        %v2814 = vadd.f32 0.0, %v2813
        %v2815 = vpop.f32.mrb[0].mxu0
        %2816 = vmatprep.mubr.f32.mxu0 0.0
        %2817 = vmatmul.mubr.f32.gmra.mrb[0].mxu0 %v1224
        %v2818 = vpop.f32.mrb[0].mxu0
        %v2819 = vadd.f32 0.0, %v2818
        %v2820 = vpop.f32.mrb[0].mxu0
        %2821 = vmatprep.mubr.f32.mxu0 0.0
        %2822 = vmatmul.mubr.f32.gmra.mrb[0].mxu0 %v2093
        %v2823 = vpop.f32.mrb[0].mxu0
        %v2824 = vadd.f32 0.0, %v2823
        %v2825 = vpop.f32.mrb[0].mxu0
        %2826 = vmatprep.mubr.f32.mxu0 0.0
        %2827 = vmatmul.mubr.f32.gmra.mrb[0].mxu0 %v2096
        %v2828 = vpop.f32.mrb[0].mxu0
        %v2829 = vadd.f32 0.0, %v2828
        %v2830 = vpop.f32.mrb[0].mxu0
        %2831 = vmatprep.mubr.f32.mxu0 0.0
        %2832 = vmatmul.mubr.f32.gmra.mrb[0].mxu0 %v2099
        %v2833 = vpop.f32.mrb[0].mxu0
        %v2834 = vadd.f32 0.0, %v2833
        %v2835 = vpop.f32.mrb[0].mxu0
        %2836 = vdwg.mxu0
        %v2837 = vld [vmem:[#allocation2] sm:$0xff]
        %v2838 = vld [vmem:[#allocation2 + $0x8] sm:$0xff]
        %v2839 = vld [vmem:[#allocation2 + $0x10] sm:$0xff]
        %v2840 = vld [vmem:[#allocation2 + $0x18] sm:$0xff]
        %v2841 = vld [vmem:[#allocation2 + $0x20] sm:$0xff]
        %v2842 = vld [vmem:[#allocation2 + $0x28] sm:$0xff]
        %v2843 = vld [vmem:[#allocation2 + $0x30] sm:$0xff]
        %v2844 = vld [vmem:[#allocation2 + $0x38] sm:$0xff]
        %v2845 = vld [vmem:[#allocation2 + $0x40] sm:$0xff]
        %v2846 = vld [vmem:[#allocation2 + $0x48] sm:$0xff]
        %v2847 = vld [vmem:[#allocation2 + $0x50] sm:$0xff]
        %v2848 = vld [vmem:[#allocation2 + $0x58] sm:$0xff]
        %v2849 = vld [vmem:[#allocation2 + $0x60] sm:$0xff]
        %v2850 = vld [vmem:[#allocation2 + $0x68] sm:$0xff]
        %v2851 = vld [vmem:[#allocation2 + $0x70] sm:$0xff]
        %v2852 = vld [vmem:[#allocation2 + $0x78] sm:$0xff]
        %v2877 = vrot.slane %v2719, 2
        %v2878 = vrot.slane %v2724, 2
        %v2879 = vsel %vm1126, %v2877, %v2878
        %v2880 = vrot.slane %v2729, 2
        %v2881 = vsel %vm1126, %v2878, %v2880
        %v2882 = vrot.slane %v2734, 2
        %v2883 = vrot.slane %v2739, 2
        %v2884 = vsel %vm1126, %v2882, %v2883
        %v2885 = vrot.slane %v2744, 2
        %v2886 = vsel %vm1126, %v2883, %v2885
        %v2887 = vrot.slane %v2749, 2
        %v2888 = vrot.slane %v2754, 2
        %v2889 = vsel %vm1126, %v2887, %v2888
        %v2890 = vrot.slane %v2759, 2
        %v2891 = vsel %vm1126, %v2888, %v2890
        %v2892 = vrot.slane %v2764, 2
        %v2893 = vrot.slane %v2769, 2
        %v2894 = vsel %vm1126, %v2892, %v2893
        %v2895 = vrot.slane %v2774, 2
        %v2896 = vsel %vm1126, %v2893, %v2895
        %v2897 = vrot.slane %v2779, 2
        %v2898 = vrot.slane %v2784, 2
        %v2899 = vsel %vm1126, %v2897, %v2898
        %v2900 = vrot.slane %v2789, 2
        %v2901 = vsel %vm1126, %v2898, %v2900
        %v2902 = vrot.slane %v2794, 2
        %v2903 = vrot.slane %v2799, 2
        %v2904 = vsel %vm1126, %v2902, %v2903
        %v2905 = vrot.slane %v2804, 2
        %v2906 = vsel %vm1126, %v2903, %v2905
        %v2907 = vrot.slane %v2809, 2
        %v2908 = vrot.slane %v2814, 2
        %v2909 = vsel %vm1126, %v2907, %v2908
        %v2910 = vrot.slane %v2819, 2
        %v2911 = vsel %vm1126, %v2908, %v2910
        %v2912 = vrot.slane %v2824, 2
        %v2913 = vrot.slane %v2829, 2
        %v2914 = vsel %vm1126, %v2912, %v2913
        %v2915 = vrot.slane %v2834, 2
        %v2916 = vsel %vm1126, %v2913, %v2915
        %v2933 = vadd.f32 %v2837, %v2879
        %v2934 = vadd.f32 %v2838, %v2881
        %v2935 = vadd.f32 %v2839, %v2884
        %v2936 = vadd.f32 %v2840, %v2886
        %v2937 = vadd.f32 %v2841, %v2889
        %v2938 = vadd.f32 %v2842, %v2891
        %v2939 = vadd.f32 %v2843, %v2894
        %v2940 = vadd.f32 %v2844, %v2896
        %v2941 = vadd.f32 %v2845, %v2899
        %v2942 = vadd.f32 %v2846, %v2901
        %v2943 = vadd.f32 %v2847, %v2904
        %v2944 = vadd.f32 %v2848, %v2906
        %v2945 = vadd.f32 %v2849, %v2909
        %v2946 = vadd.f32 %v2850, %v2911
        %v2947 = vadd.f32 %v2851, %v2914
        %v2948 = vadd.f32 %v2852, %v2916
        %2949 = vst [vmem:[#allocation2] sm:$0xff] %v2933
        %2950 = vst [vmem:[#allocation2 + $0x8] sm:$0xff] %v2934
        %2951 = vst [vmem:[#allocation2 + $0x10] sm:$0xff] %v2935
        %2952 = vst [vmem:[#allocation2 + $0x18] sm:$0xff] %v2936
        %2953 = vst [vmem:[#allocation2 + $0x20] sm:$0xff] %v2937
        %2954 = vst [vmem:[#allocation2 + $0x28] sm:$0xff] %v2938
        %2955 = vst [vmem:[#allocation2 + $0x30] sm:$0xff] %v2939
        %2956 = vst [vmem:[#allocation2 + $0x38] sm:$0xff] %v2940
        %2957 = vst [vmem:[#allocation2 + $0x40] sm:$0xff] %v2941
        %2958 = vst [vmem:[#allocation2 + $0x48] sm:$0xff] %v2942
        %2959 = vst [vmem:[#allocation2 + $0x50] sm:$0xff] %v2943
        %2960 = vst [vmem:[#allocation2 + $0x58] sm:$0xff] %v2944
        %2961 = vst [vmem:[#allocation2 + $0x60] sm:$0xff] %v2945
        %2962 = vst [vmem:[#allocation2 + $0x68] sm:$0xff] %v2946
        %2963 = vst [vmem:[#allocation2 + $0x70] sm:$0xff] %v2947
        %2964 = vst [vmem:[#allocation2 + $0x78] sm:$0xff] %v2948
        %v2965 = vld [vmem:[#allocation2] sm:$0xff]
        %v2966 = vld [vmem:[#allocation2 + $0x8] sm:$0xff]
        %v2967 = vld [vmem:[#allocation2 + $0x10] sm:$0xff]
        %v2968 = vld [vmem:[#allocation2 + $0x18] sm:$0xff]
        %v2969 = vld [vmem:[#allocation2 + $0x20] sm:$0xff]
        %v2970 = vld [vmem:[#allocation2 + $0x28] sm:$0xff]
        %v2971 = vld [vmem:[#allocation2 + $0x30] sm:$0xff]
        %v2972 = vld [vmem:[#allocation2 + $0x38] sm:$0xff]
        %v2973 = vld [vmem:[#allocation2 + $0x40] sm:$0xff]
        %v2974 = vld [vmem:[#allocation2 + $0x48] sm:$0xff]
        %v2975 = vld [vmem:[#allocation2 + $0x50] sm:$0xff]
        %v2976 = vld [vmem:[#allocation2 + $0x58] sm:$0xff]
        %v2977 = vld [vmem:[#allocation2 + $0x60] sm:$0xff]
        %v2978 = vld [vmem:[#allocation2 + $0x68] sm:$0xff]
        %v2979 = vld [vmem:[#allocation2 + $0x70] sm:$0xff]
        %v2980 = vld [vmem:[#allocation2 + $0x78] sm:$0xff]
        %2981 = vst [vmem:[%s204] sm:$0xff] %v2965
        %2982 = vst [vmem:[%s204 + $0x8] sm:$0xff] %v2966
        %2983 = vst [vmem:[%s204 + $0x10] sm:$0xff] %v2967
        %2984 = vst [vmem:[%s204 + $0x18] sm:$0xff] %v2968
        %2985 = vst [vmem:[%s204 + $0x20] sm:$0xff] %v2969
        %2986 = vst [vmem:[%s204 + $0x28] sm:$0xff] %v2970
        %2987 = vst [vmem:[%s204 + $0x30] sm:$0xff] %v2971
        %2988 = vst [vmem:[%s204 + $0x38] sm:$0xff] %v2972
        %2989 = vst [vmem:[%s204 + $0x40] sm:$0xff] %v2973
        %2990 = vst [vmem:[%s204 + $0x48] sm:$0xff] %v2974
        %2991 = vst [vmem:[%s204 + $0x50] sm:$0xff] %v2975
        %2992 = vst [vmem:[%s204 + $0x58] sm:$0xff] %v2976
        %2993 = vst [vmem:[%s204 + $0x60] sm:$0xff] %v2977
        %2994 = vst [vmem:[%s204 + $0x68] sm:$0xff] %v2978
        %2995 = vst [vmem:[%s204 + $0x70] sm:$0xff] %v2979
        %2996 = vst [vmem:[%s204 + $0x78] sm:$0xff] %v2980
        %s2997 = sand.u32 %s118, 1
        %s2998 = scalar_lea.sflag [#allocation4], %s2997
        %s2999 = sand.u32 %s118, 1
        %s3000 = smul.addr %s2999, 128
        %s3001 = scalar_lea.vmem [#allocation3], %s3000
        // Predicated region
        $region33: #{tpu_custom_call.1} parent=31 // pred_check
          %p3002 = pneg %p128
        $region34: #{tpu_custom_call.1} parent=31 // pred_check_branch
          %3004 = sbr.rel (%p3002) target = $region36
        $region35: #{tpu_custom_call.1} parent=31 // pred_region
          %s3005 = smul.u32 %s21, 2
          %s3006 = sadd.s32 %s3005, %s22
          %s3008 = ssub.s32 2048, 2048
          %3009 = vsyncadd %s2998, %s3008
          %s3010 = smul.addr %s3006, 16
          %s3011 = smul.addr %s3010, 128
          %s3012 = scalar_lea.hbm %s3, %s3011
          %s3013 = sshll.u32 %s3001, 4
          %s3014 = int_to_ptr.vmem [resolvable:$true] %s3013
          %3019 = dma.vmem_to_hbm [thread:$0]  %s3014, 2048, %s3012, %s2998, 128, 128, 8
        $region36: #{tpu_custom_call.1} parent=31 // pred_fallthru
          _
      $region32: #{tpu_custom_call.1} parent=5 // pred_fallthru
        _
      %p3020 = scmp.le.s32.totalorder 2, %s12
      // Predicated region
      $region37: #{tpu_custom_call.1} parent=5 // pred_check
        %p3021 = pneg %p3020
      $region38: #{tpu_custom_call.1} parent=5 // pred_check_branch
        %3023 = sbr.rel (%p3021) target = $region40
      $region39: #{tpu_custom_call.1} parent=5 // pred_region
        %s3024 = ssub.s32 %s12, 2
        // Predicated region
        $region41: #{tpu_custom_call.1} parent=39 // pred_check
          %p3025 = pneg %p134
        $region42: #{tpu_custom_call.1} parent=39 // pred_check_branch
          %3027 = sbr.rel (%p3025) target = $region44
        $region43: #{tpu_custom_call.1} parent=39 // pred_region
          %s3028 = sand.u32 %s119, 1
          %s3029 = scalar_lea.sflag [#allocation4], %s3028
          %s3030 = sand.u32 %s119, 1
          %s3031 = smul.addr %s3030, 128
          %s3032 = scalar_lea.vmem [#allocation3], %s3031
          %3033 = dma.done %s3029, 2048
        $region44: #{tpu_custom_call.1} parent=39 // pred_fallthru
          _
      $region40: #{tpu_custom_call.1} parent=5 // pred_fallthru
        _
    $region6: #{tpu_custom_call.1} parent=1 // loop_footer
      %s16 = sadd.s32 1, %s12
    $region7: #{tpu_custom_call.1} parent=1 // loop_footer_branch
      %11 = sbr.rel target = $region3
    $region8: #{tpu_custom_call.1} parent=1 // loop_exit
      _
    %3034 = vsyncpa [#allocation4], 1
    %s3035 = scalar_lea.sflag [#allocation4], 1
    %3036 = vsyncpa %s3035, 1

</llo_original>
